<compile_context>
chip_gen: v5e
topology: v5e:2x2
jax: 0.10.0
libtpu: 0.0.40
codegen_flags: <defaults>
</compile_context>

<pallas_src>
from math import exp

import numpy as np
import jax
import jax.numpy as jnp
from jax import lax
from jax.experimental import pallas as pl
from jax.experimental.pallas import tpu as pltpu

WINDOW_SIZE = 11
SIGMA = 1.5
C1 = 0.01 ** 2
C2 = 0.03 ** 2


class Config:
    # The original repo's `Config` is external to the provided source; define a deterministic
    # one that enables every criterion SalLoss knows about.
    def __init__(self):
        self.lambdas_sal_last = {
            'bce': 30.0,
            'iou': 0.5,
            'ssim': 1.0,
            'mse': 150.0,
            'reg': 100.0,
        }


def gaussian_1d(window_size, sigma):
    g = [exp(-(x - window_size // 2) ** 2 / float(2 * sigma ** 2)) for x in range(window_size)]
    s = sum(g)
    return [v / s for v in g]


def _band_matrix(n, w1d):
    """M (n, n) with M[i, r] = w1d[r - i + pad]: (M @ x)[i] == zero-padded cross-correlation."""
    pad = len(w1d) // 2
    M = np.zeros((n, n), np.float32)
    for i in range(n):
        for r in range(n):
            k = r - i + pad
            if 0 <= k < len(w1d):
                M[i, r] = w1d[k]
    return M


def _bilinear_matrix(n_in, n_out):
    """R (n_out, n_in) with R @ x == 1-D bilinear align_corners resize along that axis."""
    M = np.zeros((n_out, n_in), np.float32)
    for i in range(n_out):
        src = i * (n_in - 1) / (n_out - 1) if n_out > 1 else 0.0
        lo = int(np.floor(src))
        hi = min(lo + 1, n_in - 1)
        frac = src - lo
        M[i, lo] += 1.0 - frac
        M[i, hi] += frac
    return M


def _make_fused_kernel(B, Bt, C, H, W, num_levels, resize_idx, lambdas):
    """Kernel processing Bt batch samples x all pyramid levels per grid step."""
    L = num_levels
    n_total = float(B * C * H * W)
    lam_bce = float(lambdas.get('bce', 0.0) or 0.0)
    lam_iou = float(lambdas.get('iou', 0.0) or 0.0)
    lam_ssim = float(lambdas.get('ssim', 0.0) or 0.0)
    lam_mse = float(lambdas.get('mse', 0.0) or 0.0)
    lam_reg = float(lambdas.get('reg', 0.0) or 0.0)
    HIGH = lax.Precision.HIGHEST

    def kernel(*args):
        gt_ref = args[0]
        pred_refs = args[1:1 + L]
        a_ref = args[1 + L]                     # (H, H) f32 band matrix (H-direction conv)
        b_ref = args[2 + L]                     # (W, W) f32 band matrix (W-direction conv)
        rmat_refs = args[3 + L:-1]              # bf16 bilinear-resize matrices (pairs)
        out_ref = args[-1]                      # (Bt, 8, 128) f32 per-sample partials

        # Constants are tiny now (no kron block-diagonals); load them once per grid step.
        a_mat = a_ref[...]
        b_mat = b_ref[...]
        rmats = [r[...] for r in rmat_refs]

        def conv_sep(x):
            # 11-tap separable zero-padded Gaussian as two small band matmuls, f32 operands
            # + 3-pass (HIGHEST) precision: the SSIM second moments are differences against
            # C2 = 9e-4, so single-pass bf16 truncation would cause visible cancellation.
            t = jnp.dot(a_mat, x, precision=HIGH, preferred_element_type=jnp.float32)
            return jnp.dot(t, b_mat, precision=HIGH, preferred_element_type=jnp.float32)

        def resize(x_raw, rh, rw):
            # Bilinear align_corners resize of logits as two MXU matmuls; bf16 constants
            # and operand (default single-pass MXU precision truncates to bf16 anyway).
            t = jnp.dot(rh, x_raw.astype(jnp.bfloat16), preferred_element_type=jnp.float32)
            return jnp.dot(t, rw, preferred_element_type=jnp.float32)

        def sample_contrib(s):
            gt_blk = gt_ref[s]                                  # (C, H, W), native dtype
            per_chan = []
            sum_g_sample = jnp.float32(0.0)
            for c in range(C):                                  # static channel loop
                g = gt_blk[c].astype(jnp.float32)               # (H, W)
                sg = jnp.sum(g)
                sg2 = jnp.sum(g * g)
                sum_g_sample = sum_g_sample + sg
                if lam_ssim:
                    # gt-dependent SSIM terms: computed ONCE per sample, reused per level.
                    mu2 = conv_sep(g)
                    mu2_sq = mu2 * mu2
                    s22 = conv_sep(g * g) - mu2_sq
                else:
                    mu2 = mu2_sq = s22 = None
                per_chan.append((g, sg2, mu2, mu2_sq, s22))

            contrib = jnp.float32(0.0)
            for lvl in range(L):                                # static loop over levels
                x_all = pred_refs[lvl][s]                       # (C, h_l, w_l) logits
                iand = jnp.float32(0.0)
                psum = jnp.float32(0.0)
                ssim_sum = jnp.float32(0.0)
                for c in range(C):
                    g, sg2, mu2, mu2_sq, s22 = per_chan[c]
                    x_raw = x_all[c]
                    if resize_idx[lvl] is not None:
                        ri = resize_idx[lvl]
                        x = resize(x_raw, rmats[2 * ri], rmats[2 * ri + 1])   # (H, W) f32
                    else:
                        x = x_raw.astype(jnp.float32)

                    # One exp shared by the sigmoid and the logits-form BCE.
                    e = jnp.exp(-jnp.abs(x))
                    inv = 1.0 / (1.0 + e)
                    p = jnp.where(x >= 0, inv, e * inv)
                    p2 = p * p
                    pg = p * g
                    sp = jnp.sum(p)
                    sp2 = jnp.sum(p2)
                    spg = jnp.sum(pg)

                    if lam_bce:
                        # BCELoss(sigmoid(x), g) from logits; e in (0,1] so log(1+e) is well
                        # conditioned.  (torch's clamp of log at -100 is omitted; it only
                        # matters for |logit| >~ 88.)
                        bce_sum = jnp.sum(jnp.maximum(x, 0.0) - x * g + jnp.log(1.0 + e))
                        contrib = contrib + (lam_bce / n_total) * bce_sum
                    if lam_mse:
                        # sum((p-g)^2) = sum(p^2) - 2*sum(p*g) + sum(g^2)
                        contrib = contrib + (lam_mse / n_total) * (sp2 - 2.0 * spg + sg2)
                    if lam_reg:
                        # mean(1 - (p^2 + (p-1)^2)) = mean(2p - 2p^2)
                        contrib = contrib + (2.0 * lam_reg / n_total) * (sp - sp2)
                    if lam_iou:
                        iand = iand + spg
                        psum = psum + sp
                    if lam_ssim:
                        mu1 = conv_sep(p)
                        e11 = conv_sep(p2)
                        e12 = conv_sep(pg)
                        mu1_sq = mu1 * mu1
                        mu1_mu2 = mu1 * mu2
                        s11 = e11 - mu1_sq
                        s12 = e12 - mu1_mu2
                        sm = ((2.0 * mu1_mu2 + C1) * (2.0 * s12 + C2)) / (
                            (mu1_sq + mu2_sq + C1) * (s11 + s22 + C2))
                        ssim_sum = ssim_sum + jnp.sum(sm)

                if lam_iou:
                    # NOTE: no epsilon, matching torch IoU_loss semantics exactly.
                    ior = sum_g_sample + psum - iand
                    contrib = contrib + lam_iou * (1.0 - iand / ior)
                if lam_ssim:
                    contrib = contrib + (lam_ssim / B - (lam_ssim / n_total) * ssim_sum)
            return contrib

        if Bt == 1:
            out_ref[pl.ds(0, 1)] = jnp.broadcast_to(sample_contrib(0), (1, 8, 128))
        else:
            # fori_loop bounds per-sample live ranges (a static Python loop would let the
            # compiler interleave samples and spill); one full-tile (8,128) store per sample.
            def body(s, carry):
                out_ref[pl.ds(s, 1)] = jnp.broadcast_to(sample_contrib(s), (1, 8, 128))
                return carry
            lax.fori_loop(0, Bt, body, 0)

    return kernel


def _pick_samples_per_step(B, C, H, W):
    # Amortize the ~0.35us per-grid-step overhead for tiny per-sample slabs, but keep at
    # least 2 grid steps so the "parallel" axis can shard across v7x's 2 TensorCores, and
    # never more samples per step than the VMEM budget for one step's temporaries allows.
    elems = C * H * W
    budget = max(1, (128 * 128) // elems)
    cap = max(1, min(budget, B // 2))
    bt = 1
    for cand in range(1, cap + 1):
        if B % cand == 0:
            bt = cand
    return bt


def sal_loss_pallas(scaled_preds, gt, lambdas):
    B, C, H, W = gt.shape
    L = len(scaled_preds)
    lam_ssim = float(lambdas.get('ssim', 0.0) or 0.0)
    w1d = gaussian_1d(WINDOW_SIZE, SIGMA)

    # Separable SSIM band matrices: (H,H) left-multiply and (W,W) right-multiply (f32 —
    # they feed HIGHEST-precision matmuls).  No kron block-diagonals.
    a_mat = jnp.asarray(_band_matrix(H, w1d))          # (H, H)
    b_mat = jnp.asarray(_band_matrix(W, w1d).T)        # (W, W)

    resize_idx = []
    rmats = []
    for p in scaled_preds:
        pb, pc, ph, pw = p.shape
        assert pb == B and pc == C, "each pyramid level must share batch/channel with gt"
        if (ph, pw) == (H, W):
            resize_idx.append(None)
        else:
            rh = _bilinear_matrix(ph, H)                                   # (H, ph)
            rw = _bilinear_matrix(pw, W).T                                 # (pw, W)
            resize_idx.append(len(rmats) // 2)
            rmats.append(jnp.asarray(rh, dtype=jnp.bfloat16))
            rmats.append(jnp.asarray(rw, dtype=jnp.bfloat16))

    Bt = _pick_samples_per_step(B, C, H, W)
    assert B % Bt == 0
    grid = (B // Bt,)

    kernel = _make_fused_kernel(B, Bt, C, H, W, L, tuple(resize_idx), lambdas)

    in_specs = [pl.BlockSpec((Bt, C, H, W), lambda b: (b, 0, 0, 0))]        # gt
    for p in scaled_preds:
        _, _, ph, pw = p.shape
        in_specs.append(pl.BlockSpec((Bt, C, ph, pw), lambda b: (b, 0, 0, 0)))
    in_specs.append(pl.BlockSpec(tuple(a_mat.shape), lambda b: (0, 0)))
    in_specs.append(pl.BlockSpec(tuple(b_mat.shape), lambda b: (0, 0)))
    for m in rmats:
        in_specs.append(pl.BlockSpec(tuple(m.shape), lambda b: (0, 0)))

    # Lane-dense, tile-aligned output block: (Bt, 8, 128) f32, last two dims = (8, 128).
    out_spec = pl.BlockSpec((Bt, 8, 128), lambda b: (b, 0, 0))

    # --- VMEM scoped limit: cover double-buffered input blocks + constants + f32 temps,
    # never below the 32 MiB default, capped at 56 MiB (fits v7x's 64 MiB physical). ---
    isz = lambda a: jnp.dtype(a.dtype).itemsize
    blk_in_bytes = Bt * C * H * W * isz(gt) + sum(
        Bt * C * p.shape[2] * p.shape[3] * isz(p) for p in scaled_preds)
    const_bytes = (int(a_mat.size) + int(b_mat.size)) * 4 + sum(int(m.size) * 2 for m in rmats)
    temp_bytes = 24 * C * H * W * 4                    # live f32 maps for one in-flight sample
    est = 2 * blk_in_bytes + 2 * const_bytes + temp_bytes + 2 * Bt * 8 * 128 * 4
    vmem_limit = int(min(56 * 1024 * 1024, max(32 * 1024 * 1024, 2 * est)))

    # --- Advisory cost estimate for XLA's scheduler around the custom call. ---
    mm_macs = 0
    for lvl, p in enumerate(scaled_preds):
        _, _, ph, pw = p.shape
        if resize_idx[lvl] is not None:
            mm_macs += B * C * (H * ph * pw + H * pw * W)
        if lam_ssim:
            mm_macs += B * C * 3 * (H * H * W + H * W * W)
    if lam_ssim:
        mm_macs += B * C * 2 * (H * H * W + H * W * W)          # gt-side convs, once/sample
    bytes_accessed = (int(gt.size) * isz(gt)
                      + sum(int(p.size) * isz(p) for p in scaled_preds)
                      + const_bytes + B * 8 * 128 * 4)
    cost = pl.CostEstimate(
        flops=int(2 * mm_macs + 30 * B * C * H * W * L),
        transcendentals=int(2 * B * C * H * W * L),
        bytes_accessed=int(bytes_accessed),
    )

    partials = pl.pallas_call(
        kernel,
        out_shape=jax.ShapeDtypeStruct((B, 8, 128), jnp.float32),
        grid_spec=pltpu.PrefetchScalarGridSpec(
            num_scalar_prefetch=0,
            grid=grid,
            in_specs=in_specs,
            out_specs=out_spec,
        ),
        compiler_params=pltpu.CompilerParams(
            # Per-sample partial outputs -> no cross-step dependence -> safe to shard
            # across TensorCores (>=2 grid steps guaranteed; wins on v7x).
            dimension_semantics=("parallel",),
            vmem_limit_bytes=vmem_limit,
        ),
        cost_estimate=cost,
    )(gt, *scaled_preds, a_mat, b_mat, *rmats)

    return jnp.sum(partials[:, 0, 0])


class SalLoss:
    """JAX/Pallas port of the PyTorch SalLoss forward pass (single fused TPU kernel)."""

    def __init__(self):
        self.config = Config()
        self.lambdas_sal_last = self.config.lambdas_sal_last

    def __call__(self, scaled_preds, gt):
        return sal_loss_pallas(list(scaled_preds), gt, self.lambdas_sal_last)


# ------------------------- pure-JAX reference (validation only) -------------------------

def _interpolate_bilinear_align_corners(x, out_h, out_w):
    # matches F.interpolate(x, size, mode='bilinear', align_corners=True)
    Bb, Cc, h, w = x.shape
    if (h, w) == (out_h, out_w):
        return x
    ys = (jnp.arange(out_h, dtype=jnp.float32) * ((h - 1) / (out_h - 1))
          if out_h > 1 else jnp.zeros((out_h,), jnp.float32))
    xs = (jnp.arange(out_w, dtype=jnp.float32) * ((w - 1) / (out_w - 1))
          if out_w > 1 else jnp.zeros((out_w,), jnp.float32))
    y0 = jnp.floor(ys).astype(jnp.int32)
    x0 = jnp.floor(xs).astype(jnp.int32)
    y1 = jnp.minimum(y0 + 1, h - 1)
    x1 = jnp.minimum(x0 + 1, w - 1)
    wy = (ys - y0.astype(jnp.float32))[None, None, :, None]
    wx = (xs - x0.astype(jnp.float32))[None, None, None, :]
    r0 = x[:, :, y0, :]
    r1 = x[:, :, y1, :]
    row = r0 * (1.0 - wy) + r1 * wy
    c0 = row[:, :, :, x0]
    c1 = row[:, :, :, x1]
    return c0 * (1.0 - wx) + c1 * wx


def _sal_loss_reference(scaled_preds, gt, lambdas):
    """Pure-JAX f32 reference mirroring the PyTorch semantics."""
    w1d = jnp.asarray(gaussian_1d(WINDOW_SIZE, SIGMA), jnp.float32)
    w2d = jnp.outer(w1d, w1d)
    loss = jnp.float32(0.0)
    for pred in scaled_preds:
        if pred.shape != gt.shape:
            pred = _interpolate_bilinear_align_corners(pred, gt.shape[2], gt.shape[3])
        p = jax.nn.sigmoid(pred.astype(jnp.float32))
        g = gt.astype(jnp.float32)
        B, C, H, W = p.shape
        bce = -jnp.mean(g * jnp.maximum(jnp.log(p), -100.0)
                        + (1.0 - g) * jnp.maximum(jnp.log(1.0 - p), -100.0))
        loss = loss + lambdas['bce'] * bce
        iou = jnp.float32(0.0)
        for i in range(B):
            iand = jnp.sum(g[i] * p[i])
            ior = jnp.sum(g[i]) + jnp.sum(p[i]) - iand
            iou = iou + (1.0 - iand / ior)
        loss = loss + lambdas['iou'] * iou
        win = jnp.broadcast_to(w2d[None, None], (C, 1, WINDOW_SIZE, WINDOW_SIZE))

        def dwconv(x):
            return lax.conv_general_dilated(
                x, win, window_strides=(1, 1),
                padding=[(WINDOW_SIZE // 2, WINDOW_SIZE // 2)] * 2,
                feature_group_count=C,
                dimension_numbers=('NCHW', 'OIHW', 'NCHW'),
                precision=lax.Precision.HIGHEST)

        mu1, mu2 = dwconv(p), dwconv(g)
        s11 = dwconv(p * p) - mu1 ** 2
        s22 = dwconv(g * g) - mu2 ** 2
        s12 = dwconv(p * g) - mu1 * mu2
        sm = ((2 * mu1 * mu2 + C1) * (2 * s12 + C2)) / (
            (mu1 ** 2 + mu2 ** 2 + C1) * (s11 + s22 + C2))
        loss = loss + lambdas['ssim'] * (1.0 - jnp.mean(sm))
        loss = loss + lambdas['mse'] * jnp.mean((p - g) ** 2)
        loss = loss + lambdas['reg'] * jnp.mean(1.0 - (p ** 2 + (p - 1.0) ** 2))
    return loss


def _run_case(key, B, C, H, W, sal_loss):
    k1, k2, k3 = jax.random.split(key, 3)
    gt = (jax.random.uniform(k1, (B, C, H, W)) > 0.5).astype(jnp.float32)
    pred_full = jax.random.normal(k2, (B, C, H, W), jnp.float32)
    pred_half = jax.random.normal(k3, (B, C, H // 2, W // 2), jnp.float32)
    scaled_preds = [pred_full, pred_half]
    loss = jax.block_until_ready(sal_loss(scaled_preds, gt))
    ref = jax.block_until_ready(
        _sal_loss_reference(scaled_preds, gt, sal_loss.lambdas_sal_last))
    # Tolerance covers the bf16 MXU bilinear-resize path (SSIM convs run at HIGHEST).
    tol = 1e-1 + 3e-3 * abs(float(ref))
    assert abs(float(loss) - float(ref)) <= tol, (float(loss), float(ref))


if __name__ == "__main__":
    sal_loss = SalLoss()
    key = jax.random.PRNGKey(0)
    ka, kb = jax.random.split(key)
    # Case 1: B=2 -> one sample per grid step (grid of 2, "parallel" axis usable on v7x).
    _run_case(ka, 2, 1, 16, 16, sal_loss)
    # Case 2: B=4, tiny slabs -> two samples per grid step, exercising the fori_loop path
    # and the fused bilinear-resize level.
    _run_case(kb, 4, 1, 8, 8, sal_loss)
    print("KERNEL_OK")
</pallas_src>

<mosaic_0001>
module attributes {stable_mosaic.version = 11 : i64} {
  func.func @kernel(%arg0: i32, %arg1: memref<1x1x16x16xf32, #tpu.memory_space<vmem>>, %arg2: memref<1x1x16x16xf32, #tpu.memory_space<vmem>>, %arg3: memref<1x1x8x8xf32, #tpu.memory_space<vmem>>, %arg4: memref<16x16xf32, #tpu.memory_space<vmem>>, %arg5: memref<16x16xf32, #tpu.memory_space<vmem>>, %arg6: memref<16x8xbf16, #tpu.memory_space<vmem>>, %arg7: memref<8x16xbf16, #tpu.memory_space<vmem>>, %arg8: memref<1x8x128xf32, #tpu.memory_space<vmem>>) attributes {dimension_semantics = [#tpu.dimension_semantics<parallel>], iteration_bounds = array<i64: 2>, scalar_prefetch = 0 : i64, scratch_operands = 0 : i64, tpu.core_type = #tpu.core_type<tc>, window_params = [{transform_indices = @transform_0, window_bounds = array<i64: 1, 1, 16, 16>}, {transform_indices = @transform_1, window_bounds = array<i64: 1, 1, 16, 16>}, {transform_indices = @transform_2, window_bounds = array<i64: 1, 1, 8, 8>}, {pipeline_mode = #tpu.pipeline_mode<synchronous>, transform_indices = @transform_3, window_bounds = array<i64: 16, 16>}, {pipeline_mode = #tpu.pipeline_mode<synchronous>, transform_indices = @transform_4, window_bounds = array<i64: 16, 16>}, {pipeline_mode = #tpu.pipeline_mode<synchronous>, transform_indices = @transform_5, window_bounds = array<i64: 16, 8>}, {pipeline_mode = #tpu.pipeline_mode<synchronous>, transform_indices = @transform_6, window_bounds = array<i64: 8, 16>}, {transform_indices = @transform_7, window_bounds = array<i64: 1, 8, 128>}]} {
    %c0 = arith.constant 0 : index
    %c0_0 = arith.constant 0 : index
    %0 = vector.load %arg4[%c0, %c0_0] : memref<16x16xf32, #tpu.memory_space<vmem>>, vector<16x16xf32>
    %c0_1 = arith.constant 0 : index
    %c0_2 = arith.constant 0 : index
    %1 = vector.load %arg5[%c0_1, %c0_2] : memref<16x16xf32, #tpu.memory_space<vmem>>, vector<16x16xf32>
    %c0_3 = arith.constant 0 : index
    %c0_4 = arith.constant 0 : index
    %2 = vector.load %arg6[%c0_3, %c0_4] : memref<16x8xbf16, #tpu.memory_space<vmem>>, vector<16x8xbf16>
    %c0_5 = arith.constant 0 : index
    %c0_6 = arith.constant 0 : index
    %3 = vector.load %arg7[%c0_5, %c0_6] : memref<8x16xbf16, #tpu.memory_space<vmem>>, vector<8x16xbf16>
    %c0_7 = arith.constant 0 : index
    %c0_8 = arith.constant 0 : index
    %c0_9 = arith.constant 0 : index
    %c0_10 = arith.constant 0 : index
    %4 = vector.load %arg1[%c0_7, %c0_8, %c0_9, %c0_10] : memref<1x1x16x16xf32, #tpu.memory_space<vmem>>, vector<1x1x16x16xf32>
    %5 = vector.shape_cast %4 : vector<1x1x16x16xf32> to vector<1x16x16xf32>
    %6 = vector.shape_cast %5 : vector<1x16x16xf32> to vector<16x16xf32>
    %7 = vector.shape_cast %6 : vector<16x16xf32> to vector<1x16x16xf32>
    %cst = arith.constant dense<0.000000e+00> : vector<1xf32>
    %8 = vector.multi_reduction <add>, %7, %cst [1, 2] : vector<1x16x16xf32> to vector<1xf32>
    %9 = vector.shape_cast %8 : vector<1xf32> to vector<1x1x1xf32>
    %10 = vector.extract %9[0, 0, 0] : f32 from vector<1x1x1xf32>
    %11 = arith.mulf %6, %6 : vector<16x16xf32>
    %12 = vector.shape_cast %11 : vector<16x16xf32> to vector<1x16x16xf32>
    %cst_11 = arith.constant dense<0.000000e+00> : vector<1xf32>
    %13 = vector.multi_reduction <add>, %12, %cst_11 [1, 2] : vector<1x16x16xf32> to vector<1xf32>
    %14 = vector.shape_cast %13 : vector<1xf32> to vector<1x1x1xf32>
    %15 = vector.extract %14[0, 0, 0] : f32 from vector<1x1x1xf32>
    %cst_12 = arith.constant 0.000000e+00 : f32
    %16 = arith.addf %cst_12, %10 : f32
    %cst_13 = arith.constant dense<0.000000e+00> : vector<16x16xf32>
    %17 = tpu.matmul %0, %6, %cst_13 {dimension_numbers = #tpu.dot_dimension_numbers<[1], [0], [0], [1], [0, 0, 1, 1], [], []>, precision = #tpu.contract_precision<fp32>} : vector<16x16xf32>, vector<16x16xf32>, vector<16x16xf32> -> vector<16x16xf32>
    %cst_14 = arith.constant dense<0.000000e+00> : vector<16x16xf32>
    %18 = tpu.matmul %17, %1, %cst_14 {dimension_numbers = #tpu.dot_dimension_numbers<[1], [0], [0], [1], [0, 0, 1, 1], [], []>, precision = #tpu.contract_precision<fp32>} : vector<16x16xf32>, vector<16x16xf32>, vector<16x16xf32> -> vector<16x16xf32>
    %19 = arith.mulf %18, %18 : vector<16x16xf32>
    %20 = arith.mulf %6, %6 : vector<16x16xf32>
    %cst_15 = arith.constant dense<0.000000e+00> : vector<16x16xf32>
    %21 = tpu.matmul %0, %20, %cst_15 {dimension_numbers = #tpu.dot_dimension_numbers<[1], [0], [0], [1], [0, 0, 1, 1], [], []>, precision = #tpu.contract_precision<fp32>} : vector<16x16xf32>, vector<16x16xf32>, vector<16x16xf32> -> vector<16x16xf32>
    %cst_16 = arith.constant dense<0.000000e+00> : vector<16x16xf32>
    %22 = tpu.matmul %21, %1, %cst_16 {dimension_numbers = #tpu.dot_dimension_numbers<[1], [0], [0], [1], [0, 0, 1, 1], [], []>, precision = #tpu.contract_precision<fp32>} : vector<16x16xf32>, vector<16x16xf32>, vector<16x16xf32> -> vector<16x16xf32>
    %23 = arith.subf %22, %19 : vector<16x16xf32>
    %c0_17 = arith.constant 0 : index
    %c0_18 = arith.constant 0 : index
    %c0_19 = arith.constant 0 : index
    %c0_20 = arith.constant 0 : index
    %24 = vector.load %arg2[%c0_17, %c0_18, %c0_19, %c0_20] : memref<1x1x16x16xf32, #tpu.memory_space<vmem>>, vector<1x1x16x16xf32>
    %25 = vector.shape_cast %24 : vector<1x1x16x16xf32> to vector<1x16x16xf32>
    %26 = vector.shape_cast %25 : vector<1x16x16xf32> to vector<16x16xf32>
    %27 = math.absf %26 : vector<16x16xf32>
    %cst_21 = arith.constant 0.000000e+00 : f32
    %28 = vector.broadcast %cst_21 : f32 to vector<16x16xf32>
    %29 = arith.subf %28, %27 : vector<16x16xf32>
    %30 = math.exp %29 : vector<16x16xf32>
    %cst_22 = arith.constant 1.000000e+00 : f32
    %31 = vector.broadcast %cst_22 : f32 to vector<16x16xf32>
    %32 = arith.addf %31, %30 : vector<16x16xf32>
    %cst_23 = arith.constant 1.000000e+00 : f32
    %33 = vector.broadcast %cst_23 : f32 to vector<16x16xf32>
    %34 = arith.divf %33, %32 : vector<16x16xf32>
    %cst_24 = arith.constant 0.000000e+00 : f32
    %35 = vector.broadcast %cst_24 : f32 to vector<16x16xf32>
    %36 = arith.cmpf oge, %26, %35 : vector<16x16xf32>
    %37 = arith.mulf %30, %34 : vector<16x16xf32>
    %38 = arith.select %36, %34, %37 : vector<16x16xi1>, vector<16x16xf32>
    %39 = arith.mulf %38, %38 : vector<16x16xf32>
    %40 = arith.mulf %38, %6 : vector<16x16xf32>
    %41 = vector.shape_cast %38 : vector<16x16xf32> to vector<1x16x16xf32>
    %cst_25 = arith.constant dense<0.000000e+00> : vector<1xf32>
    %42 = vector.multi_reduction <add>, %41, %cst_25 [1, 2] : vector<1x16x16xf32> to vector<1xf32>
    %43 = vector.shape_cast %42 : vector<1xf32> to vector<1x1x1xf32>
    %44 = vector.extract %43[0, 0, 0] : f32 from vector<1x1x1xf32>
    %45 = vector.shape_cast %39 : vector<16x16xf32> to vector<1x16x16xf32>
    %cst_26 = arith.constant dense<0.000000e+00> : vector<1xf32>
    %46 = vector.multi_reduction <add>, %45, %cst_26 [1, 2] : vector<1x16x16xf32> to vector<1xf32>
    %47 = vector.shape_cast %46 : vector<1xf32> to vector<1x1x1xf32>
    %48 = vector.extract %47[0, 0, 0] : f32 from vector<1x1x1xf32>
    %49 = vector.shape_cast %40 : vector<16x16xf32> to vector<1x16x16xf32>
    %cst_27 = arith.constant dense<0.000000e+00> : vector<1xf32>
    %50 = vector.multi_reduction <add>, %49, %cst_27 [1, 2] : vector<1x16x16xf32> to vector<1xf32>
    %51 = vector.shape_cast %50 : vector<1xf32> to vector<1x1x1xf32>
    %52 = vector.extract %51[0, 0, 0] : f32 from vector<1x1x1xf32>
    %cst_28 = arith.constant 0.000000e+00 : f32
    %53 = vector.broadcast %cst_28 : f32 to vector<16x16xf32>
    %54 = arith.maximumf %26, %53 : vector<16x16xf32>
    %55 = arith.mulf %26, %6 : vector<16x16xf32>
    %56 = arith.subf %54, %55 : vector<16x16xf32>
    %cst_29 = arith.constant 1.000000e+00 : f32
    %57 = vector.broadcast %cst_29 : f32 to vector<16x16xf32>
    %58 = arith.addf %57, %30 : vector<16x16xf32>
    %59 = math.log %58 : vector<16x16xf32>
    %60 = arith.addf %56, %59 : vector<16x16xf32>
    %61 = vector.shape_cast %60 : vector<16x16xf32> to vector<1x16x16xf32>
    %cst_30 = arith.constant dense<0.000000e+00> : vector<1xf32>
    %62 = vector.multi_reduction <add>, %61, %cst_30 [1, 2] : vector<1x16x16xf32> to vector<1xf32>
    %63 = vector.shape_cast %62 : vector<1xf32> to vector<1x1x1xf32>
    %64 = vector.extract %63[0, 0, 0] : f32 from vector<1x1x1xf32>
    %cst_31 = arith.constant 0.05859375 : f32
    %65 = arith.mulf %cst_31, %64 : f32
    %cst_32 = arith.constant 0.000000e+00 : f32
    %66 = arith.addf %cst_32, %65 : f32
    %cst_33 = arith.constant 2.000000e+00 : f32
    %67 = arith.mulf %cst_33, %52 : f32
    %68 = arith.subf %48, %67 : f32
    %69 = arith.addf %68, %15 : f32
    %cst_34 = arith.constant 0.29296875 : f32
    %70 = arith.mulf %cst_34, %69 : f32
    %71 = arith.addf %66, %70 : f32
    %72 = arith.subf %44, %48 : f32
    %cst_35 = arith.constant 3.906250e-01 : f32
    %73 = arith.mulf %cst_35, %72 : f32
    %74 = arith.addf %71, %73 : f32
    %cst_36 = arith.constant 0.000000e+00 : f32
    %75 = arith.addf %cst_36, %52 : f32
    %cst_37 = arith.constant 0.000000e+00 : f32
    %76 = arith.addf %cst_37, %44 : f32
    %cst_38 = arith.constant dense<0.000000e+00> : vector<16x16xf32>
    %77 = tpu.matmul %0, %38, %cst_38 {dimension_numbers = #tpu.dot_dimension_numbers<[1], [0], [0], [1], [0, 0, 1, 1], [], []>, precision = #tpu.contract_precision<fp32>} : vector<16x16xf32>, vector<16x16xf32>, vector<16x16xf32> -> vector<16x16xf32>
    %cst_39 = arith.constant dense<0.000000e+00> : vector<16x16xf32>
    %78 = tpu.matmul %77, %1, %cst_39 {dimension_numbers = #tpu.dot_dimension_numbers<[1], [0], [0], [1], [0, 0, 1, 1], [], []>, precision = #tpu.contract_precision<fp32>} : vector<16x16xf32>, vector<16x16xf32>, vector<16x16xf32> -> vector<16x16xf32>
    %cst_40 = arith.constant dense<0.000000e+00> : vector<16x16xf32>
    %79 = tpu.matmul %0, %39, %cst_40 {dimension_numbers = #tpu.dot_dimension_numbers<[1], [0], [0], [1], [0, 0, 1, 1], [], []>, precision = #tpu.contract_precision<fp32>} : vector<16x16xf32>, vector<16x16xf32>, vector<16x16xf32> -> vector<16x16xf32>
    %cst_41 = arith.constant dense<0.000000e+00> : vector<16x16xf32>
    %80 = tpu.matmul %79, %1, %cst_41 {dimension_numbers = #tpu.dot_dimension_numbers<[1], [0], [0], [1], [0, 0, 1, 1], [], []>, precision = #tpu.contract_precision<fp32>} : vector<16x16xf32>, vector<16x16xf32>, vector<16x16xf32> -> vector<16x16xf32>
    %cst_42 = arith.constant dense<0.000000e+00> : vector<16x16xf32>
    %81 = tpu.matmul %0, %40, %cst_42 {dimension_numbers = #tpu.dot_dimension_numbers<[1], [0], [0], [1], [0, 0, 1, 1], [], []>, precision = #tpu.contract_precision<fp32>} : vector<16x16xf32>, vector<16x16xf32>, vector<16x16xf32> -> vector<16x16xf32>
    %cst_43 = arith.constant dense<0.000000e+00> : vector<16x16xf32>
    %82 = tpu.matmul %81, %1, %cst_43 {dimension_numbers = #tpu.dot_dimension_numbers<[1], [0], [0], [1], [0, 0, 1, 1], [], []>, precision = #tpu.contract_precision<fp32>} : vector<16x16xf32>, vector<16x16xf32>, vector<16x16xf32> -> vector<16x16xf32>
    %83 = arith.mulf %78, %78 : vector<16x16xf32>
    %84 = arith.mulf %78, %18 : vector<16x16xf32>
    %85 = arith.subf %80, %83 : vector<16x16xf32>
    %86 = arith.subf %82, %84 : vector<16x16xf32>
    %cst_44 = arith.constant 2.000000e+00 : f32
    %87 = vector.broadcast %cst_44 : f32 to vector<16x16xf32>
    %88 = arith.mulf %87, %84 : vector<16x16xf32>
    %cst_45 = arith.constant 9.99999974E-5 : f32
    %89 = vector.broadcast %cst_45 : f32 to vector<16x16xf32>
    %90 = arith.addf %88, %89 : vector<16x16xf32>
    %cst_46 = arith.constant 2.000000e+00 : f32
    %91 = vector.broadcast %cst_46 : f32 to vector<16x16xf32>
    %92 = arith.mulf %91, %86 : vector<16x16xf32>
    %cst_47 = arith.constant 8.99999984E-4 : f32
    %93 = vector.broadcast %cst_47 : f32 to vector<16x16xf32>
    %94 = arith.addf %92, %93 : vector<16x16xf32>
    %95 = arith.mulf %90, %94 : vector<16x16xf32>
    %96 = arith.addf %83, %19 : vector<16x16xf32>
    %cst_48 = arith.constant 9.99999974E-5 : f32
    %97 = vector.broadcast %cst_48 : f32 to vector<16x16xf32>
    %98 = arith.addf %96, %97 : vector<16x16xf32>
    %99 = arith.addf %85, %23 : vector<16x16xf32>
    %cst_49 = arith.constant 8.99999984E-4 : f32
    %100 = vector.broadcast %cst_49 : f32 to vector<16x16xf32>
    %101 = arith.addf %99, %100 : vector<16x16xf32>
    %102 = arith.mulf %98, %101 : vector<16x16xf32>
    %103 = arith.divf %95, %102 : vector<16x16xf32>
    %104 = vector.shape_cast %103 : vector<16x16xf32> to vector<1x16x16xf32>
    %cst_50 = arith.constant dense<0.000000e+00> : vector<1xf32>
    %105 = vector.multi_reduction <add>, %104, %cst_50 [1, 2] : vector<1x16x16xf32> to vector<1xf32>
    %106 = vector.shape_cast %105 : vector<1xf32> to vector<1x1x1xf32>
    %107 = vector.extract %106[0, 0, 0] : f32 from vector<1x1x1xf32>
    %cst_51 = arith.constant 0.000000e+00 : f32
    %108 = arith.addf %cst_51, %107 : f32
    %109 = arith.addf %16, %76 : f32
    %110 = arith.subf %109, %75 : f32
    %111 = arith.divf %75, %110 : f32
    %cst_52 = arith.constant 1.000000e+00 : f32
    %112 = arith.subf %cst_52, %111 : f32
    %cst_53 = arith.constant 5.000000e-01 : f32
    %113 = arith.mulf %cst_53, %112 : f32
    %114 = arith.addf %74, %113 : f32
    %cst_54 = arith.constant 0.001953125 : f32
    %115 = arith.mulf %cst_54, %108 : f32
    %cst_55 = arith.constant 5.000000e-01 : f32
    %116 = arith.subf %cst_55, %115 : f32
    %117 = arith.addf %114, %116 : f32
    %c0_56 = arith.constant 0 : index
    %c0_57 = arith.constant 0 : index
    %c0_58 = arith.constant 0 : index
    %c0_59 = arith.constant 0 : index
    %118 = vector.load %arg3[%c0_56, %c0_57, %c0_58, %c0_59] : memref<1x1x8x8xf32, #tpu.memory_space<vmem>>, vector<1x1x8x8xf32>
    %119 = vector.shape_cast %118 : vector<1x1x8x8xf32> to vector<1x8x8xf32>
    %120 = vector.shape_cast %119 : vector<1x8x8xf32> to vector<8x8xf32>
    %121 = arith.truncf %120 : vector<8x8xf32> to vector<8x8xbf16>
    %cst_60 = arith.constant dense<0.000000e+00> : vector<16x8xf32>
    %122 = tpu.matmul %2, %121, %cst_60 {dimension_numbers = #tpu.dot_dimension_numbers<[1], [0], [0], [1], [0, 0, 1, 1], [], []>} : vector<16x8xbf16>, vector<8x8xbf16>, vector<16x8xf32> -> vector<16x8xf32>
    %cst_61 = arith.constant dense<0.000000e+00> : vector<16x16xf32>
    %123 = tpu.matmul %122, %3, %cst_61 {dimension_numbers = #tpu.dot_dimension_numbers<[1], [0], [0], [1], [0, 0, 1, 1], [], []>} : vector<16x8xf32>, vector<8x16xbf16>, vector<16x16xf32> -> vector<16x16xf32>
    %124 = math.absf %123 : vector<16x16xf32>
    %cst_62 = arith.constant 0.000000e+00 : f32
    %125 = vector.broadcast %cst_62 : f32 to vector<16x16xf32>
    %126 = arith.subf %125, %124 : vector<16x16xf32>
    %127 = math.exp %126 : vector<16x16xf32>
    %cst_63 = arith.constant 1.000000e+00 : f32
    %128 = vector.broadcast %cst_63 : f32 to vector<16x16xf32>
    %129 = arith.addf %128, %127 : vector<16x16xf32>
    %cst_64 = arith.constant 1.000000e+00 : f32
    %130 = vector.broadcast %cst_64 : f32 to vector<16x16xf32>
    %131 = arith.divf %130, %129 : vector<16x16xf32>
    %cst_65 = arith.constant 0.000000e+00 : f32
    %132 = vector.broadcast %cst_65 : f32 to vector<16x16xf32>
    %133 = arith.cmpf oge, %123, %132 : vector<16x16xf32>
    %134 = arith.mulf %127, %131 : vector<16x16xf32>
    %135 = arith.select %133, %131, %134 : vector<16x16xi1>, vector<16x16xf32>
    %136 = arith.mulf %135, %135 : vector<16x16xf32>
    %137 = arith.mulf %135, %6 : vector<16x16xf32>
    %138 = vector.shape_cast %135 : vector<16x16xf32> to vector<1x16x16xf32>
    %cst_66 = arith.constant dense<0.000000e+00> : vector<1xf32>
    %139 = vector.multi_reduction <add>, %138, %cst_66 [1, 2] : vector<1x16x16xf32> to vector<1xf32>
    %140 = vector.shape_cast %139 : vector<1xf32> to vector<1x1x1xf32>
    %141 = vector.extract %140[0, 0, 0] : f32 from vector<1x1x1xf32>
    %142 = vector.shape_cast %136 : vector<16x16xf32> to vector<1x16x16xf32>
    %cst_67 = arith.constant dense<0.000000e+00> : vector<1xf32>
    %143 = vector.multi_reduction <add>, %142, %cst_67 [1, 2] : vector<1x16x16xf32> to vector<1xf32>
    %144 = vector.shape_cast %143 : vector<1xf32> to vector<1x1x1xf32>
    %145 = vector.extract %144[0, 0, 0] : f32 from vector<1x1x1xf32>
    %146 = vector.shape_cast %137 : vector<16x16xf32> to vector<1x16x16xf32>
    %cst_68 = arith.constant dense<0.000000e+00> : vector<1xf32>
    %147 = vector.multi_reduction <add>, %146, %cst_68 [1, 2] : vector<1x16x16xf32> to vector<1xf32>
    %148 = vector.shape_cast %147 : vector<1xf32> to vector<1x1x1xf32>
    %149 = vector.extract %148[0, 0, 0] : f32 from vector<1x1x1xf32>
    %cst_69 = arith.constant 0.000000e+00 : f32
    %150 = vector.broadcast %cst_69 : f32 to vector<16x16xf32>
    %151 = arith.maximumf %123, %150 : vector<16x16xf32>
    %152 = arith.mulf %123, %6 : vector<16x16xf32>
    %153 = arith.subf %151, %152 : vector<16x16xf32>
    %cst_70 = arith.constant 1.000000e+00 : f32
    %154 = vector.broadcast %cst_70 : f32 to vector<16x16xf32>
    %155 = arith.addf %154, %127 : vector<16x16xf32>
    %156 = math.log %155 : vector<16x16xf32>
    %157 = arith.addf %153, %156 : vector<16x16xf32>
    %158 = vector.shape_cast %157 : vector<16x16xf32> to vector<1x16x16xf32>
    %cst_71 = arith.constant dense<0.000000e+00> : vector<1xf32>
    %159 = vector.multi_reduction <add>, %158, %cst_71 [1, 2] : vector<1x16x16xf32> to vector<1xf32>
    %160 = vector.shape_cast %159 : vector<1xf32> to vector<1x1x1xf32>
    %161 = vector.extract %160[0, 0, 0] : f32 from vector<1x1x1xf32>
    %cst_72 = arith.constant 0.05859375 : f32
    %162 = arith.mulf %cst_72, %161 : f32
    %163 = arith.addf %117, %162 : f32
    %cst_73 = arith.constant 2.000000e+00 : f32
    %164 = arith.mulf %cst_73, %149 : f32
    %165 = arith.subf %145, %164 : f32
    %166 = arith.addf %165, %15 : f32
    %cst_74 = arith.constant 0.29296875 : f32
    %167 = arith.mulf %cst_74, %166 : f32
    %168 = arith.addf %163, %167 : f32
    %169 = arith.subf %141, %145 : f32
    %cst_75 = arith.constant 3.906250e-01 : f32
    %170 = arith.mulf %cst_75, %169 : f32
    %171 = arith.addf %168, %170 : f32
    %cst_76 = arith.constant 0.000000e+00 : f32
    %172 = arith.addf %cst_76, %149 : f32
    %cst_77 = arith.constant 0.000000e+00 : f32
    %173 = arith.addf %cst_77, %141 : f32
    %cst_78 = arith.constant dense<0.000000e+00> : vector<16x16xf32>
    %174 = tpu.matmul %0, %135, %cst_78 {dimension_numbers = #tpu.dot_dimension_numbers<[1], [0], [0], [1], [0, 0, 1, 1], [], []>, precision = #tpu.contract_precision<fp32>} : vector<16x16xf32>, vector<16x16xf32>, vector<16x16xf32> -> vector<16x16xf32>
    %cst_79 = arith.constant dense<0.000000e+00> : vector<16x16xf32>
    %175 = tpu.matmul %174, %1, %cst_79 {dimension_numbers = #tpu.dot_dimension_numbers<[1], [0], [0], [1], [0, 0, 1, 1], [], []>, precision = #tpu.contract_precision<fp32>} : vector<16x16xf32>, vector<16x16xf32>, vector<16x16xf32> -> vector<16x16xf32>
    %cst_80 = arith.constant dense<0.000000e+00> : vector<16x16xf32>
    %176 = tpu.matmul %0, %136, %cst_80 {dimension_numbers = #tpu.dot_dimension_numbers<[1], [0], [0], [1], [0, 0, 1, 1], [], []>, precision = #tpu.contract_precision<fp32>} : vector<16x16xf32>, vector<16x16xf32>, vector<16x16xf32> -> vector<16x16xf32>
    %cst_81 = arith.constant dense<0.000000e+00> : vector<16x16xf32>
    %177 = tpu.matmul %176, %1, %cst_81 {dimension_numbers = #tpu.dot_dimension_numbers<[1], [0], [0], [1], [0, 0, 1, 1], [], []>, precision = #tpu.contract_precision<fp32>} : vector<16x16xf32>, vector<16x16xf32>, vector<16x16xf32> -> vector<16x16xf32>
    %cst_82 = arith.constant dense<0.000000e+00> : vector<16x16xf32>
    %178 = tpu.matmul %0, %137, %cst_82 {dimension_numbers = #tpu.dot_dimension_numbers<[1], [0], [0], [1], [0, 0, 1, 1], [], []>, precision = #tpu.contract_precision<fp32>} : vector<16x16xf32>, vector<16x16xf32>, vector<16x16xf32> -> vector<16x16xf32>
    %cst_83 = arith.constant dense<0.000000e+00> : vector<16x16xf32>
    %179 = tpu.matmul %178, %1, %cst_83 {dimension_numbers = #tpu.dot_dimension_numbers<[1], [0], [0], [1], [0, 0, 1, 1], [], []>, precision = #tpu.contract_precision<fp32>} : vector<16x16xf32>, vector<16x16xf32>, vector<16x16xf32> -> vector<16x16xf32>
    %180 = arith.mulf %175, %175 : vector<16x16xf32>
    %181 = arith.mulf %175, %18 : vector<16x16xf32>
    %182 = arith.subf %177, %180 : vector<16x16xf32>
    %183 = arith.subf %179, %181 : vector<16x16xf32>
    %cst_84 = arith.constant 2.000000e+00 : f32
    %184 = vector.broadcast %cst_84 : f32 to vector<16x16xf32>
    %185 = arith.mulf %184, %181 : vector<16x16xf32>
    %cst_85 = arith.constant 9.99999974E-5 : f32
    %186 = vector.broadcast %cst_85 : f32 to vector<16x16xf32>
    %187 = arith.addf %185, %186 : vector<16x16xf32>
    %cst_86 = arith.constant 2.000000e+00 : f32
    %188 = vector.broadcast %cst_86 : f32 to vector<16x16xf32>
    %189 = arith.mulf %188, %183 : vector<16x16xf32>
    %cst_87 = arith.constant 8.99999984E-4 : f32
    %190 = vector.broadcast %cst_87 : f32 to vector<16x16xf32>
    %191 = arith.addf %189, %190 : vector<16x16xf32>
    %192 = arith.mulf %187, %191 : vector<16x16xf32>
    %193 = arith.addf %180, %19 : vector<16x16xf32>
    %cst_88 = arith.constant 9.99999974E-5 : f32
    %194 = vector.broadcast %cst_88 : f32 to vector<16x16xf32>
    %195 = arith.addf %193, %194 : vector<16x16xf32>
    %196 = arith.addf %182, %23 : vector<16x16xf32>
    %cst_89 = arith.constant 8.99999984E-4 : f32
    %197 = vector.broadcast %cst_89 : f32 to vector<16x16xf32>
    %198 = arith.addf %196, %197 : vector<16x16xf32>
    %199 = arith.mulf %195, %198 : vector<16x16xf32>
    %200 = arith.divf %192, %199 : vector<16x16xf32>
    %201 = vector.shape_cast %200 : vector<16x16xf32> to vector<1x16x16xf32>
    %cst_90 = arith.constant dense<0.000000e+00> : vector<1xf32>
    %202 = vector.multi_reduction <add>, %201, %cst_90 [1, 2] : vector<1x16x16xf32> to vector<1xf32>
    %203 = vector.shape_cast %202 : vector<1xf32> to vector<1x1x1xf32>
    %204 = vector.extract %203[0, 0, 0] : f32 from vector<1x1x1xf32>
    %cst_91 = arith.constant 0.000000e+00 : f32
    %205 = arith.addf %cst_91, %204 : f32
    %206 = arith.addf %16, %173 : f32
    %207 = arith.subf %206, %172 : f32
    %208 = arith.divf %172, %207 : f32
    %cst_92 = arith.constant 1.000000e+00 : f32
    %209 = arith.subf %cst_92, %208 : f32
    %cst_93 = arith.constant 5.000000e-01 : f32
    %210 = arith.mulf %cst_93, %209 : f32
    %211 = arith.addf %171, %210 : f32
    %cst_94 = arith.constant 0.001953125 : f32
    %212 = arith.mulf %cst_94, %205 : f32
    %cst_95 = arith.constant 5.000000e-01 : f32
    %213 = arith.subf %cst_95, %212 : f32
    %214 = arith.addf %211, %213 : f32
    %215 = vector.broadcast %214 : f32 to vector<1x8x128xf32>
    %c0_96 = arith.constant 0 : index
    %c0_97 = arith.constant 0 : index
    %c0_98 = arith.constant 0 : index
    %216 = vector.load %arg8[%c0_96, %c0_97, %c0_98] : memref<1x8x128xf32, #tpu.memory_space<vmem>>, vector<1x8x128xf32>
    tpu.vector_store %arg8[%c0_96, %c0_97, %c0_98], %215 {strides = array<i32>} : memref<1x8x128xf32, #tpu.memory_space<vmem>>, vector<1x8x128xf32>,
    return
  }
  func.func @transform_0(%arg0: i32) -> (i32, i32, i32, i32) {
    %c0_i32 = arith.constant 0 : i32
    %c0_i32_0 = arith.constant 0 : i32
    %c0_i32_1 = arith.constant 0 : i32
    %c0_i32_2 = arith.constant 0 : i32
    return %arg0, %c0_i32, %c0_i32_0, %c0_i32_1 : i32, i32, i32, i32
  }
  func.func @transform_1(%arg0: i32) -> (i32, i32, i32, i32) {
    %c0_i32 = arith.constant 0 : i32
    %c0_i32_0 = arith.constant 0 : i32
    %c0_i32_1 = arith.constant 0 : i32
    %c0_i32_2 = arith.constant 0 : i32
    return %arg0, %c0_i32, %c0_i32_0, %c0_i32_1 : i32, i32, i32, i32
  }
  func.func @transform_2(%arg0: i32) -> (i32, i32, i32, i32) {
    %c0_i32 = arith.constant 0 : i32
    %c0_i32_0 = arith.constant 0 : i32
    %c0_i32_1 = arith.constant 0 : i32
    %c0_i32_2 = arith.constant 0 : i32
    return %arg0, %c0_i32, %c0_i32_0, %c0_i32_1 : i32, i32, i32, i32
  }
  func.func @transform_3(%arg0: i32) -> (i32, i32) {
    %c0_i32 = arith.constant 0 : i32
    %c0_i32_0 = arith.constant 0 : i32
    %c0_i32_1 = arith.constant 0 : i32
    return %c0_i32, %c0_i32_0 : i32, i32
  }
  func.func @transform_4(%arg0: i32) -> (i32, i32) {
    %c0_i32 = arith.constant 0 : i32
    %c0_i32_0 = arith.constant 0 : i32
    %c0_i32_1 = arith.constant 0 : i32
    return %c0_i32, %c0_i32_0 : i32, i32
  }
  func.func @transform_5(%arg0: i32) -> (i32, i32) {
    %c0_i32 = arith.constant 0 : i32
    %c0_i32_0 = arith.constant 0 : i32
    %c0_i32_1 = arith.constant 0 : i32
    return %c0_i32, %c0_i32_0 : i32, i32
  }
  func.func @transform_6(%arg0: i32) -> (i32, i32) {
    %c0_i32 = arith.constant 0 : i32
    %c0_i32_0 = arith.constant 0 : i32
    %c0_i32_1 = arith.constant 0 : i32
    return %c0_i32, %c0_i32_0 : i32, i32
  }
  func.func @transform_7(%arg0: i32) -> (i32, i32, i32) {
    %c0_i32 = arith.constant 0 : i32
    %c0_i32_0 = arith.constant 0 : i32
    %c0_i32_1 = arith.constant 0 : i32
    return %arg0, %c0_i32, %c0_i32_0 : i32, i32, i32
  }
}

</mosaic_0001>

<llo_original>
// kernel: tpu_custom_call.1
$region0: #{tpu_custom_call.1}
  #allocation0 [shape = 'u32[]', space=smem, size = 0x4, offset = 0x4, fixed_abs, tag = 'smem constant byte address 0x4 - core index']
  #allocation1 [shape = 'u32[72,128]{1,0:T(1,128)}', space=vmem, size = 0x9000, scoped, tag = 'internal scratch']
  %s0 = inlined_call_operand.hbm [shape: f32[2,1,16,16], index: 0, kind: input, shape index: {}]
  %s1 = inlined_call_operand.hbm [shape: f32[2,1,16,16], index: 1, kind: input, shape index: {}]
  %s2 = inlined_call_operand.hbm [shape: f32[2,1,8,8], index: 2, kind: input, shape index: {}]
  %s3 = inlined_call_operand.hbm [shape: f32[16,16], index: 3, kind: input, shape index: {}]
  %s4 = inlined_call_operand.hbm [shape: f32[16,16], index: 4, kind: input, shape index: {}]
  %s5 = inlined_call_operand.vmem [shape: bf16[16,8], index: 5, kind: input, shape index: {}]
  %s6 = inlined_call_operand.vmem [shape: bf16[8,16], index: 6, kind: input, shape index: {}]
  %s7 = inlined_call_operand.hbm [shape: f32[2,8,128], index: 7, kind: output, shape index: {}]
  %s8 = sld [smem:[#allocation0]]
  $region81: #{tpu_custom_call.1} parent=0
    _
  %s10 = ssub.s32 1, %s8
  %s11 = scalar_select 0, %s10, %s8
  $region1: #{tpu_custom_call.1} parent=0
    #allocation2 [shape = 'u8[16384]{0}', space=vmem, size = 0x4000, scoped, tag = 'input window, operand 0']
    #allocation3 [shape = 's32[2]{0}', space=sflag, size = 0x8, scoped, tag = 'scoped memory for tpu_custom_call.1']
    #allocation4 [shape = 's32[2]{0}', space=sflag, size = 0x8, scoped, tag = 'scoped memory for tpu_custom_call.1']
    #allocation5 [shape = 'u8[16384]{0}', space=vmem, size = 0x4000, scoped, tag = 'input window, operand 1']
    #allocation6 [shape = 's32[2]{0}', space=sflag, size = 0x8, scoped, tag = 'scoped memory for tpu_custom_call.1']
    #allocation7 [shape = 'u8[8192]{0}', space=vmem, size = 0x2000, scoped, tag = 'input window, operand 2']
    #allocation8 [shape = 'u8[8192]{0}', space=vmem, size = 0x2000, scoped, tag = 'input window, operand 3, single buffered']
    #allocation9 [shape = 's32[1]{0}', space=sflag, size = 0x4, scoped, tag = 'scoped memory for tpu_custom_call.1']
    #allocation10 [shape = 'u8[8192]{0}', space=vmem, size = 0x2000, scoped, tag = 'input window, operand 4, single buffered']
    #allocation11 [shape = 'u8[8192]{0}', space=vmem, size = 0x2000, scoped, tag = 'output window, operand 0']
    %12 = vsyncpa [#allocation3], 0
    %s13 = scalar_lea.sflag [#allocation3], 1
    %14 = vsyncpa %s13, 0
    %15 = vsyncpa [#allocation6], 0
    %s16 = scalar_lea.sflag [#allocation6], 1
    %17 = vsyncpa %s16, 0
    %18 = vsyncpa [#allocation9], 0
    %19 = vsyncpa [#allocation4], 0
    %s20 = scalar_lea.sflag [#allocation4], 1
    %21 = vsyncpa %s20, 0
    loop: start=0, step=1, limit=4
    $region2: #{tpu_custom_call.1} parent=1 // loop_pre_header
      _
    $region3: #{tpu_custom_call.1} parent=1 // loop_header
      %s23 = sphi 0, %s27
      %p24 = scmp.ge.s32.totalorder %s23, 4
      %s33 = sphi 0, %s35
      %s36 = sphi 0, %s33
      %s37 = sphi 0, %s36
      %s53 = sphi 0, %s37
      %s59 = sphi 0, %s61
      %s62 = sphi 0, %s59
      %s63 = sphi 0, %s62
      %s79 = sphi 0, %s63
      %s85 = sphi 0, %s87
      %s88 = sphi 0, %s85
      %s89 = sphi 0, %s88
      %s105 = sphi 0, %s89
      %s109 = sphi 0, %s109
      %s111 = sphi 0, %s109
      %s112 = sphi 0, %s111
      %s126 = sphi 0, %s112
      %s130 = sphi 0, %s130
      %s132 = sphi 0, %s130
      %s133 = sphi 0, %s132
      %s147 = sphi 0, %s133
      %s151 = sphi 0, %s151
      %s153 = sphi 0, %s151
      %s154 = sphi 0, %s153
      %s168 = sphi 0, %s154
      %s172 = sphi 0, %s172
      %s174 = sphi 0, %s172
      %s175 = sphi 0, %s174
      %s189 = sphi 0, %s175
      %s195 = sphi 0, %s197
      %s198 = sphi 0, %s195
      %s199 = sphi 0, %s198
      %s215 = sphi 0, %s199
    $region4: #{tpu_custom_call.1} parent=1 // loop_header_branch
      %26 = sbr.rel (%p24) target = $region8
    $region5: #{tpu_custom_call.1} parent=1 // loop_body
      %s28 = ssub.s32 %s23, 1
      %s29 = ssub.s32 %s23, 2
      %s30 = sadd.s32 %s23, 1
      %s31 = ssub.s32 %s23, %s30
      %p32 = scmp.eq.s32.totalorder %s31, 0
      %s34 = sadd.s32 %s33, 1
      %s35 = scalar_select %p32, %s33, %s34
      %p38 = pneg %p32
      %p39 = scmp.eq.s32.totalorder %s23, 1
      %p40 = por %p38, %p39
      %p41 = scmp.ne.s32.totalorder %s33, %s36
      %p42 = scmp.eq.s32.totalorder %s23, 0
      %p43 = por %p41, %p42
      %p44 = scmp.ne.s32.totalorder %s33, %s36
      %p45 = scmp.eq.s32.totalorder %s28, 1
      %p46 = por %p44, %p45
      %p47 = scmp.ne.s32.totalorder %s36, %s37
      %p48 = scmp.eq.s32.totalorder %s28, 0
      %p49 = por %p47, %p48
      %p50 = scmp.ne.s32.totalorder %s36, %s37
      %p51 = scmp.eq.s32.totalorder %s29, 1
      %p52 = por %p50, %p51
      %p54 = scmp.ne.s32.totalorder %s37, %s53
      %p55 = scmp.eq.s32.totalorder %s29, 0
      %p56 = por %p54, %p55
      %s57 = ssub.s32 %s23, %s30
      %p58 = scmp.eq.s32.totalorder %s57, 0
      %s60 = sadd.s32 %s59, 1
      %s61 = scalar_select %p58, %s59, %s60
      %p64 = pneg %p58
      %p65 = scmp.eq.s32.totalorder %s23, 1
      %p66 = por %p64, %p65
      %p67 = scmp.ne.s32.totalorder %s59, %s62
      %p68 = scmp.eq.s32.totalorder %s23, 0
      %p69 = por %p67, %p68
      %p70 = scmp.ne.s32.totalorder %s59, %s62
      %p71 = scmp.eq.s32.totalorder %s28, 1
      %p72 = por %p70, %p71
      %p73 = scmp.ne.s32.totalorder %s62, %s63
      %p74 = scmp.eq.s32.totalorder %s28, 0
      %p75 = por %p73, %p74
      %p76 = scmp.ne.s32.totalorder %s62, %s63
      %p77 = scmp.eq.s32.totalorder %s29, 1
      %p78 = por %p76, %p77
      %p80 = scmp.ne.s32.totalorder %s63, %s79
      %p81 = scmp.eq.s32.totalorder %s29, 0
      %p82 = por %p80, %p81
      %s83 = ssub.s32 %s23, %s30
      %p84 = scmp.eq.s32.totalorder %s83, 0
      %s86 = sadd.s32 %s85, 1
      %s87 = scalar_select %p84, %s85, %s86
      %p90 = pneg %p84
      %p91 = scmp.eq.s32.totalorder %s23, 1
      %p92 = por %p90, %p91
      %p93 = scmp.ne.s32.totalorder %s85, %s88
      %p94 = scmp.eq.s32.totalorder %s23, 0
      %p95 = por %p93, %p94
      %p96 = scmp.ne.s32.totalorder %s85, %s88
      %p97 = scmp.eq.s32.totalorder %s28, 1
      %p98 = por %p96, %p97
      %p99 = scmp.ne.s32.totalorder %s88, %s89
      %p100 = scmp.eq.s32.totalorder %s28, 0
      %p101 = por %p99, %p100
      %p102 = scmp.ne.s32.totalorder %s88, %s89
      %p103 = scmp.eq.s32.totalorder %s29, 1
      %p104 = por %p102, %p103
      %p106 = scmp.ne.s32.totalorder %s89, %s105
      %p107 = scmp.eq.s32.totalorder %s29, 0
      %p108 = por %p106, %p107
      %s110 = sadd.s32 %s109, 1
      %p113 = scmp.eq.s32.totalorder %s23, 1
      %p114 = scmp.ne.s32.totalorder %s109, %s111
      %p115 = scmp.eq.s32.totalorder %s23, 0
      %p116 = por %p114, %p115
      %p117 = scmp.ne.s32.totalorder %s109, %s111
      %p118 = scmp.eq.s32.totalorder %s28, 1
      %p119 = por %p117, %p118
      %p120 = scmp.ne.s32.totalorder %s111, %s112
      %p121 = scmp.eq.s32.totalorder %s28, 0
      %p122 = por %p120, %p121
      %p123 = scmp.ne.s32.totalorder %s111, %s112
      %p124 = scmp.eq.s32.totalorder %s29, 1
      %p125 = por %p123, %p124
      %p127 = scmp.ne.s32.totalorder %s112, %s126
      %p128 = scmp.eq.s32.totalorder %s29, 0
      %p129 = por %p127, %p128
      %s131 = sadd.s32 %s130, 1
      %p134 = scmp.eq.s32.totalorder %s23, 1
      %p135 = scmp.ne.s32.totalorder %s130, %s132
      %p136 = scmp.eq.s32.totalorder %s23, 0
      %p137 = por %p135, %p136
      %p138 = scmp.ne.s32.totalorder %s130, %s132
      %p139 = scmp.eq.s32.totalorder %s28, 1
      %p140 = por %p138, %p139
      %p141 = scmp.ne.s32.totalorder %s132, %s133
      %p142 = scmp.eq.s32.totalorder %s28, 0
      %p143 = por %p141, %p142
      %p144 = scmp.ne.s32.totalorder %s132, %s133
      %p145 = scmp.eq.s32.totalorder %s29, 1
      %p146 = por %p144, %p145
      %p148 = scmp.ne.s32.totalorder %s133, %s147
      %p149 = scmp.eq.s32.totalorder %s29, 0
      %p150 = por %p148, %p149
      %s152 = sadd.s32 %s151, 1
      %p155 = scmp.eq.s32.totalorder %s23, 1
      %p156 = scmp.ne.s32.totalorder %s151, %s153
      %p157 = scmp.eq.s32.totalorder %s23, 0
      %p158 = por %p156, %p157
      %p159 = scmp.ne.s32.totalorder %s151, %s153
      %p160 = scmp.eq.s32.totalorder %s28, 1
      %p161 = por %p159, %p160
      %p162 = scmp.ne.s32.totalorder %s153, %s154
      %p163 = scmp.eq.s32.totalorder %s28, 0
      %p164 = por %p162, %p163
      %p165 = scmp.ne.s32.totalorder %s153, %s154
      %p166 = scmp.eq.s32.totalorder %s29, 1
      %p167 = por %p165, %p166
      %p169 = scmp.ne.s32.totalorder %s154, %s168
      %p170 = scmp.eq.s32.totalorder %s29, 0
      %p171 = por %p169, %p170
      %s173 = sadd.s32 %s172, 1
      %p176 = scmp.eq.s32.totalorder %s23, 1
      %p177 = scmp.ne.s32.totalorder %s172, %s174
      %p178 = scmp.eq.s32.totalorder %s23, 0
      %p179 = por %p177, %p178
      %p180 = scmp.ne.s32.totalorder %s172, %s174
      %p181 = scmp.eq.s32.totalorder %s28, 1
      %p182 = por %p180, %p181
      %p183 = scmp.ne.s32.totalorder %s174, %s175
      %p184 = scmp.eq.s32.totalorder %s28, 0
      %p185 = por %p183, %p184
      %p186 = scmp.ne.s32.totalorder %s174, %s175
      %p187 = scmp.eq.s32.totalorder %s29, 1
      %p188 = por %p186, %p187
      %p190 = scmp.ne.s32.totalorder %s175, %s189
      %p191 = scmp.eq.s32.totalorder %s29, 0
      %p192 = por %p190, %p191
      %s193 = ssub.s32 %s23, %s30
      %p194 = scmp.eq.s32.totalorder %s193, 0
      %s196 = sadd.s32 %s195, 1
      %s197 = scalar_select %p194, %s195, %s196
      %p200 = pneg %p194
      %p201 = scmp.eq.s32.totalorder %s23, 1
      %p202 = por %p200, %p201
      %p203 = scmp.ne.s32.totalorder %s195, %s198
      %p204 = scmp.eq.s32.totalorder %s23, 0
      %p205 = por %p203, %p204
      %p206 = scmp.ne.s32.totalorder %s195, %s198
      %p207 = scmp.eq.s32.totalorder %s28, 1
      %p208 = por %p206, %p207
      %p209 = scmp.ne.s32.totalorder %s198, %s199
      %p210 = scmp.eq.s32.totalorder %s28, 0
      %p211 = por %p209, %p210
      %p212 = scmp.ne.s32.totalorder %s198, %s199
      %p213 = scmp.eq.s32.totalorder %s29, 1
      %p214 = por %p212, %p213
      %p216 = scmp.ne.s32.totalorder %s199, %s215
      %p217 = scmp.eq.s32.totalorder %s29, 0
      %p218 = por %p216, %p217
      %p219 = scmp.le.s32.totalorder 1, %s23
      %p220 = scmp.lt.s32.totalorder %s23, 3
      %p221 = pnand %p219, %p220
      %p222 = pneg %p221
      // Predicated region
      $region9: #{tpu_custom_call.1} parent=5 // pred_check
        _
      $region10: #{tpu_custom_call.1} parent=5 // pred_check_branch
        %224 = sbr.rel (%p221) target = $region12
      $region11: #{tpu_custom_call.1} parent=5 // pred_region
        %s225 = ssub.s32 %s23, 1
        // Predicated region
        $region13: #{tpu_custom_call.1} parent=11 // pred_check
          %p226 = pneg %p122
        $region14: #{tpu_custom_call.1} parent=11 // pred_check_branch
          %228 = sbr.rel (%p226) target = $region16
        $region15: #{tpu_custom_call.1} parent=11 // pred_region
          %230 = vsyncadd [#allocation9], 0
          %s231 = sshll.u32 %s3, 4
          %s232 = int_to_ptr.hbm [resolvable:$true] %s231
          %s233 = sshll.u32 [#allocation8], 4
          %s234 = int_to_ptr.vmem [resolvable:$true] %s233
          %239 = dma.hbm_to_vmem [thread:$0]  %s232, 256, %s234, [#allocation9], 128, 128, 8
        $region16: #{tpu_custom_call.1} parent=11 // pred_fallthru
          _
        // Predicated region
        $region17: #{tpu_custom_call.1} parent=11 // pred_check
          %p240 = pneg %p143
        $region18: #{tpu_custom_call.1} parent=11 // pred_check_branch
          %242 = sbr.rel (%p240) target = $region20
        $region19: #{tpu_custom_call.1} parent=11 // pred_region
          %244 = vsyncadd [#allocation9], 0
          %s245 = sshll.u32 %s4, 4
          %s246 = int_to_ptr.hbm [resolvable:$true] %s245
          %s247 = sshll.u32 [#allocation10], 4
          %s248 = int_to_ptr.vmem [resolvable:$true] %s247
          %253 = dma.hbm_to_vmem [thread:$0]  %s246, 256, %s248, [#allocation9], 128, 128, 8
        $region20: #{tpu_custom_call.1} parent=11 // pred_fallthru
          _
        // Predicated region
        $region21: #{tpu_custom_call.1} parent=11 // pred_check
          %p254 = pneg %p164
        $region22: #{tpu_custom_call.1} parent=11 // pred_check_branch
          %256 = sbr.rel (%p254) target = $region24
        $region23: #{tpu_custom_call.1} parent=11 // pred_region
          _
        $region24: #{tpu_custom_call.1} parent=11 // pred_fallthru
          _
        // Predicated region
        $region25: #{tpu_custom_call.1} parent=11 // pred_check
          %p257 = pneg %p185
        $region26: #{tpu_custom_call.1} parent=11 // pred_check_branch
          %259 = sbr.rel (%p257) target = $region28
        $region27: #{tpu_custom_call.1} parent=11 // pred_region
          _
        $region28: #{tpu_custom_call.1} parent=11 // pred_fallthru
          _
      $region12: #{tpu_custom_call.1} parent=5 // pred_fallthru
        _
      %p260 = scmp.lt.s32.totalorder %s23, 2
      // Predicated region
      $region29: #{tpu_custom_call.1} parent=5 // pred_check
        %p261 = pneg %p260
      $region30: #{tpu_custom_call.1} parent=5 // pred_check_branch
        %263 = sbr.rel (%p261) target = $region32
      $region31: #{tpu_custom_call.1} parent=5 // pred_region
        // Predicated region
        $region33: #{tpu_custom_call.1} parent=31 // pred_check
          %p264 = pneg %p43
        $region34: #{tpu_custom_call.1} parent=31 // pred_check_branch
          %266 = sbr.rel (%p264) target = $region36
        $region35: #{tpu_custom_call.1} parent=31 // pred_region
          %s267 = sand.u32 %s33, 1
          %s268 = scalar_lea.sflag [#allocation3], %s267
          %s269 = sand.u32 %s33, 1
          %s270 = smul.addr %s269, 16
          %s271 = scalar_lea.vmem [#allocation2], %s270
          %273 = vsyncadd %s268, 0
          %s274 = smul.addr %s23, 2
          %s275 = smul.addr %s274, 8
          %s276 = scalar_lea.hbm %s0, %s275
          %s277 = sshll.u32 %s276, 4
          %s278 = int_to_ptr.hbm [resolvable:$true] %s277
          %s279 = sshll.u32 %s271, 4
          %s280 = int_to_ptr.vmem [resolvable:$true] %s279
          %285 = dma.hbm_to_vmem [thread:$0]  %s278, 256, %s280, %s268, 128, 128, 8
        $region36: #{tpu_custom_call.1} parent=31 // pred_fallthru
          _
        // Predicated region
        $region37: #{tpu_custom_call.1} parent=31 // pred_check
          %p286 = pneg %p69
        $region38: #{tpu_custom_call.1} parent=31 // pred_check_branch
          %288 = sbr.rel (%p286) target = $region40
        $region39: #{tpu_custom_call.1} parent=31 // pred_region
          %s289 = sand.u32 %s23, 1
          %s290 = scalar_lea.sflag [#allocation6], %s289
          %s291 = sand.u32 %s59, 1
          %s292 = smul.addr %s291, 16
          %s293 = scalar_lea.vmem [#allocation5], %s292
          %295 = vsyncadd %s290, 0
          %s296 = smul.addr %s23, 2
          %s297 = smul.addr %s296, 8
          %s298 = scalar_lea.hbm %s1, %s297
          %s299 = sshll.u32 %s298, 4
          %s300 = int_to_ptr.hbm [resolvable:$true] %s299
          %s301 = sshll.u32 %s293, 4
          %s302 = int_to_ptr.vmem [resolvable:$true] %s301
          %307 = dma.hbm_to_vmem [thread:$0]  %s300, 256, %s302, %s290, 128, 128, 8
        $region40: #{tpu_custom_call.1} parent=31 // pred_fallthru
          _
        // Predicated region
        $region41: #{tpu_custom_call.1} parent=31 // pred_check
          %p308 = pneg %p95
        $region42: #{tpu_custom_call.1} parent=31 // pred_check_branch
          %310 = sbr.rel (%p308) target = $region44
        $region43: #{tpu_custom_call.1} parent=31 // pred_region
          %s311 = sand.u32 %s23, 1
          %s312 = scalar_lea.sflag [#allocation6], %s311
          %s313 = sand.u32 %s85, 1
          %s314 = smul.addr %s313, 8
          %s315 = scalar_lea.vmem [#allocation7], %s314
          %317 = vsyncadd %s312, 0
          %s318 = smul.addr %s23, 8
          %s319 = scalar_lea.hbm %s2, %s318
          %s321 = sshll.u32 %s319, 4
          %s322 = int_to_ptr.hbm [resolvable:$true] %s321
          %s323 = sshll.u32 %s315, 4
          %s324 = int_to_ptr.vmem [resolvable:$true] %s323
          %326 = dma.hbm_to_vmem [thread:$0]  %s322, 128, %s324, %s312
        $region44: #{tpu_custom_call.1} parent=31 // pred_fallthru
          _
      $region32: #{tpu_custom_call.1} parent=5 // pred_fallthru
        _
      %p327 = scmp.le.s32.totalorder 1, %s23
      %p328 = scmp.lt.s32.totalorder %s23, 3
      %p329 = pnand %p327, %p328
      %p330 = pneg %p329
      // Predicated region
      $region45: #{tpu_custom_call.1} parent=5 // pred_check
        _
      $region46: #{tpu_custom_call.1} parent=5 // pred_check_branch
        %332 = sbr.rel (%p329) target = $region48
      $region47: #{tpu_custom_call.1} parent=5 // pred_region
        %s333 = ssub.s32 %s23, 1
        %s334 = sand.u32 %s36, 1
        %s335 = scalar_lea.sflag [#allocation3], %s334
        %s336 = sand.u32 %s36, 1
        %s337 = smul.addr %s336, 16
        %s338 = scalar_lea.vmem [#allocation2], %s337
        // Predicated region
        $region49: #{tpu_custom_call.1} parent=47 // pred_check
          %p339 = pneg %p49
        $region50: #{tpu_custom_call.1} parent=47 // pred_check_branch
          %341 = sbr.rel (%p339) target = $region52
        $region51: #{tpu_custom_call.1} parent=47 // pred_region
          %343 = dma.done %s335, 256
        $region52: #{tpu_custom_call.1} parent=47 // pred_fallthru
          _
        %s344 = sand.u32 %s28, 1
        %s345 = scalar_lea.sflag [#allocation6], %s344
        %s346 = sand.u32 %s62, 1
        %s347 = smul.addr %s346, 16
        %s348 = scalar_lea.vmem [#allocation5], %s347
        // Predicated region
        $region53: #{tpu_custom_call.1} parent=47 // pred_check
          %p349 = pneg %p75
        $region54: #{tpu_custom_call.1} parent=47 // pred_check_branch
          %351 = sbr.rel (%p349) target = $region56
        $region55: #{tpu_custom_call.1} parent=47 // pred_region
          %353 = dma.done %s345, 256
        $region56: #{tpu_custom_call.1} parent=47 // pred_fallthru
          _
        %s354 = sand.u32 %s28, 1
        %s355 = scalar_lea.sflag [#allocation6], %s354
        %s356 = sand.u32 %s88, 1
        %s357 = smul.addr %s356, 8
        %s358 = scalar_lea.vmem [#allocation7], %s357
        // Predicated region
        $region57: #{tpu_custom_call.1} parent=47 // pred_check
          %p359 = pneg %p101
        $region58: #{tpu_custom_call.1} parent=47 // pred_check_branch
          %361 = sbr.rel (%p359) target = $region60
        $region59: #{tpu_custom_call.1} parent=47 // pred_region
          %363 = dma.done %s355, 128
        $region60: #{tpu_custom_call.1} parent=47 // pred_fallthru
          _
        // Predicated region
        $region61: #{tpu_custom_call.1} parent=47 // pred_check
          %p364 = pneg %p122
        $region62: #{tpu_custom_call.1} parent=47 // pred_check_branch
          %366 = sbr.rel (%p364) target = $region64
        $region63: #{tpu_custom_call.1} parent=47 // pred_region
          %368 = dma.done [#allocation9], 256
        $region64: #{tpu_custom_call.1} parent=47 // pred_fallthru
          _
        // Predicated region
        $region65: #{tpu_custom_call.1} parent=47 // pred_check
          %p369 = pneg %p143
        $region66: #{tpu_custom_call.1} parent=47 // pred_check_branch
          %371 = sbr.rel (%p369) target = $region68
        $region67: #{tpu_custom_call.1} parent=47 // pred_region
          %373 = dma.done [#allocation9], 256
        $region68: #{tpu_custom_call.1} parent=47 // pred_fallthru
          _
        %s374 = sand.u32 %s36, 1
        %s375 = scalar_lea.sflag [#allocation3], %s374
        %s376 = sand.u32 %s36, 1
        %s377 = smul.addr %s376, 16
        %s378 = scalar_lea.vmem [#allocation2], %s377
        %p379 = pneg %p49
        %p380 = pneg %p46
        %s381 = sand.u32 %s28, 1
        %s382 = scalar_lea.sflag [#allocation6], %s381
        %s383 = sand.u32 %s62, 1
        %s384 = smul.addr %s383, 16
        %s385 = scalar_lea.vmem [#allocation5], %s384
        %p386 = pneg %p75
        %p387 = pneg %p72
        %s388 = sand.u32 %s28, 1
        %s389 = scalar_lea.sflag [#allocation6], %s388
        %s390 = sand.u32 %s88, 1
        %s391 = smul.addr %s390, 8
        %s392 = scalar_lea.vmem [#allocation7], %s391
        %p393 = pneg %p101
        %p394 = pneg %p98
        %p395 = pneg %p122
        %p396 = pneg %p119
        %p397 = pneg %p143
        %p398 = pneg %p140
        %p399 = pneg %p164
        %p400 = pneg %p161
        %p401 = pneg %p185
        %p402 = pneg %p182
        %p403 = pneg %p211
        %p404 = pneg %p208
        %s405 = sand.u32 %s198, 1
        %s406 = scalar_lea.sflag [#allocation4], %s405
        %s407 = sand.u32 %s198, 1
        %s408 = smul.addr %s407, 8
        %s409 = scalar_lea.vmem [#allocation11], %s408
        %v411 = vld [vmem:[#allocation8] sm:$0xff]
        %v412 = vld [vmem:[#allocation8 + $0x8] sm:$0xff]
        %v413 = vld [vmem:[#allocation10] sm:$0xff]
        %v414 = vld [vmem:[#allocation10 + $0x8] sm:$0xff]
        %v415 = vld [vmem:[%s5] sm:$0xf]
        %v416 = vld [vmem:[%s5 + $0x4] sm:$0xf]
        %v417 = vld [vmem:[%s6] sm:$0xf]
        %v418 = vld [vmem:[%s338] sm:$0xff]
        %v419 = vld [vmem:[%s338 + $0x8] sm:$0xff]
        %vm420 = vcmask 130048
        %v421 = vsel %vm420, %v418, 0.0
        %v422 = vsel %vm420, %v419, 0.0
        %v423 = vadd.f32 %v421, %v422
        %424 = vadd.xlane.f32.xlu0 %v423
        %v425 = vpop.xlane.xlu0 %424
        %v426 = vrot.slane %v425, 4
        %v427 = vadd.f32 %v425, %v426
        %v428 = vrot.slane %v427, 2
        %v429 = vadd.f32 %v427, %v428
        %v430 = vrot.slane %v429, 1
        %v431 = vadd.f32 %v429, %v430
        %s432 = vtos %v431
        %v433 = vmul.f32 %v418, %v418
        %v434 = vmul.f32 %v419, %v419
        %v435 = vsel %vm420, %v433, 0.0
        %v436 = vsel %vm420, %v434, 0.0
        %v437 = vadd.f32 %v435, %v436
        %438 = vadd.xlane.f32.xlu0 %v437
        %v439 = vpop.xlane.xlu0 %438
        %v440 = vrot.slane %v439, 4
        %v441 = vadd.f32 %v439, %v440
        %v442 = vrot.slane %v441, 2
        %v443 = vadd.f32 %v441, %v442
        %v444 = vrot.slane %v443, 1
        %v445 = vadd.f32 %v443, %v444
        %s446 = vtos %v445
        %s447 = sadd.f32 %s432, 0.0
        %v449 = vsel %vm420, %v411, 0
        %v452 = vsel %vm420, %v412, 0
        %454 = vmatpush.msra.mxu0 0.0
        %455 = vmatpush.msra.mxu0 0.0
        %456 = vmatpush.msra.mxu0 0.0
        %457 = vmatpush.msra.mxu0 0.0
        %458 = vmatpush.msra.mxu0 0.0
        %459 = vmatpush.msra.mxu0 0.0
        %460 = vmatpush.msra.mxu0 0.0
        %461 = vmatpush.msra.mxu0 0.0
        %462 = vmatpush.msra.mxu0 0.0
        %463 = vmatpush.msra.mxu0 0.0
        %464 = vmatpush.msra.mxu0 0.0
        %465 = vmatpush.msra.mxu0 0.0
        %466 = vmatpush.msra.mxu0 0.0
        %467 = vmatpush.msra.mxu0 0.0
        %v468 = vand.u32 %v419, 4294901760
        %469 = vmatpush.msra.mxu0 %v468
        %v470 = vand.u32 %v418, 4294901760
        %471 = vmatpush.msra.mxu0 %v470
        %v472 = vand.u32 %v449, 4294901760
        %v473 = vsub.f32 %v449, %v472
        %v474 = vand.u32 %v473, 4294901760
        %v475 = vsub.f32 %v473, %v474
        %v476 = vand.u32 %v475, 4294901760
        %477 = vmatmul.f32.gmra.mxu0 %v476
        %v478 = vpop.f32.mrf.mxu0
        %v479 = vadd.f32 0.0, %v478
        %v480 = vand.u32 %v452, 4294901760
        %v481 = vsub.f32 %v452, %v480
        %v482 = vand.u32 %v481, 4294901760
        %v483 = vsub.f32 %v481, %v482
        %v484 = vand.u32 %v483, 4294901760
        %485 = vmatmul.f32.gmra.mxu0 %v484
        %v486 = vpop.f32.mrf.mxu0
        %v487 = vadd.f32 0.0, %v486
        %488 = vdwg.mxu0
        %489 = vmatpush.msra.mxu0 0.0
        %490 = vmatpush.msra.mxu0 0.0
        %491 = vmatpush.msra.mxu0 0.0
        %492 = vmatpush.msra.mxu0 0.0
        %493 = vmatpush.msra.mxu0 0.0
        %494 = vmatpush.msra.mxu0 0.0
        %495 = vmatpush.msra.mxu0 0.0
        %496 = vmatpush.msra.mxu0 0.0
        %497 = vmatpush.msra.mxu0 0.0
        %498 = vmatpush.msra.mxu0 0.0
        %499 = vmatpush.msra.mxu0 0.0
        %500 = vmatpush.msra.mxu0 0.0
        %501 = vmatpush.msra.mxu0 0.0
        %502 = vmatpush.msra.mxu0 0.0
        %v503 = vand.u32 %v419, 4294901760
        %v504 = vsub.f32 %v419, %v503
        %v505 = vand.u32 %v504, 4294901760
        %v506 = vsub.f32 %v504, %v505
        %v507 = vand.u32 %v506, 4294901760
        %508 = vmatpush.msra.mxu0 %v507
        %v509 = vand.u32 %v418, 4294901760
        %v510 = vsub.f32 %v418, %v509
        %v511 = vand.u32 %v510, 4294901760
        %v512 = vsub.f32 %v510, %v511
        %v513 = vand.u32 %v512, 4294901760
        %514 = vmatpush.msra.mxu0 %v513
        %v515 = vand.u32 %v449, 4294901760
        %516 = vmatmul.f32.gmra.mxu0 %v515
        %v517 = vpop.f32.mrf.mxu0
        %v518 = vadd.f32 %v479, %v517
        %v519 = vand.u32 %v452, 4294901760
        %520 = vmatmul.f32.gmra.mxu0 %v519
        %v521 = vpop.f32.mrf.mxu0
        %v522 = vadd.f32 %v487, %v521
        %523 = vdwg.mxu0
        %524 = vmatpush.msra.mxu0 0.0
        %525 = vmatpush.msra.mxu0 0.0
        %526 = vmatpush.msra.mxu0 0.0
        %527 = vmatpush.msra.mxu0 0.0
        %528 = vmatpush.msra.mxu0 0.0
        %529 = vmatpush.msra.mxu0 0.0
        %530 = vmatpush.msra.mxu0 0.0
        %531 = vmatpush.msra.mxu0 0.0
        %532 = vmatpush.msra.mxu0 0.0
        %533 = vmatpush.msra.mxu0 0.0
        %534 = vmatpush.msra.mxu0 0.0
        %535 = vmatpush.msra.mxu0 0.0
        %536 = vmatpush.msra.mxu0 0.0
        %537 = vmatpush.msra.mxu0 0.0
        %v538 = vand.u32 %v419, 4294901760
        %v539 = vsub.f32 %v419, %v538
        %540 = vmatpush.msra.mxu0 %v539
        %v541 = vand.u32 %v418, 4294901760
        %v542 = vsub.f32 %v418, %v541
        %543 = vmatpush.msra.mxu0 %v542
        %v544 = vand.u32 %v449, 4294901760
        %v545 = vsub.f32 %v449, %v544
        %546 = vmatmul.f32.gmra.mxu0 %v545
        %v547 = vpop.f32.mrf.mxu0
        %v548 = vadd.f32 %v518, %v547
        %v549 = vand.u32 %v452, 4294901760
        %v550 = vsub.f32 %v452, %v549
        %551 = vmatmul.f32.gmra.mxu0 %v550
        %v552 = vpop.f32.mrf.mxu0
        %v553 = vadd.f32 %v522, %v552
        %554 = vdwg.mxu0
        %555 = vmatpush.msra.mxu0 0.0
        %556 = vmatpush.msra.mxu0 0.0
        %557 = vmatpush.msra.mxu0 0.0
        %558 = vmatpush.msra.mxu0 0.0
        %559 = vmatpush.msra.mxu0 0.0
        %560 = vmatpush.msra.mxu0 0.0
        %561 = vmatpush.msra.mxu0 0.0
        %562 = vmatpush.msra.mxu0 0.0
        %563 = vmatpush.msra.mxu0 0.0
        %564 = vmatpush.msra.mxu0 0.0
        %565 = vmatpush.msra.mxu0 0.0
        %566 = vmatpush.msra.mxu0 0.0
        %567 = vmatpush.msra.mxu0 0.0
        %568 = vmatpush.msra.mxu0 0.0
        %v569 = vand.u32 %v419, 4294901760
        %570 = vmatpush.msra.mxu0 %v569
        %v571 = vand.u32 %v418, 4294901760
        %572 = vmatpush.msra.mxu0 %v571
        %v573 = vand.u32 %v449, 4294901760
        %v574 = vsub.f32 %v449, %v573
        %v575 = vand.u32 %v574, 4294901760
        %576 = vmatmul.f32.gmra.mxu0 %v575
        %v577 = vpop.f32.mrf.mxu0
        %v578 = vadd.f32 %v548, %v577
        %v579 = vand.u32 %v452, 4294901760
        %v580 = vsub.f32 %v452, %v579
        %v581 = vand.u32 %v580, 4294901760
        %582 = vmatmul.f32.gmra.mxu0 %v581
        %v583 = vpop.f32.mrf.mxu0
        %v584 = vadd.f32 %v553, %v583
        %585 = vdwg.mxu0
        %586 = vmatpush.msra.mxu0 0.0
        %587 = vmatpush.msra.mxu0 0.0
        %588 = vmatpush.msra.mxu0 0.0
        %589 = vmatpush.msra.mxu0 0.0
        %590 = vmatpush.msra.mxu0 0.0
        %591 = vmatpush.msra.mxu0 0.0
        %592 = vmatpush.msra.mxu0 0.0
        %593 = vmatpush.msra.mxu0 0.0
        %594 = vmatpush.msra.mxu0 0.0
        %595 = vmatpush.msra.mxu0 0.0
        %596 = vmatpush.msra.mxu0 0.0
        %597 = vmatpush.msra.mxu0 0.0
        %598 = vmatpush.msra.mxu0 0.0
        %599 = vmatpush.msra.mxu0 0.0
        %v600 = vand.u32 %v419, 4294901760
        %v601 = vsub.f32 %v419, %v600
        %v602 = vand.u32 %v601, 4294901760
        %603 = vmatpush.msra.mxu0 %v602
        %v604 = vand.u32 %v418, 4294901760
        %v605 = vsub.f32 %v418, %v604
        %v606 = vand.u32 %v605, 4294901760
        %607 = vmatpush.msra.mxu0 %v606
        %v608 = vand.u32 %v449, 4294901760
        %609 = vmatmul.f32.gmra.mxu0 %v608
        %v610 = vpop.f32.mrf.mxu0
        %v611 = vadd.f32 %v578, %v610
        %v612 = vand.u32 %v452, 4294901760
        %613 = vmatmul.f32.gmra.mxu0 %v612
        %v614 = vpop.f32.mrf.mxu0
        %v615 = vadd.f32 %v584, %v614
        %616 = vdwg.mxu0
        %617 = vmatpush.msra.mxu0 0.0
        %618 = vmatpush.msra.mxu0 0.0
        %619 = vmatpush.msra.mxu0 0.0
        %620 = vmatpush.msra.mxu0 0.0
        %621 = vmatpush.msra.mxu0 0.0
        %622 = vmatpush.msra.mxu0 0.0
        %623 = vmatpush.msra.mxu0 0.0
        %624 = vmatpush.msra.mxu0 0.0
        %625 = vmatpush.msra.mxu0 0.0
        %626 = vmatpush.msra.mxu0 0.0
        %627 = vmatpush.msra.mxu0 0.0
        %628 = vmatpush.msra.mxu0 0.0
        %629 = vmatpush.msra.mxu0 0.0
        %630 = vmatpush.msra.mxu0 0.0
        %v631 = vand.u32 %v419, 4294901760
        %632 = vmatpush.msra.mxu0 %v631
        %v633 = vand.u32 %v418, 4294901760
        %634 = vmatpush.msra.mxu0 %v633
        %v635 = vand.u32 %v449, 4294901760
        %636 = vmatmul.f32.gmra.mxu0 %v635
        %v637 = vpop.f32.mrf.mxu0
        %v638 = vadd.f32 %v611, %v637
        %v639 = vand.u32 %v452, 4294901760
        %640 = vmatmul.f32.gmra.mxu0 %v639
        %v641 = vpop.f32.mrf.mxu0
        %v642 = vadd.f32 %v615, %v641
        %643 = vdwg.mxu0
        %v645 = vsel %vm420, %v638, 0
        %v648 = vsel %vm420, %v642, 0
        %650 = vmatpush.msra.mxu0 0.0
        %651 = vmatpush.msra.mxu0 0.0
        %652 = vmatpush.msra.mxu0 0.0
        %653 = vmatpush.msra.mxu0 0.0
        %654 = vmatpush.msra.mxu0 0.0
        %655 = vmatpush.msra.mxu0 0.0
        %656 = vmatpush.msra.mxu0 0.0
        %657 = vmatpush.msra.mxu0 0.0
        %658 = vmatpush.msra.mxu0 0.0
        %659 = vmatpush.msra.mxu0 0.0
        %660 = vmatpush.msra.mxu0 0.0
        %661 = vmatpush.msra.mxu0 0.0
        %662 = vmatpush.msra.mxu0 0.0
        %663 = vmatpush.msra.mxu0 0.0
        %v664 = vand.u32 %v414, 4294901760
        %665 = vmatpush.msra.mxu0 %v664
        %v666 = vand.u32 %v413, 4294901760
        %667 = vmatpush.msra.mxu0 %v666
        %v668 = vand.u32 %v645, 4294901760
        %v669 = vsub.f32 %v645, %v668
        %v670 = vand.u32 %v669, 4294901760
        %v671 = vsub.f32 %v669, %v670
        %v672 = vand.u32 %v671, 4294901760
        %673 = vmatmul.f32.gmra.mxu0 %v672
        %v674 = vpop.f32.mrf.mxu0
        %v675 = vadd.f32 0.0, %v674
        %v676 = vand.u32 %v648, 4294901760
        %v677 = vsub.f32 %v648, %v676
        %v678 = vand.u32 %v677, 4294901760
        %v679 = vsub.f32 %v677, %v678
        %v680 = vand.u32 %v679, 4294901760
        %681 = vmatmul.f32.gmra.mxu0 %v680
        %v682 = vpop.f32.mrf.mxu0
        %v683 = vadd.f32 0.0, %v682
        %684 = vdwg.mxu0
        %685 = vmatpush.msra.mxu0 0.0
        %686 = vmatpush.msra.mxu0 0.0
        %687 = vmatpush.msra.mxu0 0.0
        %688 = vmatpush.msra.mxu0 0.0
        %689 = vmatpush.msra.mxu0 0.0
        %690 = vmatpush.msra.mxu0 0.0
        %691 = vmatpush.msra.mxu0 0.0
        %692 = vmatpush.msra.mxu0 0.0
        %693 = vmatpush.msra.mxu0 0.0
        %694 = vmatpush.msra.mxu0 0.0
        %695 = vmatpush.msra.mxu0 0.0
        %696 = vmatpush.msra.mxu0 0.0
        %697 = vmatpush.msra.mxu0 0.0
        %698 = vmatpush.msra.mxu0 0.0
        %v699 = vand.u32 %v414, 4294901760
        %v700 = vsub.f32 %v414, %v699
        %v701 = vand.u32 %v700, 4294901760
        %v702 = vsub.f32 %v700, %v701
        %v703 = vand.u32 %v702, 4294901760
        %704 = vmatpush.msra.mxu0 %v703
        %v705 = vand.u32 %v413, 4294901760
        %v706 = vsub.f32 %v413, %v705
        %v707 = vand.u32 %v706, 4294901760
        %v708 = vsub.f32 %v706, %v707
        %v709 = vand.u32 %v708, 4294901760
        %710 = vmatpush.msra.mxu0 %v709
        %v711 = vand.u32 %v645, 4294901760
        %712 = vmatmul.f32.gmra.mxu0 %v711
        %v713 = vpop.f32.mrf.mxu0
        %v714 = vadd.f32 %v675, %v713
        %v715 = vand.u32 %v648, 4294901760
        %716 = vmatmul.f32.gmra.mxu0 %v715
        %v717 = vpop.f32.mrf.mxu0
        %v718 = vadd.f32 %v683, %v717
        %719 = vdwg.mxu0
        %720 = vmatpush.msra.mxu0 0.0
        %721 = vmatpush.msra.mxu0 0.0
        %722 = vmatpush.msra.mxu0 0.0
        %723 = vmatpush.msra.mxu0 0.0
        %724 = vmatpush.msra.mxu0 0.0
        %725 = vmatpush.msra.mxu0 0.0
        %726 = vmatpush.msra.mxu0 0.0
        %727 = vmatpush.msra.mxu0 0.0
        %728 = vmatpush.msra.mxu0 0.0
        %729 = vmatpush.msra.mxu0 0.0
        %730 = vmatpush.msra.mxu0 0.0
        %731 = vmatpush.msra.mxu0 0.0
        %732 = vmatpush.msra.mxu0 0.0
        %733 = vmatpush.msra.mxu0 0.0
        %v734 = vand.u32 %v414, 4294901760
        %v735 = vsub.f32 %v414, %v734
        %736 = vmatpush.msra.mxu0 %v735
        %v737 = vand.u32 %v413, 4294901760
        %v738 = vsub.f32 %v413, %v737
        %739 = vmatpush.msra.mxu0 %v738
        %v740 = vand.u32 %v645, 4294901760
        %v741 = vsub.f32 %v645, %v740
        %742 = vmatmul.f32.gmra.mxu0 %v741
        %v743 = vpop.f32.mrf.mxu0
        %v744 = vadd.f32 %v714, %v743
        %v745 = vand.u32 %v648, 4294901760
        %v746 = vsub.f32 %v648, %v745
        %747 = vmatmul.f32.gmra.mxu0 %v746
        %v748 = vpop.f32.mrf.mxu0
        %v749 = vadd.f32 %v718, %v748
        %750 = vdwg.mxu0
        %751 = vmatpush.msra.mxu0 0.0
        %752 = vmatpush.msra.mxu0 0.0
        %753 = vmatpush.msra.mxu0 0.0
        %754 = vmatpush.msra.mxu0 0.0
        %755 = vmatpush.msra.mxu0 0.0
        %756 = vmatpush.msra.mxu0 0.0
        %757 = vmatpush.msra.mxu0 0.0
        %758 = vmatpush.msra.mxu0 0.0
        %759 = vmatpush.msra.mxu0 0.0
        %760 = vmatpush.msra.mxu0 0.0
        %761 = vmatpush.msra.mxu0 0.0
        %762 = vmatpush.msra.mxu0 0.0
        %763 = vmatpush.msra.mxu0 0.0
        %764 = vmatpush.msra.mxu0 0.0
        %v765 = vand.u32 %v414, 4294901760
        %766 = vmatpush.msra.mxu0 %v765
        %v767 = vand.u32 %v413, 4294901760
        %768 = vmatpush.msra.mxu0 %v767
        %v769 = vand.u32 %v645, 4294901760
        %v770 = vsub.f32 %v645, %v769
        %v771 = vand.u32 %v770, 4294901760
        %772 = vmatmul.f32.gmra.mxu0 %v771
        %v773 = vpop.f32.mrf.mxu0
        %v774 = vadd.f32 %v744, %v773
        %v775 = vand.u32 %v648, 4294901760
        %v776 = vsub.f32 %v648, %v775
        %v777 = vand.u32 %v776, 4294901760
        %778 = vmatmul.f32.gmra.mxu0 %v777
        %v779 = vpop.f32.mrf.mxu0
        %v780 = vadd.f32 %v749, %v779
        %781 = vdwg.mxu0
        %782 = vmatpush.msra.mxu0 0.0
        %783 = vmatpush.msra.mxu0 0.0
        %784 = vmatpush.msra.mxu0 0.0
        %785 = vmatpush.msra.mxu0 0.0
        %786 = vmatpush.msra.mxu0 0.0
        %787 = vmatpush.msra.mxu0 0.0
        %788 = vmatpush.msra.mxu0 0.0
        %789 = vmatpush.msra.mxu0 0.0
        %790 = vmatpush.msra.mxu0 0.0
        %791 = vmatpush.msra.mxu0 0.0
        %792 = vmatpush.msra.mxu0 0.0
        %793 = vmatpush.msra.mxu0 0.0
        %794 = vmatpush.msra.mxu0 0.0
        %795 = vmatpush.msra.mxu0 0.0
        %v796 = vand.u32 %v414, 4294901760
        %v797 = vsub.f32 %v414, %v796
        %v798 = vand.u32 %v797, 4294901760
        %799 = vmatpush.msra.mxu0 %v798
        %v800 = vand.u32 %v413, 4294901760
        %v801 = vsub.f32 %v413, %v800
        %v802 = vand.u32 %v801, 4294901760
        %803 = vmatpush.msra.mxu0 %v802
        %v804 = vand.u32 %v645, 4294901760
        %805 = vmatmul.f32.gmra.mxu0 %v804
        %v806 = vpop.f32.mrf.mxu0
        %v807 = vadd.f32 %v774, %v806
        %v808 = vand.u32 %v648, 4294901760
        %809 = vmatmul.f32.gmra.mxu0 %v808
        %v810 = vpop.f32.mrf.mxu0
        %v811 = vadd.f32 %v780, %v810
        %812 = vdwg.mxu0
        %813 = vmatpush.msra.mxu0 0.0
        %814 = vmatpush.msra.mxu0 0.0
        %815 = vmatpush.msra.mxu0 0.0
        %816 = vmatpush.msra.mxu0 0.0
        %817 = vmatpush.msra.mxu0 0.0
        %818 = vmatpush.msra.mxu0 0.0
        %819 = vmatpush.msra.mxu0 0.0
        %820 = vmatpush.msra.mxu0 0.0
        %821 = vmatpush.msra.mxu0 0.0
        %822 = vmatpush.msra.mxu0 0.0
        %823 = vmatpush.msra.mxu0 0.0
        %824 = vmatpush.msra.mxu0 0.0
        %825 = vmatpush.msra.mxu0 0.0
        %826 = vmatpush.msra.mxu0 0.0
        %v827 = vand.u32 %v414, 4294901760
        %828 = vmatpush.msra.mxu0 %v827
        %v829 = vand.u32 %v413, 4294901760
        %830 = vmatpush.msra.mxu0 %v829
        %v831 = vand.u32 %v645, 4294901760
        %832 = vmatmul.f32.gmra.mxu0 %v831
        %v833 = vpop.f32.mrf.mxu0
        %v834 = vadd.f32 %v807, %v833
        %v835 = vand.u32 %v648, 4294901760
        %836 = vmatmul.f32.gmra.mxu0 %v835
        %v837 = vpop.f32.mrf.mxu0
        %v838 = vadd.f32 %v811, %v837
        %839 = vdwg.mxu0
        %v840 = vmul.f32 %v834, %v834
        %v841 = vmul.f32 %v838, %v838
        %842 = vmatpush.msra.mxu0 0.0
        %843 = vmatpush.msra.mxu0 0.0
        %844 = vmatpush.msra.mxu0 0.0
        %845 = vmatpush.msra.mxu0 0.0
        %846 = vmatpush.msra.mxu0 0.0
        %847 = vmatpush.msra.mxu0 0.0
        %848 = vmatpush.msra.mxu0 0.0
        %849 = vmatpush.msra.mxu0 0.0
        %850 = vmatpush.msra.mxu0 0.0
        %851 = vmatpush.msra.mxu0 0.0
        %852 = vmatpush.msra.mxu0 0.0
        %853 = vmatpush.msra.mxu0 0.0
        %854 = vmatpush.msra.mxu0 0.0
        %855 = vmatpush.msra.mxu0 0.0
        %v856 = vand.u32 %v434, 4294901760
        %857 = vmatpush.msra.mxu0 %v856
        %v858 = vand.u32 %v433, 4294901760
        %859 = vmatpush.msra.mxu0 %v858
        %v860 = vand.u32 %v449, 4294901760
        %v861 = vsub.f32 %v449, %v860
        %v862 = vand.u32 %v861, 4294901760
        %v863 = vsub.f32 %v861, %v862
        %v864 = vand.u32 %v863, 4294901760
        %865 = vmatmul.f32.gmra.mxu0 %v864
        %v866 = vpop.f32.mrf.mxu0
        %v867 = vadd.f32 0.0, %v866
        %v868 = vand.u32 %v452, 4294901760
        %v869 = vsub.f32 %v452, %v868
        %v870 = vand.u32 %v869, 4294901760
        %v871 = vsub.f32 %v869, %v870
        %v872 = vand.u32 %v871, 4294901760
        %873 = vmatmul.f32.gmra.mxu0 %v872
        %v874 = vpop.f32.mrf.mxu0
        %v875 = vadd.f32 0.0, %v874
        %876 = vdwg.mxu0
        %877 = vmatpush.msra.mxu0 0.0
        %878 = vmatpush.msra.mxu0 0.0
        %879 = vmatpush.msra.mxu0 0.0
        %880 = vmatpush.msra.mxu0 0.0
        %881 = vmatpush.msra.mxu0 0.0
        %882 = vmatpush.msra.mxu0 0.0
        %883 = vmatpush.msra.mxu0 0.0
        %884 = vmatpush.msra.mxu0 0.0
        %885 = vmatpush.msra.mxu0 0.0
        %886 = vmatpush.msra.mxu0 0.0
        %887 = vmatpush.msra.mxu0 0.0
        %888 = vmatpush.msra.mxu0 0.0
        %889 = vmatpush.msra.mxu0 0.0
        %890 = vmatpush.msra.mxu0 0.0
        %v891 = vand.u32 %v434, 4294901760
        %v892 = vsub.f32 %v434, %v891
        %v893 = vand.u32 %v892, 4294901760
        %v894 = vsub.f32 %v892, %v893
        %v895 = vand.u32 %v894, 4294901760
        %896 = vmatpush.msra.mxu0 %v895
        %v897 = vand.u32 %v433, 4294901760
        %v898 = vsub.f32 %v433, %v897
        %v899 = vand.u32 %v898, 4294901760
        %v900 = vsub.f32 %v898, %v899
        %v901 = vand.u32 %v900, 4294901760
        %902 = vmatpush.msra.mxu0 %v901
        %v903 = vand.u32 %v449, 4294901760
        %904 = vmatmul.f32.gmra.mxu0 %v903
        %v905 = vpop.f32.mrf.mxu0
        %v906 = vadd.f32 %v867, %v905
        %v907 = vand.u32 %v452, 4294901760
        %908 = vmatmul.f32.gmra.mxu0 %v907
        %v909 = vpop.f32.mrf.mxu0
        %v910 = vadd.f32 %v875, %v909
        %911 = vdwg.mxu0
        %912 = vmatpush.msra.mxu0 0.0
        %913 = vmatpush.msra.mxu0 0.0
        %914 = vmatpush.msra.mxu0 0.0
        %915 = vmatpush.msra.mxu0 0.0
        %916 = vmatpush.msra.mxu0 0.0
        %917 = vmatpush.msra.mxu0 0.0
        %918 = vmatpush.msra.mxu0 0.0
        %919 = vmatpush.msra.mxu0 0.0
        %920 = vmatpush.msra.mxu0 0.0
        %921 = vmatpush.msra.mxu0 0.0
        %922 = vmatpush.msra.mxu0 0.0
        %923 = vmatpush.msra.mxu0 0.0
        %924 = vmatpush.msra.mxu0 0.0
        %925 = vmatpush.msra.mxu0 0.0
        %v926 = vand.u32 %v434, 4294901760
        %v927 = vsub.f32 %v434, %v926
        %928 = vmatpush.msra.mxu0 %v927
        %v929 = vand.u32 %v433, 4294901760
        %v930 = vsub.f32 %v433, %v929
        %931 = vmatpush.msra.mxu0 %v930
        %v932 = vand.u32 %v449, 4294901760
        %v933 = vsub.f32 %v449, %v932
        %934 = vmatmul.f32.gmra.mxu0 %v933
        %v935 = vpop.f32.mrf.mxu0
        %v936 = vadd.f32 %v906, %v935
        %v937 = vand.u32 %v452, 4294901760
        %v938 = vsub.f32 %v452, %v937
        %939 = vmatmul.f32.gmra.mxu0 %v938
        %v940 = vpop.f32.mrf.mxu0
        %v941 = vadd.f32 %v910, %v940
        %942 = vdwg.mxu0
        %943 = vmatpush.msra.mxu0 0.0
        %944 = vmatpush.msra.mxu0 0.0
        %945 = vmatpush.msra.mxu0 0.0
        %946 = vmatpush.msra.mxu0 0.0
        %947 = vmatpush.msra.mxu0 0.0
        %948 = vmatpush.msra.mxu0 0.0
        %949 = vmatpush.msra.mxu0 0.0
        %950 = vmatpush.msra.mxu0 0.0
        %951 = vmatpush.msra.mxu0 0.0
        %952 = vmatpush.msra.mxu0 0.0
        %953 = vmatpush.msra.mxu0 0.0
        %954 = vmatpush.msra.mxu0 0.0
        %955 = vmatpush.msra.mxu0 0.0
        %956 = vmatpush.msra.mxu0 0.0
        %v957 = vand.u32 %v434, 4294901760
        %958 = vmatpush.msra.mxu0 %v957
        %v959 = vand.u32 %v433, 4294901760
        %960 = vmatpush.msra.mxu0 %v959
        %v961 = vand.u32 %v449, 4294901760
        %v962 = vsub.f32 %v449, %v961
        %v963 = vand.u32 %v962, 4294901760
        %964 = vmatmul.f32.gmra.mxu0 %v963
        %v965 = vpop.f32.mrf.mxu0
        %v966 = vadd.f32 %v936, %v965
        %v967 = vand.u32 %v452, 4294901760
        %v968 = vsub.f32 %v452, %v967
        %v969 = vand.u32 %v968, 4294901760
        %970 = vmatmul.f32.gmra.mxu0 %v969
        %v971 = vpop.f32.mrf.mxu0
        %v972 = vadd.f32 %v941, %v971
        %973 = vdwg.mxu0
        %974 = vmatpush.msra.mxu0 0.0
        %975 = vmatpush.msra.mxu0 0.0
        %976 = vmatpush.msra.mxu0 0.0
        %977 = vmatpush.msra.mxu0 0.0
        %978 = vmatpush.msra.mxu0 0.0
        %979 = vmatpush.msra.mxu0 0.0
        %980 = vmatpush.msra.mxu0 0.0
        %981 = vmatpush.msra.mxu0 0.0
        %982 = vmatpush.msra.mxu0 0.0
        %983 = vmatpush.msra.mxu0 0.0
        %984 = vmatpush.msra.mxu0 0.0
        %985 = vmatpush.msra.mxu0 0.0
        %986 = vmatpush.msra.mxu0 0.0
        %987 = vmatpush.msra.mxu0 0.0
        %v988 = vand.u32 %v434, 4294901760
        %v989 = vsub.f32 %v434, %v988
        %v990 = vand.u32 %v989, 4294901760
        %991 = vmatpush.msra.mxu0 %v990
        %v992 = vand.u32 %v433, 4294901760
        %v993 = vsub.f32 %v433, %v992
        %v994 = vand.u32 %v993, 4294901760
        %995 = vmatpush.msra.mxu0 %v994
        %v996 = vand.u32 %v449, 4294901760
        %997 = vmatmul.f32.gmra.mxu0 %v996
        %v998 = vpop.f32.mrf.mxu0
        %v999 = vadd.f32 %v966, %v998
        %v1000 = vand.u32 %v452, 4294901760
        %1001 = vmatmul.f32.gmra.mxu0 %v1000
        %v1002 = vpop.f32.mrf.mxu0
        %v1003 = vadd.f32 %v972, %v1002
        %1004 = vdwg.mxu0
        %1005 = vmatpush.msra.mxu0 0.0
        %1006 = vmatpush.msra.mxu0 0.0
        %1007 = vmatpush.msra.mxu0 0.0
        %1008 = vmatpush.msra.mxu0 0.0
        %1009 = vmatpush.msra.mxu0 0.0
        %1010 = vmatpush.msra.mxu0 0.0
        %1011 = vmatpush.msra.mxu0 0.0
        %1012 = vmatpush.msra.mxu0 0.0
        %1013 = vmatpush.msra.mxu0 0.0
        %1014 = vmatpush.msra.mxu0 0.0
        %1015 = vmatpush.msra.mxu0 0.0
        %1016 = vmatpush.msra.mxu0 0.0
        %1017 = vmatpush.msra.mxu0 0.0
        %1018 = vmatpush.msra.mxu0 0.0
        %v1019 = vand.u32 %v434, 4294901760
        %1020 = vmatpush.msra.mxu0 %v1019
        %v1021 = vand.u32 %v433, 4294901760
        %1022 = vmatpush.msra.mxu0 %v1021
        %v1023 = vand.u32 %v449, 4294901760
        %1024 = vmatmul.f32.gmra.mxu0 %v1023
        %v1025 = vpop.f32.mrf.mxu0
        %v1026 = vadd.f32 %v999, %v1025
        %v1027 = vand.u32 %v452, 4294901760
        %1028 = vmatmul.f32.gmra.mxu0 %v1027
        %v1029 = vpop.f32.mrf.mxu0
        %v1030 = vadd.f32 %v1003, %v1029
        %1031 = vdwg.mxu0
        %v1033 = vsel %vm420, %v1026, 0
        %v1036 = vsel %vm420, %v1030, 0
        %1038 = vmatpush.msra.mxu0 0.0
        %1039 = vmatpush.msra.mxu0 0.0
        %1040 = vmatpush.msra.mxu0 0.0
        %1041 = vmatpush.msra.mxu0 0.0
        %1042 = vmatpush.msra.mxu0 0.0
        %1043 = vmatpush.msra.mxu0 0.0
        %1044 = vmatpush.msra.mxu0 0.0
        %1045 = vmatpush.msra.mxu0 0.0
        %1046 = vmatpush.msra.mxu0 0.0
        %1047 = vmatpush.msra.mxu0 0.0
        %1048 = vmatpush.msra.mxu0 0.0
        %1049 = vmatpush.msra.mxu0 0.0
        %1050 = vmatpush.msra.mxu0 0.0
        %1051 = vmatpush.msra.mxu0 0.0
        %v1052 = vand.u32 %v414, 4294901760
        %1053 = vmatpush.msra.mxu0 %v1052
        %v1054 = vand.u32 %v413, 4294901760
        %1055 = vmatpush.msra.mxu0 %v1054
        %v1056 = vand.u32 %v1033, 4294901760
        %v1057 = vsub.f32 %v1033, %v1056
        %v1058 = vand.u32 %v1057, 4294901760
        %v1059 = vsub.f32 %v1057, %v1058
        %v1060 = vand.u32 %v1059, 4294901760
        %1061 = vmatmul.f32.gmra.mxu0 %v1060
        %v1062 = vpop.f32.mrf.mxu0
        %v1063 = vadd.f32 0.0, %v1062
        %v1064 = vand.u32 %v1036, 4294901760
        %v1065 = vsub.f32 %v1036, %v1064
        %v1066 = vand.u32 %v1065, 4294901760
        %v1067 = vsub.f32 %v1065, %v1066
        %v1068 = vand.u32 %v1067, 4294901760
        %1069 = vmatmul.f32.gmra.mxu0 %v1068
        %v1070 = vpop.f32.mrf.mxu0
        %v1071 = vadd.f32 0.0, %v1070
        %1072 = vdwg.mxu0
        %1073 = vmatpush.msra.mxu0 0.0
        %1074 = vmatpush.msra.mxu0 0.0
        %1075 = vmatpush.msra.mxu0 0.0
        %1076 = vmatpush.msra.mxu0 0.0
        %1077 = vmatpush.msra.mxu0 0.0
        %1078 = vmatpush.msra.mxu0 0.0
        %1079 = vmatpush.msra.mxu0 0.0
        %1080 = vmatpush.msra.mxu0 0.0
        %1081 = vmatpush.msra.mxu0 0.0
        %1082 = vmatpush.msra.mxu0 0.0
        %1083 = vmatpush.msra.mxu0 0.0
        %1084 = vmatpush.msra.mxu0 0.0
        %1085 = vmatpush.msra.mxu0 0.0
        %1086 = vmatpush.msra.mxu0 0.0
        %v1087 = vand.u32 %v414, 4294901760
        %v1088 = vsub.f32 %v414, %v1087
        %v1089 = vand.u32 %v1088, 4294901760
        %v1090 = vsub.f32 %v1088, %v1089
        %v1091 = vand.u32 %v1090, 4294901760
        %1092 = vmatpush.msra.mxu0 %v1091
        %v1093 = vand.u32 %v413, 4294901760
        %v1094 = vsub.f32 %v413, %v1093
        %v1095 = vand.u32 %v1094, 4294901760
        %v1096 = vsub.f32 %v1094, %v1095
        %v1097 = vand.u32 %v1096, 4294901760
        %1098 = vmatpush.msra.mxu0 %v1097
        %v1099 = vand.u32 %v1033, 4294901760
        %1100 = vmatmul.f32.gmra.mxu0 %v1099
        %v1101 = vpop.f32.mrf.mxu0
        %v1102 = vadd.f32 %v1063, %v1101
        %v1103 = vand.u32 %v1036, 4294901760
        %1104 = vmatmul.f32.gmra.mxu0 %v1103
        %v1105 = vpop.f32.mrf.mxu0
        %v1106 = vadd.f32 %v1071, %v1105
        %1107 = vdwg.mxu0
        %1108 = vmatpush.msra.mxu0 0.0
        %1109 = vmatpush.msra.mxu0 0.0
        %1110 = vmatpush.msra.mxu0 0.0
        %1111 = vmatpush.msra.mxu0 0.0
        %1112 = vmatpush.msra.mxu0 0.0
        %1113 = vmatpush.msra.mxu0 0.0
        %1114 = vmatpush.msra.mxu0 0.0
        %1115 = vmatpush.msra.mxu0 0.0
        %1116 = vmatpush.msra.mxu0 0.0
        %1117 = vmatpush.msra.mxu0 0.0
        %1118 = vmatpush.msra.mxu0 0.0
        %1119 = vmatpush.msra.mxu0 0.0
        %1120 = vmatpush.msra.mxu0 0.0
        %1121 = vmatpush.msra.mxu0 0.0
        %v1122 = vand.u32 %v414, 4294901760
        %v1123 = vsub.f32 %v414, %v1122
        %1124 = vmatpush.msra.mxu0 %v1123
        %v1125 = vand.u32 %v413, 4294901760
        %v1126 = vsub.f32 %v413, %v1125
        %1127 = vmatpush.msra.mxu0 %v1126
        %v1128 = vand.u32 %v1033, 4294901760
        %v1129 = vsub.f32 %v1033, %v1128
        %1130 = vmatmul.f32.gmra.mxu0 %v1129
        %v1131 = vpop.f32.mrf.mxu0
        %v1132 = vadd.f32 %v1102, %v1131
        %v1133 = vand.u32 %v1036, 4294901760
        %v1134 = vsub.f32 %v1036, %v1133
        %1135 = vmatmul.f32.gmra.mxu0 %v1134
        %v1136 = vpop.f32.mrf.mxu0
        %v1137 = vadd.f32 %v1106, %v1136
        %1138 = vdwg.mxu0
        %1139 = vmatpush.msra.mxu0 0.0
        %1140 = vmatpush.msra.mxu0 0.0
        %1141 = vmatpush.msra.mxu0 0.0
        %1142 = vmatpush.msra.mxu0 0.0
        %1143 = vmatpush.msra.mxu0 0.0
        %1144 = vmatpush.msra.mxu0 0.0
        %1145 = vmatpush.msra.mxu0 0.0
        %1146 = vmatpush.msra.mxu0 0.0
        %1147 = vmatpush.msra.mxu0 0.0
        %1148 = vmatpush.msra.mxu0 0.0
        %1149 = vmatpush.msra.mxu0 0.0
        %1150 = vmatpush.msra.mxu0 0.0
        %1151 = vmatpush.msra.mxu0 0.0
        %1152 = vmatpush.msra.mxu0 0.0
        %v1153 = vand.u32 %v414, 4294901760
        %1154 = vmatpush.msra.mxu0 %v1153
        %v1155 = vand.u32 %v413, 4294901760
        %1156 = vmatpush.msra.mxu0 %v1155
        %v1157 = vand.u32 %v1033, 4294901760
        %v1158 = vsub.f32 %v1033, %v1157
        %v1159 = vand.u32 %v1158, 4294901760
        %1160 = vmatmul.f32.gmra.mxu0 %v1159
        %v1161 = vpop.f32.mrf.mxu0
        %v1162 = vadd.f32 %v1132, %v1161
        %v1163 = vand.u32 %v1036, 4294901760
        %v1164 = vsub.f32 %v1036, %v1163
        %v1165 = vand.u32 %v1164, 4294901760
        %1166 = vmatmul.f32.gmra.mxu0 %v1165
        %v1167 = vpop.f32.mrf.mxu0
        %v1168 = vadd.f32 %v1137, %v1167
        %1169 = vdwg.mxu0
        %1170 = vmatpush.msra.mxu0 0.0
        %1171 = vmatpush.msra.mxu0 0.0
        %1172 = vmatpush.msra.mxu0 0.0
        %1173 = vmatpush.msra.mxu0 0.0
        %1174 = vmatpush.msra.mxu0 0.0
        %1175 = vmatpush.msra.mxu0 0.0
        %1176 = vmatpush.msra.mxu0 0.0
        %1177 = vmatpush.msra.mxu0 0.0
        %1178 = vmatpush.msra.mxu0 0.0
        %1179 = vmatpush.msra.mxu0 0.0
        %1180 = vmatpush.msra.mxu0 0.0
        %1181 = vmatpush.msra.mxu0 0.0
        %1182 = vmatpush.msra.mxu0 0.0
        %1183 = vmatpush.msra.mxu0 0.0
        %v1184 = vand.u32 %v414, 4294901760
        %v1185 = vsub.f32 %v414, %v1184
        %v1186 = vand.u32 %v1185, 4294901760
        %1187 = vmatpush.msra.mxu0 %v1186
        %v1188 = vand.u32 %v413, 4294901760
        %v1189 = vsub.f32 %v413, %v1188
        %v1190 = vand.u32 %v1189, 4294901760
        %1191 = vmatpush.msra.mxu0 %v1190
        %v1192 = vand.u32 %v1033, 4294901760
        %1193 = vmatmul.f32.gmra.mxu0 %v1192
        %v1194 = vpop.f32.mrf.mxu0
        %v1195 = vadd.f32 %v1162, %v1194
        %v1196 = vand.u32 %v1036, 4294901760
        %1197 = vmatmul.f32.gmra.mxu0 %v1196
        %v1198 = vpop.f32.mrf.mxu0
        %v1199 = vadd.f32 %v1168, %v1198
        %1200 = vdwg.mxu0
        %1201 = vmatpush.msra.mxu0 0.0
        %1202 = vmatpush.msra.mxu0 0.0
        %1203 = vmatpush.msra.mxu0 0.0
        %1204 = vmatpush.msra.mxu0 0.0
        %1205 = vmatpush.msra.mxu0 0.0
        %1206 = vmatpush.msra.mxu0 0.0
        %1207 = vmatpush.msra.mxu0 0.0
        %1208 = vmatpush.msra.mxu0 0.0
        %1209 = vmatpush.msra.mxu0 0.0
        %1210 = vmatpush.msra.mxu0 0.0
        %1211 = vmatpush.msra.mxu0 0.0
        %1212 = vmatpush.msra.mxu0 0.0
        %1213 = vmatpush.msra.mxu0 0.0
        %1214 = vmatpush.msra.mxu0 0.0
        %v1215 = vand.u32 %v414, 4294901760
        %1216 = vmatpush.msra.mxu0 %v1215
        %v1217 = vand.u32 %v413, 4294901760
        %1218 = vmatpush.msra.mxu0 %v1217
        %v1219 = vand.u32 %v1033, 4294901760
        %1220 = vmatmul.f32.gmra.mxu0 %v1219
        %v1221 = vpop.f32.mrf.mxu0
        %v1222 = vadd.f32 %v1195, %v1221
        %v1223 = vand.u32 %v1036, 4294901760
        %1224 = vmatmul.f32.gmra.mxu0 %v1223
        %v1225 = vpop.f32.mrf.mxu0
        %v1226 = vadd.f32 %v1199, %v1225
        %1227 = vdwg.mxu0
        %v1228 = vsub.f32 %v1222, %v840
        %v1229 = vsub.f32 %v1226, %v841
        %v1230 = vld [vmem:[%s348] sm:$0xff]
        %v1231 = vld [vmem:[%s348 + $0x8] sm:$0xff]
        %v1232 = vand.u32 2147483647, %v1230
        %v1233 = vand.u32 2147483647, %v1231
        %v1234 = vsub.f32 0.0, %v1232
        %v1235 = vsub.f32 0.0, %v1233
        %v1236 = vmul.f32 %v1234, 1.442695
        %v1237 = vpow.pop %v1236
        %v1238 = vmul.f32 %v1235, 1.442695
        %v1239 = vpow.pop %v1238
        %v1240 = vadd.f32 %v1237, 1.0
        %v1241 = vadd.f32 %v1239, 1.0
        %v1242 = vrcp.pop %v1240
        %v1243 = vmul.f32 %v1240, %v1242
        %v1244 = vsub.f32 1.0, %v1243
        %v1245 = vmul.f32 %v1242, %v1244
        %v1246 = vadd.f32 %v1242, %v1245
        %vm1247 = vweird.f32 %v1240
        %vm1248 = vweird.f32 %v1242
        %vm1249 = vmor %vm1247, %vm1248
        %v1250 = vsel %vm1249, %v1242, %v1246
        %v1251 = vand.u32 2147483647, %v1240
        %vm1252 = vcmp.eq.f32.partialorder %v1251, 8.507059e+37
        %v1253 = vand.u32 %v1240, 2147483648
        %v1254 = vor.u32 1.1754944e-38, %v1253
        %v1255 = vsel %vm1252, %v1254, %v1250
        %v1256 = vmul.f32 1.0, %v1255
        %v1257 = vrcp.pop %v1241
        %v1258 = vmul.f32 %v1241, %v1257
        %v1259 = vsub.f32 1.0, %v1258
        %v1260 = vmul.f32 %v1257, %v1259
        %v1261 = vadd.f32 %v1257, %v1260
        %vm1262 = vweird.f32 %v1241
        %vm1263 = vweird.f32 %v1257
        %vm1264 = vmor %vm1262, %vm1263
        %v1265 = vsel %vm1264, %v1257, %v1261
        %v1266 = vand.u32 2147483647, %v1241
        %vm1267 = vcmp.eq.f32.partialorder %v1266, 8.507059e+37
        %v1268 = vand.u32 %v1241, 2147483648
        %v1269 = vor.u32 1.1754944e-38, %v1268
        %v1270 = vsel %vm1267, %v1269, %v1265
        %v1271 = vmul.f32 1.0, %v1270
        %vm1272 = vcmp.ge.f32.partialorder %v1230, 0.0
        %vm1273 = vcmp.ge.f32.partialorder %v1231, 0.0
        %v1274 = vmul.f32 %v1237, %v1256
        %v1275 = vmul.f32 %v1239, %v1271
        %v1276 = vsel %vm1272, %v1256, %v1274
        %v1277 = vsel %vm1273, %v1271, %v1275
        %v1278 = vmul.f32 %v1276, %v1276
        %v1279 = vmul.f32 %v1277, %v1277
        %v1280 = vmul.f32 %v1276, %v418
        %v1281 = vmul.f32 %v1277, %v419
        %v1282 = vsel %vm420, %v1276, 0.0
        %v1283 = vsel %vm420, %v1277, 0.0
        %v1284 = vadd.f32 %v1282, %v1283
        %1285 = vadd.xlane.f32.xlu0 %v1284
        %v1286 = vpop.xlane.xlu0 %1285
        %v1287 = vrot.slane %v1286, 4
        %v1288 = vadd.f32 %v1286, %v1287
        %v1289 = vrot.slane %v1288, 2
        %v1290 = vadd.f32 %v1288, %v1289
        %v1291 = vrot.slane %v1290, 1
        %v1292 = vadd.f32 %v1290, %v1291
        %s1293 = vtos %v1292
        %v1294 = vsel %vm420, %v1278, 0.0
        %v1295 = vsel %vm420, %v1279, 0.0
        %v1296 = vadd.f32 %v1294, %v1295
        %1297 = vadd.xlane.f32.xlu0 %v1296
        %v1298 = vpop.xlane.xlu0 %1297
        %v1299 = vrot.slane %v1298, 4
        %v1300 = vadd.f32 %v1298, %v1299
        %v1301 = vrot.slane %v1300, 2
        %v1302 = vadd.f32 %v1300, %v1301
        %v1303 = vrot.slane %v1302, 1
        %v1304 = vadd.f32 %v1302, %v1303
        %s1305 = vtos %v1304
        %v1306 = vsel %vm420, %v1280, 0.0
        %v1307 = vsel %vm420, %v1281, 0.0
        %v1308 = vadd.f32 %v1306, %v1307
        %1309 = vadd.xlane.f32.xlu0 %v1308
        %v1310 = vpop.xlane.xlu0 %1309
        %v1311 = vrot.slane %v1310, 4
        %v1312 = vadd.f32 %v1310, %v1311
        %v1313 = vrot.slane %v1312, 2
        %v1314 = vadd.f32 %v1312, %v1313
        %v1315 = vrot.slane %v1314, 1
        %v1316 = vadd.f32 %v1314, %v1315
        %s1317 = vtos %v1316
        %v1318 = vmax.f32 %v1230, 0.0
        %v1319 = vmax.f32 %v1231, 0.0
        %v1320 = vmul.f32 %v1230, %v418
        %v1321 = vmul.f32 %v1231, %v419
        %v1322 = vsub.f32 %v1318, %v1320
        %v1323 = vsub.f32 %v1319, %v1321
        %v1324 = vlog2.pop %v1240
        %v1325 = vmul.f32 %v1324, 0.6931472
        %v1326 = vlog2.pop %v1241
        %v1327 = vmul.f32 %v1326, 0.6931472
        %v1328 = vadd.f32 %v1322, %v1325
        %v1329 = vadd.f32 %v1323, %v1327
        %v1330 = vsel %vm420, %v1328, 0.0
        %v1331 = vsel %vm420, %v1329, 0.0
        %v1332 = vadd.f32 %v1330, %v1331
        %1333 = vadd.xlane.f32.xlu0 %v1332
        %v1334 = vpop.xlane.xlu0 %1333
        %v1335 = vrot.slane %v1334, 4
        %v1336 = vadd.f32 %v1334, %v1335
        %v1337 = vrot.slane %v1336, 2
        %v1338 = vadd.f32 %v1336, %v1337
        %v1339 = vrot.slane %v1338, 1
        %v1340 = vadd.f32 %v1338, %v1339
        %s1341 = vtos %v1340
        %s1342 = smul.f32 %s1341, 0.05859375
        %s1343 = sadd.f32 %s1342, 0.0
        %s1344 = smul.f32 %s1317, 2.0
        %s1345 = ssub.f32 %s1305, %s1344
        %s1346 = sadd.f32 %s1345, %s446
        %s1347 = smul.f32 %s1346, 0.29296875
        %s1348 = sadd.f32 %s1343, %s1347
        %s1349 = ssub.f32 %s1293, %s1305
        %s1350 = smul.f32 %s1349, 0.390625
        %s1351 = sadd.f32 %s1348, %s1350
        %s1352 = sadd.f32 %s1317, 0.0
        %s1353 = sadd.f32 %s1293, 0.0
        %1354 = vmatpush.msra.mxu0 0.0
        %1355 = vmatpush.msra.mxu0 0.0
        %1356 = vmatpush.msra.mxu0 0.0
        %1357 = vmatpush.msra.mxu0 0.0
        %1358 = vmatpush.msra.mxu0 0.0
        %1359 = vmatpush.msra.mxu0 0.0
        %1360 = vmatpush.msra.mxu0 0.0
        %1361 = vmatpush.msra.mxu0 0.0
        %1362 = vmatpush.msra.mxu0 0.0
        %1363 = vmatpush.msra.mxu0 0.0
        %1364 = vmatpush.msra.mxu0 0.0
        %1365 = vmatpush.msra.mxu0 0.0
        %1366 = vmatpush.msra.mxu0 0.0
        %1367 = vmatpush.msra.mxu0 0.0
        %v1368 = vand.u32 %v1277, 4294901760
        %1369 = vmatpush.msra.mxu0 %v1368
        %v1370 = vand.u32 %v1276, 4294901760
        %1371 = vmatpush.msra.mxu0 %v1370
        %v1372 = vand.u32 %v449, 4294901760
        %v1373 = vsub.f32 %v449, %v1372
        %v1374 = vand.u32 %v1373, 4294901760
        %v1375 = vsub.f32 %v1373, %v1374
        %v1376 = vand.u32 %v1375, 4294901760
        %1377 = vmatmul.f32.gmra.mxu0 %v1376
        %v1378 = vpop.f32.mrf.mxu0
        %v1379 = vadd.f32 0.0, %v1378
        %v1380 = vand.u32 %v452, 4294901760
        %v1381 = vsub.f32 %v452, %v1380
        %v1382 = vand.u32 %v1381, 4294901760
        %v1383 = vsub.f32 %v1381, %v1382
        %v1384 = vand.u32 %v1383, 4294901760
        %1385 = vmatmul.f32.gmra.mxu0 %v1384
        %v1386 = vpop.f32.mrf.mxu0
        %v1387 = vadd.f32 0.0, %v1386
        %1388 = vdwg.mxu0
        %1389 = vmatpush.msra.mxu0 0.0
        %1390 = vmatpush.msra.mxu0 0.0
        %1391 = vmatpush.msra.mxu0 0.0
        %1392 = vmatpush.msra.mxu0 0.0
        %1393 = vmatpush.msra.mxu0 0.0
        %1394 = vmatpush.msra.mxu0 0.0
        %1395 = vmatpush.msra.mxu0 0.0
        %1396 = vmatpush.msra.mxu0 0.0
        %1397 = vmatpush.msra.mxu0 0.0
        %1398 = vmatpush.msra.mxu0 0.0
        %1399 = vmatpush.msra.mxu0 0.0
        %1400 = vmatpush.msra.mxu0 0.0
        %1401 = vmatpush.msra.mxu0 0.0
        %1402 = vmatpush.msra.mxu0 0.0
        %v1403 = vand.u32 %v1277, 4294901760
        %v1404 = vsub.f32 %v1277, %v1403
        %v1405 = vand.u32 %v1404, 4294901760
        %v1406 = vsub.f32 %v1404, %v1405
        %v1407 = vand.u32 %v1406, 4294901760
        %1408 = vmatpush.msra.mxu0 %v1407
        %v1409 = vand.u32 %v1276, 4294901760
        %v1410 = vsub.f32 %v1276, %v1409
        %v1411 = vand.u32 %v1410, 4294901760
        %v1412 = vsub.f32 %v1410, %v1411
        %v1413 = vand.u32 %v1412, 4294901760
        %1414 = vmatpush.msra.mxu0 %v1413
        %v1415 = vand.u32 %v449, 4294901760
        %1416 = vmatmul.f32.gmra.mxu0 %v1415
        %v1417 = vpop.f32.mrf.mxu0
        %v1418 = vadd.f32 %v1379, %v1417
        %v1419 = vand.u32 %v452, 4294901760
        %1420 = vmatmul.f32.gmra.mxu0 %v1419
        %v1421 = vpop.f32.mrf.mxu0
        %v1422 = vadd.f32 %v1387, %v1421
        %1423 = vdwg.mxu0
        %1424 = vmatpush.msra.mxu0 0.0
        %1425 = vmatpush.msra.mxu0 0.0
        %1426 = vmatpush.msra.mxu0 0.0
        %1427 = vmatpush.msra.mxu0 0.0
        %1428 = vmatpush.msra.mxu0 0.0
        %1429 = vmatpush.msra.mxu0 0.0
        %1430 = vmatpush.msra.mxu0 0.0
        %1431 = vmatpush.msra.mxu0 0.0
        %1432 = vmatpush.msra.mxu0 0.0
        %1433 = vmatpush.msra.mxu0 0.0
        %1434 = vmatpush.msra.mxu0 0.0
        %1435 = vmatpush.msra.mxu0 0.0
        %1436 = vmatpush.msra.mxu0 0.0
        %1437 = vmatpush.msra.mxu0 0.0
        %v1438 = vand.u32 %v1277, 4294901760
        %v1439 = vsub.f32 %v1277, %v1438
        %1440 = vmatpush.msra.mxu0 %v1439
        %v1441 = vand.u32 %v1276, 4294901760
        %v1442 = vsub.f32 %v1276, %v1441
        %1443 = vmatpush.msra.mxu0 %v1442
        %v1444 = vand.u32 %v449, 4294901760
        %v1445 = vsub.f32 %v449, %v1444
        %1446 = vmatmul.f32.gmra.mxu0 %v1445
        %v1447 = vpop.f32.mrf.mxu0
        %v1448 = vadd.f32 %v1418, %v1447
        %v1449 = vand.u32 %v452, 4294901760
        %v1450 = vsub.f32 %v452, %v1449
        %1451 = vmatmul.f32.gmra.mxu0 %v1450
        %v1452 = vpop.f32.mrf.mxu0
        %v1453 = vadd.f32 %v1422, %v1452
        %1454 = vdwg.mxu0
        %1455 = vmatpush.msra.mxu0 0.0
        %1456 = vmatpush.msra.mxu0 0.0
        %1457 = vmatpush.msra.mxu0 0.0
        %1458 = vmatpush.msra.mxu0 0.0
        %1459 = vmatpush.msra.mxu0 0.0
        %1460 = vmatpush.msra.mxu0 0.0
        %1461 = vmatpush.msra.mxu0 0.0
        %1462 = vmatpush.msra.mxu0 0.0
        %1463 = vmatpush.msra.mxu0 0.0
        %1464 = vmatpush.msra.mxu0 0.0
        %1465 = vmatpush.msra.mxu0 0.0
        %1466 = vmatpush.msra.mxu0 0.0
        %1467 = vmatpush.msra.mxu0 0.0
        %1468 = vmatpush.msra.mxu0 0.0
        %v1469 = vand.u32 %v1277, 4294901760
        %1470 = vmatpush.msra.mxu0 %v1469
        %v1471 = vand.u32 %v1276, 4294901760
        %1472 = vmatpush.msra.mxu0 %v1471
        %v1473 = vand.u32 %v449, 4294901760
        %v1474 = vsub.f32 %v449, %v1473
        %v1475 = vand.u32 %v1474, 4294901760
        %1476 = vmatmul.f32.gmra.mxu0 %v1475
        %v1477 = vpop.f32.mrf.mxu0
        %v1478 = vadd.f32 %v1448, %v1477
        %v1479 = vand.u32 %v452, 4294901760
        %v1480 = vsub.f32 %v452, %v1479
        %v1481 = vand.u32 %v1480, 4294901760
        %1482 = vmatmul.f32.gmra.mxu0 %v1481
        %v1483 = vpop.f32.mrf.mxu0
        %v1484 = vadd.f32 %v1453, %v1483
        %1485 = vdwg.mxu0
        %1486 = vmatpush.msra.mxu0 0.0
        %1487 = vmatpush.msra.mxu0 0.0
        %1488 = vmatpush.msra.mxu0 0.0
        %1489 = vmatpush.msra.mxu0 0.0
        %1490 = vmatpush.msra.mxu0 0.0
        %1491 = vmatpush.msra.mxu0 0.0
        %1492 = vmatpush.msra.mxu0 0.0
        %1493 = vmatpush.msra.mxu0 0.0
        %1494 = vmatpush.msra.mxu0 0.0
        %1495 = vmatpush.msra.mxu0 0.0
        %1496 = vmatpush.msra.mxu0 0.0
        %1497 = vmatpush.msra.mxu0 0.0
        %1498 = vmatpush.msra.mxu0 0.0
        %1499 = vmatpush.msra.mxu0 0.0
        %v1500 = vand.u32 %v1277, 4294901760
        %v1501 = vsub.f32 %v1277, %v1500
        %v1502 = vand.u32 %v1501, 4294901760
        %1503 = vmatpush.msra.mxu0 %v1502
        %v1504 = vand.u32 %v1276, 4294901760
        %v1505 = vsub.f32 %v1276, %v1504
        %v1506 = vand.u32 %v1505, 4294901760
        %1507 = vmatpush.msra.mxu0 %v1506
        %v1508 = vand.u32 %v449, 4294901760
        %1509 = vmatmul.f32.gmra.mxu0 %v1508
        %v1510 = vpop.f32.mrf.mxu0
        %v1511 = vadd.f32 %v1478, %v1510
        %v1512 = vand.u32 %v452, 4294901760
        %1513 = vmatmul.f32.gmra.mxu0 %v1512
        %v1514 = vpop.f32.mrf.mxu0
        %v1515 = vadd.f32 %v1484, %v1514
        %1516 = vdwg.mxu0
        %1517 = vmatpush.msra.mxu0 0.0
        %1518 = vmatpush.msra.mxu0 0.0
        %1519 = vmatpush.msra.mxu0 0.0
        %1520 = vmatpush.msra.mxu0 0.0
        %1521 = vmatpush.msra.mxu0 0.0
        %1522 = vmatpush.msra.mxu0 0.0
        %1523 = vmatpush.msra.mxu0 0.0
        %1524 = vmatpush.msra.mxu0 0.0
        %1525 = vmatpush.msra.mxu0 0.0
        %1526 = vmatpush.msra.mxu0 0.0
        %1527 = vmatpush.msra.mxu0 0.0
        %1528 = vmatpush.msra.mxu0 0.0
        %1529 = vmatpush.msra.mxu0 0.0
        %1530 = vmatpush.msra.mxu0 0.0
        %v1531 = vand.u32 %v1277, 4294901760
        %1532 = vmatpush.msra.mxu0 %v1531
        %v1533 = vand.u32 %v1276, 4294901760
        %1534 = vmatpush.msra.mxu0 %v1533
        %v1535 = vand.u32 %v449, 4294901760
        %1536 = vmatmul.f32.gmra.mxu0 %v1535
        %v1537 = vpop.f32.mrf.mxu0
        %v1538 = vadd.f32 %v1511, %v1537
        %v1539 = vand.u32 %v452, 4294901760
        %1540 = vmatmul.f32.gmra.mxu0 %v1539
        %v1541 = vpop.f32.mrf.mxu0
        %v1542 = vadd.f32 %v1515, %v1541
        %1543 = vdwg.mxu0
        %v1545 = vsel %vm420, %v1538, 0
        %v1548 = vsel %vm420, %v1542, 0
        %1550 = vmatpush.msra.mxu0 0.0
        %1551 = vmatpush.msra.mxu0 0.0
        %1552 = vmatpush.msra.mxu0 0.0
        %1553 = vmatpush.msra.mxu0 0.0
        %1554 = vmatpush.msra.mxu0 0.0
        %1555 = vmatpush.msra.mxu0 0.0
        %1556 = vmatpush.msra.mxu0 0.0
        %1557 = vmatpush.msra.mxu0 0.0
        %1558 = vmatpush.msra.mxu0 0.0
        %1559 = vmatpush.msra.mxu0 0.0
        %1560 = vmatpush.msra.mxu0 0.0
        %1561 = vmatpush.msra.mxu0 0.0
        %1562 = vmatpush.msra.mxu0 0.0
        %1563 = vmatpush.msra.mxu0 0.0
        %v1564 = vand.u32 %v414, 4294901760
        %1565 = vmatpush.msra.mxu0 %v1564
        %v1566 = vand.u32 %v413, 4294901760
        %1567 = vmatpush.msra.mxu0 %v1566
        %v1568 = vand.u32 %v1545, 4294901760
        %v1569 = vsub.f32 %v1545, %v1568
        %v1570 = vand.u32 %v1569, 4294901760
        %v1571 = vsub.f32 %v1569, %v1570
        %v1572 = vand.u32 %v1571, 4294901760
        %1573 = vmatmul.f32.gmra.mxu0 %v1572
        %v1574 = vpop.f32.mrf.mxu0
        %v1575 = vadd.f32 0.0, %v1574
        %v1576 = vand.u32 %v1548, 4294901760
        %v1577 = vsub.f32 %v1548, %v1576
        %v1578 = vand.u32 %v1577, 4294901760
        %v1579 = vsub.f32 %v1577, %v1578
        %v1580 = vand.u32 %v1579, 4294901760
        %1581 = vmatmul.f32.gmra.mxu0 %v1580
        %v1582 = vpop.f32.mrf.mxu0
        %v1583 = vadd.f32 0.0, %v1582
        %1584 = vdwg.mxu0
        %1585 = vmatpush.msra.mxu0 0.0
        %1586 = vmatpush.msra.mxu0 0.0
        %1587 = vmatpush.msra.mxu0 0.0
        %1588 = vmatpush.msra.mxu0 0.0
        %1589 = vmatpush.msra.mxu0 0.0
        %1590 = vmatpush.msra.mxu0 0.0
        %1591 = vmatpush.msra.mxu0 0.0
        %1592 = vmatpush.msra.mxu0 0.0
        %1593 = vmatpush.msra.mxu0 0.0
        %1594 = vmatpush.msra.mxu0 0.0
        %1595 = vmatpush.msra.mxu0 0.0
        %1596 = vmatpush.msra.mxu0 0.0
        %1597 = vmatpush.msra.mxu0 0.0
        %1598 = vmatpush.msra.mxu0 0.0
        %v1599 = vand.u32 %v414, 4294901760
        %v1600 = vsub.f32 %v414, %v1599
        %v1601 = vand.u32 %v1600, 4294901760
        %v1602 = vsub.f32 %v1600, %v1601
        %v1603 = vand.u32 %v1602, 4294901760
        %1604 = vmatpush.msra.mxu0 %v1603
        %v1605 = vand.u32 %v413, 4294901760
        %v1606 = vsub.f32 %v413, %v1605
        %v1607 = vand.u32 %v1606, 4294901760
        %v1608 = vsub.f32 %v1606, %v1607
        %v1609 = vand.u32 %v1608, 4294901760
        %1610 = vmatpush.msra.mxu0 %v1609
        %v1611 = vand.u32 %v1545, 4294901760
        %1612 = vmatmul.f32.gmra.mxu0 %v1611
        %v1613 = vpop.f32.mrf.mxu0
        %v1614 = vadd.f32 %v1575, %v1613
        %v1615 = vand.u32 %v1548, 4294901760
        %1616 = vmatmul.f32.gmra.mxu0 %v1615
        %v1617 = vpop.f32.mrf.mxu0
        %v1618 = vadd.f32 %v1583, %v1617
        %1619 = vdwg.mxu0
        %1620 = vmatpush.msra.mxu0 0.0
        %1621 = vmatpush.msra.mxu0 0.0
        %1622 = vmatpush.msra.mxu0 0.0
        %1623 = vmatpush.msra.mxu0 0.0
        %1624 = vmatpush.msra.mxu0 0.0
        %1625 = vmatpush.msra.mxu0 0.0
        %1626 = vmatpush.msra.mxu0 0.0
        %1627 = vmatpush.msra.mxu0 0.0
        %1628 = vmatpush.msra.mxu0 0.0
        %1629 = vmatpush.msra.mxu0 0.0
        %1630 = vmatpush.msra.mxu0 0.0
        %1631 = vmatpush.msra.mxu0 0.0
        %1632 = vmatpush.msra.mxu0 0.0
        %1633 = vmatpush.msra.mxu0 0.0
        %v1634 = vand.u32 %v414, 4294901760
        %v1635 = vsub.f32 %v414, %v1634
        %1636 = vmatpush.msra.mxu0 %v1635
        %v1637 = vand.u32 %v413, 4294901760
        %v1638 = vsub.f32 %v413, %v1637
        %1639 = vmatpush.msra.mxu0 %v1638
        %v1640 = vand.u32 %v1545, 4294901760
        %v1641 = vsub.f32 %v1545, %v1640
        %1642 = vmatmul.f32.gmra.mxu0 %v1641
        %v1643 = vpop.f32.mrf.mxu0
        %v1644 = vadd.f32 %v1614, %v1643
        %v1645 = vand.u32 %v1548, 4294901760
        %v1646 = vsub.f32 %v1548, %v1645
        %1647 = vmatmul.f32.gmra.mxu0 %v1646
        %v1648 = vpop.f32.mrf.mxu0
        %v1649 = vadd.f32 %v1618, %v1648
        %1650 = vdwg.mxu0
        %1651 = vmatpush.msra.mxu0 0.0
        %1652 = vmatpush.msra.mxu0 0.0
        %1653 = vmatpush.msra.mxu0 0.0
        %1654 = vmatpush.msra.mxu0 0.0
        %1655 = vmatpush.msra.mxu0 0.0
        %1656 = vmatpush.msra.mxu0 0.0
        %1657 = vmatpush.msra.mxu0 0.0
        %1658 = vmatpush.msra.mxu0 0.0
        %1659 = vmatpush.msra.mxu0 0.0
        %1660 = vmatpush.msra.mxu0 0.0
        %1661 = vmatpush.msra.mxu0 0.0
        %1662 = vmatpush.msra.mxu0 0.0
        %1663 = vmatpush.msra.mxu0 0.0
        %1664 = vmatpush.msra.mxu0 0.0
        %v1665 = vand.u32 %v414, 4294901760
        %1666 = vmatpush.msra.mxu0 %v1665
        %v1667 = vand.u32 %v413, 4294901760
        %1668 = vmatpush.msra.mxu0 %v1667
        %v1669 = vand.u32 %v1545, 4294901760
        %v1670 = vsub.f32 %v1545, %v1669
        %v1671 = vand.u32 %v1670, 4294901760
        %1672 = vmatmul.f32.gmra.mxu0 %v1671
        %v1673 = vpop.f32.mrf.mxu0
        %v1674 = vadd.f32 %v1644, %v1673
        %v1675 = vand.u32 %v1548, 4294901760
        %v1676 = vsub.f32 %v1548, %v1675
        %v1677 = vand.u32 %v1676, 4294901760
        %1678 = vmatmul.f32.gmra.mxu0 %v1677
        %v1679 = vpop.f32.mrf.mxu0
        %v1680 = vadd.f32 %v1649, %v1679
        %1681 = vdwg.mxu0
        %1682 = vmatpush.msra.mxu0 0.0
        %1683 = vmatpush.msra.mxu0 0.0
        %1684 = vmatpush.msra.mxu0 0.0
        %1685 = vmatpush.msra.mxu0 0.0
        %1686 = vmatpush.msra.mxu0 0.0
        %1687 = vmatpush.msra.mxu0 0.0
        %1688 = vmatpush.msra.mxu0 0.0
        %1689 = vmatpush.msra.mxu0 0.0
        %1690 = vmatpush.msra.mxu0 0.0
        %1691 = vmatpush.msra.mxu0 0.0
        %1692 = vmatpush.msra.mxu0 0.0
        %1693 = vmatpush.msra.mxu0 0.0
        %1694 = vmatpush.msra.mxu0 0.0
        %1695 = vmatpush.msra.mxu0 0.0
        %v1696 = vand.u32 %v414, 4294901760
        %v1697 = vsub.f32 %v414, %v1696
        %v1698 = vand.u32 %v1697, 4294901760
        %1699 = vmatpush.msra.mxu0 %v1698
        %v1700 = vand.u32 %v413, 4294901760
        %v1701 = vsub.f32 %v413, %v1700
        %v1702 = vand.u32 %v1701, 4294901760
        %1703 = vmatpush.msra.mxu0 %v1702
        %v1704 = vand.u32 %v1545, 4294901760
        %1705 = vmatmul.f32.gmra.mxu0 %v1704
        %v1706 = vpop.f32.mrf.mxu0
        %v1707 = vadd.f32 %v1674, %v1706
        %v1708 = vand.u32 %v1548, 4294901760
        %1709 = vmatmul.f32.gmra.mxu0 %v1708
        %v1710 = vpop.f32.mrf.mxu0
        %v1711 = vadd.f32 %v1680, %v1710
        %1712 = vdwg.mxu0
        %1713 = vmatpush.msra.mxu0 0.0
        %1714 = vmatpush.msra.mxu0 0.0
        %1715 = vmatpush.msra.mxu0 0.0
        %1716 = vmatpush.msra.mxu0 0.0
        %1717 = vmatpush.msra.mxu0 0.0
        %1718 = vmatpush.msra.mxu0 0.0
        %1719 = vmatpush.msra.mxu0 0.0
        %1720 = vmatpush.msra.mxu0 0.0
        %1721 = vmatpush.msra.mxu0 0.0
        %1722 = vmatpush.msra.mxu0 0.0
        %1723 = vmatpush.msra.mxu0 0.0
        %1724 = vmatpush.msra.mxu0 0.0
        %1725 = vmatpush.msra.mxu0 0.0
        %1726 = vmatpush.msra.mxu0 0.0
        %v1727 = vand.u32 %v414, 4294901760
        %1728 = vmatpush.msra.mxu0 %v1727
        %v1729 = vand.u32 %v413, 4294901760
        %1730 = vmatpush.msra.mxu0 %v1729
        %v1731 = vand.u32 %v1545, 4294901760
        %1732 = vmatmul.f32.gmra.mxu0 %v1731
        %v1733 = vpop.f32.mrf.mxu0
        %v1734 = vadd.f32 %v1707, %v1733
        %v1735 = vand.u32 %v1548, 4294901760
        %1736 = vmatmul.f32.gmra.mxu0 %v1735
        %v1737 = vpop.f32.mrf.mxu0
        %v1738 = vadd.f32 %v1711, %v1737
        %1739 = vdwg.mxu0
        %1740 = vmatpush.msra.mxu0 0.0
        %1741 = vmatpush.msra.mxu0 0.0
        %1742 = vmatpush.msra.mxu0 0.0
        %1743 = vmatpush.msra.mxu0 0.0
        %1744 = vmatpush.msra.mxu0 0.0
        %1745 = vmatpush.msra.mxu0 0.0
        %1746 = vmatpush.msra.mxu0 0.0
        %1747 = vmatpush.msra.mxu0 0.0
        %1748 = vmatpush.msra.mxu0 0.0
        %1749 = vmatpush.msra.mxu0 0.0
        %1750 = vmatpush.msra.mxu0 0.0
        %1751 = vmatpush.msra.mxu0 0.0
        %1752 = vmatpush.msra.mxu0 0.0
        %1753 = vmatpush.msra.mxu0 0.0
        %v1754 = vand.u32 %v1279, 4294901760
        %1755 = vmatpush.msra.mxu0 %v1754
        %v1756 = vand.u32 %v1278, 4294901760
        %1757 = vmatpush.msra.mxu0 %v1756
        %v1758 = vand.u32 %v449, 4294901760
        %v1759 = vsub.f32 %v449, %v1758
        %v1760 = vand.u32 %v1759, 4294901760
        %v1761 = vsub.f32 %v1759, %v1760
        %v1762 = vand.u32 %v1761, 4294901760
        %1763 = vmatmul.f32.gmra.mxu0 %v1762
        %v1764 = vpop.f32.mrf.mxu0
        %v1765 = vadd.f32 0.0, %v1764
        %v1766 = vand.u32 %v452, 4294901760
        %v1767 = vsub.f32 %v452, %v1766
        %v1768 = vand.u32 %v1767, 4294901760
        %v1769 = vsub.f32 %v1767, %v1768
        %v1770 = vand.u32 %v1769, 4294901760
        %1771 = vmatmul.f32.gmra.mxu0 %v1770
        %v1772 = vpop.f32.mrf.mxu0
        %v1773 = vadd.f32 0.0, %v1772
        %1774 = vdwg.mxu0
        %1775 = vmatpush.msra.mxu0 0.0
        %1776 = vmatpush.msra.mxu0 0.0
        %1777 = vmatpush.msra.mxu0 0.0
        %1778 = vmatpush.msra.mxu0 0.0
        %1779 = vmatpush.msra.mxu0 0.0
        %1780 = vmatpush.msra.mxu0 0.0
        %1781 = vmatpush.msra.mxu0 0.0
        %1782 = vmatpush.msra.mxu0 0.0
        %1783 = vmatpush.msra.mxu0 0.0
        %1784 = vmatpush.msra.mxu0 0.0
        %1785 = vmatpush.msra.mxu0 0.0
        %1786 = vmatpush.msra.mxu0 0.0
        %1787 = vmatpush.msra.mxu0 0.0
        %1788 = vmatpush.msra.mxu0 0.0
        %v1789 = vand.u32 %v1279, 4294901760
        %v1790 = vsub.f32 %v1279, %v1789
        %v1791 = vand.u32 %v1790, 4294901760
        %v1792 = vsub.f32 %v1790, %v1791
        %v1793 = vand.u32 %v1792, 4294901760
        %1794 = vmatpush.msra.mxu0 %v1793
        %v1795 = vand.u32 %v1278, 4294901760
        %v1796 = vsub.f32 %v1278, %v1795
        %v1797 = vand.u32 %v1796, 4294901760
        %v1798 = vsub.f32 %v1796, %v1797
        %v1799 = vand.u32 %v1798, 4294901760
        %1800 = vmatpush.msra.mxu0 %v1799
        %v1801 = vand.u32 %v449, 4294901760
        %1802 = vmatmul.f32.gmra.mxu0 %v1801
        %v1803 = vpop.f32.mrf.mxu0
        %v1804 = vadd.f32 %v1765, %v1803
        %v1805 = vand.u32 %v452, 4294901760
        %1806 = vmatmul.f32.gmra.mxu0 %v1805
        %v1807 = vpop.f32.mrf.mxu0
        %v1808 = vadd.f32 %v1773, %v1807
        %1809 = vdwg.mxu0
        %1810 = vmatpush.msra.mxu0 0.0
        %1811 = vmatpush.msra.mxu0 0.0
        %1812 = vmatpush.msra.mxu0 0.0
        %1813 = vmatpush.msra.mxu0 0.0
        %1814 = vmatpush.msra.mxu0 0.0
        %1815 = vmatpush.msra.mxu0 0.0
        %1816 = vmatpush.msra.mxu0 0.0
        %1817 = vmatpush.msra.mxu0 0.0
        %1818 = vmatpush.msra.mxu0 0.0
        %1819 = vmatpush.msra.mxu0 0.0
        %1820 = vmatpush.msra.mxu0 0.0
        %1821 = vmatpush.msra.mxu0 0.0
        %1822 = vmatpush.msra.mxu0 0.0
        %1823 = vmatpush.msra.mxu0 0.0
        %v1824 = vand.u32 %v1279, 4294901760
        %v1825 = vsub.f32 %v1279, %v1824
        %1826 = vmatpush.msra.mxu0 %v1825
        %v1827 = vand.u32 %v1278, 4294901760
        %v1828 = vsub.f32 %v1278, %v1827
        %1829 = vmatpush.msra.mxu0 %v1828
        %v1830 = vand.u32 %v449, 4294901760
        %v1831 = vsub.f32 %v449, %v1830
        %1832 = vmatmul.f32.gmra.mxu0 %v1831
        %v1833 = vpop.f32.mrf.mxu0
        %v1834 = vadd.f32 %v1804, %v1833
        %v1835 = vand.u32 %v452, 4294901760
        %v1836 = vsub.f32 %v452, %v1835
        %1837 = vmatmul.f32.gmra.mxu0 %v1836
        %v1838 = vpop.f32.mrf.mxu0
        %v1839 = vadd.f32 %v1808, %v1838
        %1840 = vdwg.mxu0
        %1841 = vmatpush.msra.mxu0 0.0
        %1842 = vmatpush.msra.mxu0 0.0
        %1843 = vmatpush.msra.mxu0 0.0
        %1844 = vmatpush.msra.mxu0 0.0
        %1845 = vmatpush.msra.mxu0 0.0
        %1846 = vmatpush.msra.mxu0 0.0
        %1847 = vmatpush.msra.mxu0 0.0
        %1848 = vmatpush.msra.mxu0 0.0
        %1849 = vmatpush.msra.mxu0 0.0
        %1850 = vmatpush.msra.mxu0 0.0
        %1851 = vmatpush.msra.mxu0 0.0
        %1852 = vmatpush.msra.mxu0 0.0
        %1853 = vmatpush.msra.mxu0 0.0
        %1854 = vmatpush.msra.mxu0 0.0
        %v1855 = vand.u32 %v1279, 4294901760
        %1856 = vmatpush.msra.mxu0 %v1855
        %v1857 = vand.u32 %v1278, 4294901760
        %1858 = vmatpush.msra.mxu0 %v1857
        %v1859 = vand.u32 %v449, 4294901760
        %v1860 = vsub.f32 %v449, %v1859
        %v1861 = vand.u32 %v1860, 4294901760
        %1862 = vmatmul.f32.gmra.mxu0 %v1861
        %v1863 = vpop.f32.mrf.mxu0
        %v1864 = vadd.f32 %v1834, %v1863
        %v1865 = vand.u32 %v452, 4294901760
        %v1866 = vsub.f32 %v452, %v1865
        %v1867 = vand.u32 %v1866, 4294901760
        %1868 = vmatmul.f32.gmra.mxu0 %v1867
        %v1869 = vpop.f32.mrf.mxu0
        %v1870 = vadd.f32 %v1839, %v1869
        %1871 = vdwg.mxu0
        %1872 = vmatpush.msra.mxu0 0.0
        %1873 = vmatpush.msra.mxu0 0.0
        %1874 = vmatpush.msra.mxu0 0.0
        %1875 = vmatpush.msra.mxu0 0.0
        %1876 = vmatpush.msra.mxu0 0.0
        %1877 = vmatpush.msra.mxu0 0.0
        %1878 = vmatpush.msra.mxu0 0.0
        %1879 = vmatpush.msra.mxu0 0.0
        %1880 = vmatpush.msra.mxu0 0.0
        %1881 = vmatpush.msra.mxu0 0.0
        %1882 = vmatpush.msra.mxu0 0.0
        %1883 = vmatpush.msra.mxu0 0.0
        %1884 = vmatpush.msra.mxu0 0.0
        %1885 = vmatpush.msra.mxu0 0.0
        %v1886 = vand.u32 %v1279, 4294901760
        %v1887 = vsub.f32 %v1279, %v1886
        %v1888 = vand.u32 %v1887, 4294901760
        %1889 = vmatpush.msra.mxu0 %v1888
        %v1890 = vand.u32 %v1278, 4294901760
        %v1891 = vsub.f32 %v1278, %v1890
        %v1892 = vand.u32 %v1891, 4294901760
        %1893 = vmatpush.msra.mxu0 %v1892
        %v1894 = vand.u32 %v449, 4294901760
        %1895 = vmatmul.f32.gmra.mxu0 %v1894
        %v1896 = vpop.f32.mrf.mxu0
        %v1897 = vadd.f32 %v1864, %v1896
        %v1898 = vand.u32 %v452, 4294901760
        %1899 = vmatmul.f32.gmra.mxu0 %v1898
        %v1900 = vpop.f32.mrf.mxu0
        %v1901 = vadd.f32 %v1870, %v1900
        %1902 = vdwg.mxu0
        %1903 = vmatpush.msra.mxu0 0.0
        %1904 = vmatpush.msra.mxu0 0.0
        %1905 = vmatpush.msra.mxu0 0.0
        %1906 = vmatpush.msra.mxu0 0.0
        %1907 = vmatpush.msra.mxu0 0.0
        %1908 = vmatpush.msra.mxu0 0.0
        %1909 = vmatpush.msra.mxu0 0.0
        %1910 = vmatpush.msra.mxu0 0.0
        %1911 = vmatpush.msra.mxu0 0.0
        %1912 = vmatpush.msra.mxu0 0.0
        %1913 = vmatpush.msra.mxu0 0.0
        %1914 = vmatpush.msra.mxu0 0.0
        %1915 = vmatpush.msra.mxu0 0.0
        %1916 = vmatpush.msra.mxu0 0.0
        %v1917 = vand.u32 %v1279, 4294901760
        %1918 = vmatpush.msra.mxu0 %v1917
        %v1919 = vand.u32 %v1278, 4294901760
        %1920 = vmatpush.msra.mxu0 %v1919
        %v1921 = vand.u32 %v449, 4294901760
        %1922 = vmatmul.f32.gmra.mxu0 %v1921
        %v1923 = vpop.f32.mrf.mxu0
        %v1924 = vadd.f32 %v1897, %v1923
        %v1925 = vand.u32 %v452, 4294901760
        %1926 = vmatmul.f32.gmra.mxu0 %v1925
        %v1927 = vpop.f32.mrf.mxu0
        %v1928 = vadd.f32 %v1901, %v1927
        %1929 = vdwg.mxu0
        %v1931 = vsel %vm420, %v1924, 0
        %v1934 = vsel %vm420, %v1928, 0
        %1936 = vmatpush.msra.mxu0 0.0
        %1937 = vmatpush.msra.mxu0 0.0
        %1938 = vmatpush.msra.mxu0 0.0
        %1939 = vmatpush.msra.mxu0 0.0
        %1940 = vmatpush.msra.mxu0 0.0
        %1941 = vmatpush.msra.mxu0 0.0
        %1942 = vmatpush.msra.mxu0 0.0
        %1943 = vmatpush.msra.mxu0 0.0
        %1944 = vmatpush.msra.mxu0 0.0
        %1945 = vmatpush.msra.mxu0 0.0
        %1946 = vmatpush.msra.mxu0 0.0
        %1947 = vmatpush.msra.mxu0 0.0
        %1948 = vmatpush.msra.mxu0 0.0
        %1949 = vmatpush.msra.mxu0 0.0
        %v1950 = vand.u32 %v414, 4294901760
        %1951 = vmatpush.msra.mxu0 %v1950
        %v1952 = vand.u32 %v413, 4294901760
        %1953 = vmatpush.msra.mxu0 %v1952
        %v1954 = vand.u32 %v1931, 4294901760
        %v1955 = vsub.f32 %v1931, %v1954
        %v1956 = vand.u32 %v1955, 4294901760
        %v1957 = vsub.f32 %v1955, %v1956
        %v1958 = vand.u32 %v1957, 4294901760
        %1959 = vmatmul.f32.gmra.mxu0 %v1958
        %v1960 = vpop.f32.mrf.mxu0
        %v1961 = vadd.f32 0.0, %v1960
        %v1962 = vand.u32 %v1934, 4294901760
        %v1963 = vsub.f32 %v1934, %v1962
        %v1964 = vand.u32 %v1963, 4294901760
        %v1965 = vsub.f32 %v1963, %v1964
        %v1966 = vand.u32 %v1965, 4294901760
        %1967 = vmatmul.f32.gmra.mxu0 %v1966
        %v1968 = vpop.f32.mrf.mxu0
        %v1969 = vadd.f32 0.0, %v1968
        %1970 = vdwg.mxu0
        %1971 = vmatpush.msra.mxu0 0.0
        %1972 = vmatpush.msra.mxu0 0.0
        %1973 = vmatpush.msra.mxu0 0.0
        %1974 = vmatpush.msra.mxu0 0.0
        %1975 = vmatpush.msra.mxu0 0.0
        %1976 = vmatpush.msra.mxu0 0.0
        %1977 = vmatpush.msra.mxu0 0.0
        %1978 = vmatpush.msra.mxu0 0.0
        %1979 = vmatpush.msra.mxu0 0.0
        %1980 = vmatpush.msra.mxu0 0.0
        %1981 = vmatpush.msra.mxu0 0.0
        %1982 = vmatpush.msra.mxu0 0.0
        %1983 = vmatpush.msra.mxu0 0.0
        %1984 = vmatpush.msra.mxu0 0.0
        %v1985 = vand.u32 %v414, 4294901760
        %v1986 = vsub.f32 %v414, %v1985
        %v1987 = vand.u32 %v1986, 4294901760
        %v1988 = vsub.f32 %v1986, %v1987
        %v1989 = vand.u32 %v1988, 4294901760
        %1990 = vmatpush.msra.mxu0 %v1989
        %v1991 = vand.u32 %v413, 4294901760
        %v1992 = vsub.f32 %v413, %v1991
        %v1993 = vand.u32 %v1992, 4294901760
        %v1994 = vsub.f32 %v1992, %v1993
        %v1995 = vand.u32 %v1994, 4294901760
        %1996 = vmatpush.msra.mxu0 %v1995
        %v1997 = vand.u32 %v1931, 4294901760
        %1998 = vmatmul.f32.gmra.mxu0 %v1997
        %v1999 = vpop.f32.mrf.mxu0
        %v2000 = vadd.f32 %v1961, %v1999
        %v2001 = vand.u32 %v1934, 4294901760
        %2002 = vmatmul.f32.gmra.mxu0 %v2001
        %v2003 = vpop.f32.mrf.mxu0
        %v2004 = vadd.f32 %v1969, %v2003
        %2005 = vdwg.mxu0
        %2006 = vmatpush.msra.mxu0 0.0
        %2007 = vmatpush.msra.mxu0 0.0
        %2008 = vmatpush.msra.mxu0 0.0
        %2009 = vmatpush.msra.mxu0 0.0
        %2010 = vmatpush.msra.mxu0 0.0
        %2011 = vmatpush.msra.mxu0 0.0
        %2012 = vmatpush.msra.mxu0 0.0
        %2013 = vmatpush.msra.mxu0 0.0
        %2014 = vmatpush.msra.mxu0 0.0
        %2015 = vmatpush.msra.mxu0 0.0
        %2016 = vmatpush.msra.mxu0 0.0
        %2017 = vmatpush.msra.mxu0 0.0
        %2018 = vmatpush.msra.mxu0 0.0
        %2019 = vmatpush.msra.mxu0 0.0
        %v2020 = vand.u32 %v414, 4294901760
        %v2021 = vsub.f32 %v414, %v2020
        %2022 = vmatpush.msra.mxu0 %v2021
        %v2023 = vand.u32 %v413, 4294901760
        %v2024 = vsub.f32 %v413, %v2023
        %2025 = vmatpush.msra.mxu0 %v2024
        %v2026 = vand.u32 %v1931, 4294901760
        %v2027 = vsub.f32 %v1931, %v2026
        %2028 = vmatmul.f32.gmra.mxu0 %v2027
        %v2029 = vpop.f32.mrf.mxu0
        %v2030 = vadd.f32 %v2000, %v2029
        %v2031 = vand.u32 %v1934, 4294901760
        %v2032 = vsub.f32 %v1934, %v2031
        %2033 = vmatmul.f32.gmra.mxu0 %v2032
        %v2034 = vpop.f32.mrf.mxu0
        %v2035 = vadd.f32 %v2004, %v2034
        %2036 = vdwg.mxu0
        %2037 = vmatpush.msra.mxu0 0.0
        %2038 = vmatpush.msra.mxu0 0.0
        %2039 = vmatpush.msra.mxu0 0.0
        %2040 = vmatpush.msra.mxu0 0.0
        %2041 = vmatpush.msra.mxu0 0.0
        %2042 = vmatpush.msra.mxu0 0.0
        %2043 = vmatpush.msra.mxu0 0.0
        %2044 = vmatpush.msra.mxu0 0.0
        %2045 = vmatpush.msra.mxu0 0.0
        %2046 = vmatpush.msra.mxu0 0.0
        %2047 = vmatpush.msra.mxu0 0.0
        %2048 = vmatpush.msra.mxu0 0.0
        %2049 = vmatpush.msra.mxu0 0.0
        %2050 = vmatpush.msra.mxu0 0.0
        %v2051 = vand.u32 %v414, 4294901760
        %2052 = vmatpush.msra.mxu0 %v2051
        %v2053 = vand.u32 %v413, 4294901760
        %2054 = vmatpush.msra.mxu0 %v2053
        %v2055 = vand.u32 %v1931, 4294901760
        %v2056 = vsub.f32 %v1931, %v2055
        %v2057 = vand.u32 %v2056, 4294901760
        %2058 = vmatmul.f32.gmra.mxu0 %v2057
        %v2059 = vpop.f32.mrf.mxu0
        %v2060 = vadd.f32 %v2030, %v2059
        %v2061 = vand.u32 %v1934, 4294901760
        %v2062 = vsub.f32 %v1934, %v2061
        %v2063 = vand.u32 %v2062, 4294901760
        %2064 = vmatmul.f32.gmra.mxu0 %v2063
        %v2065 = vpop.f32.mrf.mxu0
        %v2066 = vadd.f32 %v2035, %v2065
        %2067 = vdwg.mxu0
        %2068 = vmatpush.msra.mxu0 0.0
        %2069 = vmatpush.msra.mxu0 0.0
        %2070 = vmatpush.msra.mxu0 0.0
        %2071 = vmatpush.msra.mxu0 0.0
        %2072 = vmatpush.msra.mxu0 0.0
        %2073 = vmatpush.msra.mxu0 0.0
        %2074 = vmatpush.msra.mxu0 0.0
        %2075 = vmatpush.msra.mxu0 0.0
        %2076 = vmatpush.msra.mxu0 0.0
        %2077 = vmatpush.msra.mxu0 0.0
        %2078 = vmatpush.msra.mxu0 0.0
        %2079 = vmatpush.msra.mxu0 0.0
        %2080 = vmatpush.msra.mxu0 0.0
        %2081 = vmatpush.msra.mxu0 0.0
        %v2082 = vand.u32 %v414, 4294901760
        %v2083 = vsub.f32 %v414, %v2082
        %v2084 = vand.u32 %v2083, 4294901760
        %2085 = vmatpush.msra.mxu0 %v2084
        %v2086 = vand.u32 %v413, 4294901760
        %v2087 = vsub.f32 %v413, %v2086
        %v2088 = vand.u32 %v2087, 4294901760
        %2089 = vmatpush.msra.mxu0 %v2088
        %v2090 = vand.u32 %v1931, 4294901760
        %2091 = vmatmul.f32.gmra.mxu0 %v2090
        %v2092 = vpop.f32.mrf.mxu0
        %v2093 = vadd.f32 %v2060, %v2092
        %v2094 = vand.u32 %v1934, 4294901760
        %2095 = vmatmul.f32.gmra.mxu0 %v2094
        %v2096 = vpop.f32.mrf.mxu0
        %v2097 = vadd.f32 %v2066, %v2096
        %2098 = vdwg.mxu0
        %2099 = vmatpush.msra.mxu0 0.0
        %2100 = vmatpush.msra.mxu0 0.0
        %2101 = vmatpush.msra.mxu0 0.0
        %2102 = vmatpush.msra.mxu0 0.0
        %2103 = vmatpush.msra.mxu0 0.0
        %2104 = vmatpush.msra.mxu0 0.0
        %2105 = vmatpush.msra.mxu0 0.0
        %2106 = vmatpush.msra.mxu0 0.0
        %2107 = vmatpush.msra.mxu0 0.0
        %2108 = vmatpush.msra.mxu0 0.0
        %2109 = vmatpush.msra.mxu0 0.0
        %2110 = vmatpush.msra.mxu0 0.0
        %2111 = vmatpush.msra.mxu0 0.0
        %2112 = vmatpush.msra.mxu0 0.0
        %v2113 = vand.u32 %v414, 4294901760
        %2114 = vmatpush.msra.mxu0 %v2113
        %v2115 = vand.u32 %v413, 4294901760
        %2116 = vmatpush.msra.mxu0 %v2115
        %v2117 = vand.u32 %v1931, 4294901760
        %2118 = vmatmul.f32.gmra.mxu0 %v2117
        %v2119 = vpop.f32.mrf.mxu0
        %v2120 = vadd.f32 %v2093, %v2119
        %v2121 = vand.u32 %v1934, 4294901760
        %2122 = vmatmul.f32.gmra.mxu0 %v2121
        %v2123 = vpop.f32.mrf.mxu0
        %v2124 = vadd.f32 %v2097, %v2123
        %2125 = vdwg.mxu0
        %2126 = vmatpush.msra.mxu0 0.0
        %2127 = vmatpush.msra.mxu0 0.0
        %2128 = vmatpush.msra.mxu0 0.0
        %2129 = vmatpush.msra.mxu0 0.0
        %2130 = vmatpush.msra.mxu0 0.0
        %2131 = vmatpush.msra.mxu0 0.0
        %2132 = vmatpush.msra.mxu0 0.0
        %2133 = vmatpush.msra.mxu0 0.0
        %2134 = vmatpush.msra.mxu0 0.0
        %2135 = vmatpush.msra.mxu0 0.0
        %2136 = vmatpush.msra.mxu0 0.0
        %2137 = vmatpush.msra.mxu0 0.0
        %2138 = vmatpush.msra.mxu0 0.0
        %2139 = vmatpush.msra.mxu0 0.0
        %v2140 = vand.u32 %v1281, 4294901760
        %2141 = vmatpush.msra.mxu0 %v2140
        %v2142 = vand.u32 %v1280, 4294901760
        %2143 = vmatpush.msra.mxu0 %v2142
        %v2144 = vand.u32 %v449, 4294901760
        %v2145 = vsub.f32 %v449, %v2144
        %v2146 = vand.u32 %v2145, 4294901760
        %v2147 = vsub.f32 %v2145, %v2146
        %v2148 = vand.u32 %v2147, 4294901760
        %2149 = vmatmul.f32.gmra.mxu0 %v2148
        %v2150 = vpop.f32.mrf.mxu0
        %v2151 = vadd.f32 0.0, %v2150
        %v2152 = vand.u32 %v452, 4294901760
        %v2153 = vsub.f32 %v452, %v2152
        %v2154 = vand.u32 %v2153, 4294901760
        %v2155 = vsub.f32 %v2153, %v2154
        %v2156 = vand.u32 %v2155, 4294901760
        %2157 = vmatmul.f32.gmra.mxu0 %v2156
        %v2158 = vpop.f32.mrf.mxu0
        %v2159 = vadd.f32 0.0, %v2158
        %2160 = vdwg.mxu0
        %2161 = vmatpush.msra.mxu0 0.0
        %2162 = vmatpush.msra.mxu0 0.0
        %2163 = vmatpush.msra.mxu0 0.0
        %2164 = vmatpush.msra.mxu0 0.0
        %2165 = vmatpush.msra.mxu0 0.0
        %2166 = vmatpush.msra.mxu0 0.0
        %2167 = vmatpush.msra.mxu0 0.0
        %2168 = vmatpush.msra.mxu0 0.0
        %2169 = vmatpush.msra.mxu0 0.0
        %2170 = vmatpush.msra.mxu0 0.0
        %2171 = vmatpush.msra.mxu0 0.0
        %2172 = vmatpush.msra.mxu0 0.0
        %2173 = vmatpush.msra.mxu0 0.0
        %2174 = vmatpush.msra.mxu0 0.0
        %v2175 = vand.u32 %v1281, 4294901760
        %v2176 = vsub.f32 %v1281, %v2175
        %v2177 = vand.u32 %v2176, 4294901760
        %v2178 = vsub.f32 %v2176, %v2177
        %v2179 = vand.u32 %v2178, 4294901760
        %2180 = vmatpush.msra.mxu0 %v2179
        %v2181 = vand.u32 %v1280, 4294901760
        %v2182 = vsub.f32 %v1280, %v2181
        %v2183 = vand.u32 %v2182, 4294901760
        %v2184 = vsub.f32 %v2182, %v2183
        %v2185 = vand.u32 %v2184, 4294901760
        %2186 = vmatpush.msra.mxu0 %v2185
        %v2187 = vand.u32 %v449, 4294901760
        %2188 = vmatmul.f32.gmra.mxu0 %v2187
        %v2189 = vpop.f32.mrf.mxu0
        %v2190 = vadd.f32 %v2151, %v2189
        %v2191 = vand.u32 %v452, 4294901760
        %2192 = vmatmul.f32.gmra.mxu0 %v2191
        %v2193 = vpop.f32.mrf.mxu0
        %v2194 = vadd.f32 %v2159, %v2193
        %2195 = vdwg.mxu0
        %2196 = vmatpush.msra.mxu0 0.0
        %2197 = vmatpush.msra.mxu0 0.0
        %2198 = vmatpush.msra.mxu0 0.0
        %2199 = vmatpush.msra.mxu0 0.0
        %2200 = vmatpush.msra.mxu0 0.0
        %2201 = vmatpush.msra.mxu0 0.0
        %2202 = vmatpush.msra.mxu0 0.0
        %2203 = vmatpush.msra.mxu0 0.0
        %2204 = vmatpush.msra.mxu0 0.0
        %2205 = vmatpush.msra.mxu0 0.0
        %2206 = vmatpush.msra.mxu0 0.0
        %2207 = vmatpush.msra.mxu0 0.0
        %2208 = vmatpush.msra.mxu0 0.0
        %2209 = vmatpush.msra.mxu0 0.0
        %v2210 = vand.u32 %v1281, 4294901760
        %v2211 = vsub.f32 %v1281, %v2210
        %2212 = vmatpush.msra.mxu0 %v2211
        %v2213 = vand.u32 %v1280, 4294901760
        %v2214 = vsub.f32 %v1280, %v2213
        %2215 = vmatpush.msra.mxu0 %v2214
        %v2216 = vand.u32 %v449, 4294901760
        %v2217 = vsub.f32 %v449, %v2216
        %2218 = vmatmul.f32.gmra.mxu0 %v2217
        %v2219 = vpop.f32.mrf.mxu0
        %v2220 = vadd.f32 %v2190, %v2219
        %v2221 = vand.u32 %v452, 4294901760
        %v2222 = vsub.f32 %v452, %v2221
        %2223 = vmatmul.f32.gmra.mxu0 %v2222
        %v2224 = vpop.f32.mrf.mxu0
        %v2225 = vadd.f32 %v2194, %v2224
        %2226 = vdwg.mxu0
        %2227 = vmatpush.msra.mxu0 0.0
        %2228 = vmatpush.msra.mxu0 0.0
        %2229 = vmatpush.msra.mxu0 0.0
        %2230 = vmatpush.msra.mxu0 0.0
        %2231 = vmatpush.msra.mxu0 0.0
        %2232 = vmatpush.msra.mxu0 0.0
        %2233 = vmatpush.msra.mxu0 0.0
        %2234 = vmatpush.msra.mxu0 0.0
        %2235 = vmatpush.msra.mxu0 0.0
        %2236 = vmatpush.msra.mxu0 0.0
        %2237 = vmatpush.msra.mxu0 0.0
        %2238 = vmatpush.msra.mxu0 0.0
        %2239 = vmatpush.msra.mxu0 0.0
        %2240 = vmatpush.msra.mxu0 0.0
        %v2241 = vand.u32 %v1281, 4294901760
        %2242 = vmatpush.msra.mxu0 %v2241
        %v2243 = vand.u32 %v1280, 4294901760
        %2244 = vmatpush.msra.mxu0 %v2243
        %v2245 = vand.u32 %v449, 4294901760
        %v2246 = vsub.f32 %v449, %v2245
        %v2247 = vand.u32 %v2246, 4294901760
        %2248 = vmatmul.f32.gmra.mxu0 %v2247
        %v2249 = vpop.f32.mrf.mxu0
        %v2250 = vadd.f32 %v2220, %v2249
        %v2251 = vand.u32 %v452, 4294901760
        %v2252 = vsub.f32 %v452, %v2251
        %v2253 = vand.u32 %v2252, 4294901760
        %2254 = vmatmul.f32.gmra.mxu0 %v2253
        %v2255 = vpop.f32.mrf.mxu0
        %v2256 = vadd.f32 %v2225, %v2255
        %2257 = vdwg.mxu0
        %2258 = vmatpush.msra.mxu0 0.0
        %2259 = vmatpush.msra.mxu0 0.0
        %2260 = vmatpush.msra.mxu0 0.0
        %2261 = vmatpush.msra.mxu0 0.0
        %2262 = vmatpush.msra.mxu0 0.0
        %2263 = vmatpush.msra.mxu0 0.0
        %2264 = vmatpush.msra.mxu0 0.0
        %2265 = vmatpush.msra.mxu0 0.0
        %2266 = vmatpush.msra.mxu0 0.0
        %2267 = vmatpush.msra.mxu0 0.0
        %2268 = vmatpush.msra.mxu0 0.0
        %2269 = vmatpush.msra.mxu0 0.0
        %2270 = vmatpush.msra.mxu0 0.0
        %2271 = vmatpush.msra.mxu0 0.0
        %v2272 = vand.u32 %v1281, 4294901760
        %v2273 = vsub.f32 %v1281, %v2272
        %v2274 = vand.u32 %v2273, 4294901760
        %2275 = vmatpush.msra.mxu0 %v2274
        %v2276 = vand.u32 %v1280, 4294901760
        %v2277 = vsub.f32 %v1280, %v2276
        %v2278 = vand.u32 %v2277, 4294901760
        %2279 = vmatpush.msra.mxu0 %v2278
        %v2280 = vand.u32 %v449, 4294901760
        %2281 = vmatmul.f32.gmra.mxu0 %v2280
        %v2282 = vpop.f32.mrf.mxu0
        %v2283 = vadd.f32 %v2250, %v2282
        %v2284 = vand.u32 %v452, 4294901760
        %2285 = vmatmul.f32.gmra.mxu0 %v2284
        %v2286 = vpop.f32.mrf.mxu0
        %v2287 = vadd.f32 %v2256, %v2286
        %2288 = vdwg.mxu0
        %2289 = vmatpush.msra.mxu0 0.0
        %2290 = vmatpush.msra.mxu0 0.0
        %2291 = vmatpush.msra.mxu0 0.0
        %2292 = vmatpush.msra.mxu0 0.0
        %2293 = vmatpush.msra.mxu0 0.0
        %2294 = vmatpush.msra.mxu0 0.0
        %2295 = vmatpush.msra.mxu0 0.0
        %2296 = vmatpush.msra.mxu0 0.0
        %2297 = vmatpush.msra.mxu0 0.0
        %2298 = vmatpush.msra.mxu0 0.0
        %2299 = vmatpush.msra.mxu0 0.0
        %2300 = vmatpush.msra.mxu0 0.0
        %2301 = vmatpush.msra.mxu0 0.0
        %2302 = vmatpush.msra.mxu0 0.0
        %v2303 = vand.u32 %v1281, 4294901760
        %2304 = vmatpush.msra.mxu0 %v2303
        %v2305 = vand.u32 %v1280, 4294901760
        %2306 = vmatpush.msra.mxu0 %v2305
        %v2307 = vand.u32 %v449, 4294901760
        %2308 = vmatmul.f32.gmra.mxu0 %v2307
        %v2309 = vpop.f32.mrf.mxu0
        %v2310 = vadd.f32 %v2283, %v2309
        %v2311 = vand.u32 %v452, 4294901760
        %2312 = vmatmul.f32.gmra.mxu0 %v2311
        %v2313 = vpop.f32.mrf.mxu0
        %v2314 = vadd.f32 %v2287, %v2313
        %2315 = vdwg.mxu0
        %v2317 = vsel %vm420, %v2310, 0
        %v2320 = vsel %vm420, %v2314, 0
        %2322 = vmatpush.msra.mxu0 0.0
        %2323 = vmatpush.msra.mxu0 0.0
        %2324 = vmatpush.msra.mxu0 0.0
        %2325 = vmatpush.msra.mxu0 0.0
        %2326 = vmatpush.msra.mxu0 0.0
        %2327 = vmatpush.msra.mxu0 0.0
        %2328 = vmatpush.msra.mxu0 0.0
        %2329 = vmatpush.msra.mxu0 0.0
        %2330 = vmatpush.msra.mxu0 0.0
        %2331 = vmatpush.msra.mxu0 0.0
        %2332 = vmatpush.msra.mxu0 0.0
        %2333 = vmatpush.msra.mxu0 0.0
        %2334 = vmatpush.msra.mxu0 0.0
        %2335 = vmatpush.msra.mxu0 0.0
        %v2336 = vand.u32 %v414, 4294901760
        %2337 = vmatpush.msra.mxu0 %v2336
        %v2338 = vand.u32 %v413, 4294901760
        %2339 = vmatpush.msra.mxu0 %v2338
        %v2340 = vand.u32 %v2317, 4294901760
        %v2341 = vsub.f32 %v2317, %v2340
        %v2342 = vand.u32 %v2341, 4294901760
        %v2343 = vsub.f32 %v2341, %v2342
        %v2344 = vand.u32 %v2343, 4294901760
        %2345 = vmatmul.f32.gmra.mxu0 %v2344
        %v2346 = vpop.f32.mrf.mxu0
        %v2347 = vadd.f32 0.0, %v2346
        %v2348 = vand.u32 %v2320, 4294901760
        %v2349 = vsub.f32 %v2320, %v2348
        %v2350 = vand.u32 %v2349, 4294901760
        %v2351 = vsub.f32 %v2349, %v2350
        %v2352 = vand.u32 %v2351, 4294901760
        %2353 = vmatmul.f32.gmra.mxu0 %v2352
        %v2354 = vpop.f32.mrf.mxu0
        %v2355 = vadd.f32 0.0, %v2354
        %2356 = vdwg.mxu0
        %2357 = vmatpush.msra.mxu0 0.0
        %2358 = vmatpush.msra.mxu0 0.0
        %2359 = vmatpush.msra.mxu0 0.0
        %2360 = vmatpush.msra.mxu0 0.0
        %2361 = vmatpush.msra.mxu0 0.0
        %2362 = vmatpush.msra.mxu0 0.0
        %2363 = vmatpush.msra.mxu0 0.0
        %2364 = vmatpush.msra.mxu0 0.0
        %2365 = vmatpush.msra.mxu0 0.0
        %2366 = vmatpush.msra.mxu0 0.0
        %2367 = vmatpush.msra.mxu0 0.0
        %2368 = vmatpush.msra.mxu0 0.0
        %2369 = vmatpush.msra.mxu0 0.0
        %2370 = vmatpush.msra.mxu0 0.0
        %v2371 = vand.u32 %v414, 4294901760
        %v2372 = vsub.f32 %v414, %v2371
        %v2373 = vand.u32 %v2372, 4294901760
        %v2374 = vsub.f32 %v2372, %v2373
        %v2375 = vand.u32 %v2374, 4294901760
        %2376 = vmatpush.msra.mxu0 %v2375
        %v2377 = vand.u32 %v413, 4294901760
        %v2378 = vsub.f32 %v413, %v2377
        %v2379 = vand.u32 %v2378, 4294901760
        %v2380 = vsub.f32 %v2378, %v2379
        %v2381 = vand.u32 %v2380, 4294901760
        %2382 = vmatpush.msra.mxu0 %v2381
        %v2383 = vand.u32 %v2317, 4294901760
        %2384 = vmatmul.f32.gmra.mxu0 %v2383
        %v2385 = vpop.f32.mrf.mxu0
        %v2386 = vadd.f32 %v2347, %v2385
        %v2387 = vand.u32 %v2320, 4294901760
        %2388 = vmatmul.f32.gmra.mxu0 %v2387
        %v2389 = vpop.f32.mrf.mxu0
        %v2390 = vadd.f32 %v2355, %v2389
        %2391 = vdwg.mxu0
        %2392 = vmatpush.msra.mxu0 0.0
        %2393 = vmatpush.msra.mxu0 0.0
        %2394 = vmatpush.msra.mxu0 0.0
        %2395 = vmatpush.msra.mxu0 0.0
        %2396 = vmatpush.msra.mxu0 0.0
        %2397 = vmatpush.msra.mxu0 0.0
        %2398 = vmatpush.msra.mxu0 0.0
        %2399 = vmatpush.msra.mxu0 0.0
        %2400 = vmatpush.msra.mxu0 0.0
        %2401 = vmatpush.msra.mxu0 0.0
        %2402 = vmatpush.msra.mxu0 0.0
        %2403 = vmatpush.msra.mxu0 0.0
        %2404 = vmatpush.msra.mxu0 0.0
        %2405 = vmatpush.msra.mxu0 0.0
        %v2406 = vand.u32 %v414, 4294901760
        %v2407 = vsub.f32 %v414, %v2406
        %2408 = vmatpush.msra.mxu0 %v2407
        %v2409 = vand.u32 %v413, 4294901760
        %v2410 = vsub.f32 %v413, %v2409
        %2411 = vmatpush.msra.mxu0 %v2410
        %v2412 = vand.u32 %v2317, 4294901760
        %v2413 = vsub.f32 %v2317, %v2412
        %2414 = vmatmul.f32.gmra.mxu0 %v2413
        %v2415 = vpop.f32.mrf.mxu0
        %v2416 = vadd.f32 %v2386, %v2415
        %v2417 = vand.u32 %v2320, 4294901760
        %v2418 = vsub.f32 %v2320, %v2417
        %2419 = vmatmul.f32.gmra.mxu0 %v2418
        %v2420 = vpop.f32.mrf.mxu0
        %v2421 = vadd.f32 %v2390, %v2420
        %2422 = vdwg.mxu0
        %2423 = vmatpush.msra.mxu0 0.0
        %2424 = vmatpush.msra.mxu0 0.0
        %2425 = vmatpush.msra.mxu0 0.0
        %2426 = vmatpush.msra.mxu0 0.0
        %2427 = vmatpush.msra.mxu0 0.0
        %2428 = vmatpush.msra.mxu0 0.0
        %2429 = vmatpush.msra.mxu0 0.0
        %2430 = vmatpush.msra.mxu0 0.0
        %2431 = vmatpush.msra.mxu0 0.0
        %2432 = vmatpush.msra.mxu0 0.0
        %2433 = vmatpush.msra.mxu0 0.0
        %2434 = vmatpush.msra.mxu0 0.0
        %2435 = vmatpush.msra.mxu0 0.0
        %2436 = vmatpush.msra.mxu0 0.0
        %v2437 = vand.u32 %v414, 4294901760
        %2438 = vmatpush.msra.mxu0 %v2437
        %v2439 = vand.u32 %v413, 4294901760
        %2440 = vmatpush.msra.mxu0 %v2439
        %v2441 = vand.u32 %v2317, 4294901760
        %v2442 = vsub.f32 %v2317, %v2441
        %v2443 = vand.u32 %v2442, 4294901760
        %2444 = vmatmul.f32.gmra.mxu0 %v2443
        %v2445 = vpop.f32.mrf.mxu0
        %v2446 = vadd.f32 %v2416, %v2445
        %v2447 = vand.u32 %v2320, 4294901760
        %v2448 = vsub.f32 %v2320, %v2447
        %v2449 = vand.u32 %v2448, 4294901760
        %2450 = vmatmul.f32.gmra.mxu0 %v2449
        %v2451 = vpop.f32.mrf.mxu0
        %v2452 = vadd.f32 %v2421, %v2451
        %2453 = vdwg.mxu0
        %2454 = vmatpush.msra.mxu0 0.0
        %2455 = vmatpush.msra.mxu0 0.0
        %2456 = vmatpush.msra.mxu0 0.0
        %2457 = vmatpush.msra.mxu0 0.0
        %2458 = vmatpush.msra.mxu0 0.0
        %2459 = vmatpush.msra.mxu0 0.0
        %2460 = vmatpush.msra.mxu0 0.0
        %2461 = vmatpush.msra.mxu0 0.0
        %2462 = vmatpush.msra.mxu0 0.0
        %2463 = vmatpush.msra.mxu0 0.0
        %2464 = vmatpush.msra.mxu0 0.0
        %2465 = vmatpush.msra.mxu0 0.0
        %2466 = vmatpush.msra.mxu0 0.0
        %2467 = vmatpush.msra.mxu0 0.0
        %v2468 = vand.u32 %v414, 4294901760
        %v2469 = vsub.f32 %v414, %v2468
        %v2470 = vand.u32 %v2469, 4294901760
        %2471 = vmatpush.msra.mxu0 %v2470
        %v2472 = vand.u32 %v413, 4294901760
        %v2473 = vsub.f32 %v413, %v2472
        %v2474 = vand.u32 %v2473, 4294901760
        %2475 = vmatpush.msra.mxu0 %v2474
        %v2476 = vand.u32 %v2317, 4294901760
        %2477 = vmatmul.f32.gmra.mxu0 %v2476
        %v2478 = vpop.f32.mrf.mxu0
        %v2479 = vadd.f32 %v2446, %v2478
        %v2480 = vand.u32 %v2320, 4294901760
        %2481 = vmatmul.f32.gmra.mxu0 %v2480
        %v2482 = vpop.f32.mrf.mxu0
        %v2483 = vadd.f32 %v2452, %v2482
        %2484 = vdwg.mxu0
        %2485 = vmatpush.msra.mxu0 0.0
        %2486 = vmatpush.msra.mxu0 0.0
        %2487 = vmatpush.msra.mxu0 0.0
        %2488 = vmatpush.msra.mxu0 0.0
        %2489 = vmatpush.msra.mxu0 0.0
        %2490 = vmatpush.msra.mxu0 0.0
        %2491 = vmatpush.msra.mxu0 0.0
        %2492 = vmatpush.msra.mxu0 0.0
        %2493 = vmatpush.msra.mxu0 0.0
        %2494 = vmatpush.msra.mxu0 0.0
        %2495 = vmatpush.msra.mxu0 0.0
        %2496 = vmatpush.msra.mxu0 0.0
        %2497 = vmatpush.msra.mxu0 0.0
        %2498 = vmatpush.msra.mxu0 0.0
        %v2499 = vand.u32 %v414, 4294901760
        %2500 = vmatpush.msra.mxu0 %v2499
        %v2501 = vand.u32 %v413, 4294901760
        %2502 = vmatpush.msra.mxu0 %v2501
        %v2503 = vand.u32 %v2317, 4294901760
        %2504 = vmatmul.f32.gmra.mxu0 %v2503
        %v2505 = vpop.f32.mrf.mxu0
        %v2506 = vadd.f32 %v2479, %v2505
        %v2507 = vand.u32 %v2320, 4294901760
        %2508 = vmatmul.f32.gmra.mxu0 %v2507
        %v2509 = vpop.f32.mrf.mxu0
        %v2510 = vadd.f32 %v2483, %v2509
        %2511 = vdwg.mxu0
        %v2512 = vmul.f32 %v1734, %v1734
        %v2513 = vmul.f32 %v1738, %v1738
        %v2514 = vmul.f32 %v1734, %v834
        %v2515 = vmul.f32 %v1738, %v838
        %v2516 = vsub.f32 %v2120, %v2512
        %v2517 = vsub.f32 %v2124, %v2513
        %v2518 = vsub.f32 %v2506, %v2514
        %v2519 = vsub.f32 %v2510, %v2515
        %v2520 = vmul.f32 %v2514, 2.0
        %v2521 = vmul.f32 %v2515, 2.0
        %v2522 = vadd.f32 %v2520, 0.0001
        %v2523 = vadd.f32 %v2521, 0.0001
        %v2524 = vmul.f32 %v2518, 2.0
        %v2525 = vmul.f32 %v2519, 2.0
        %v2526 = vadd.f32 %v2524, 0.0009
        %v2527 = vadd.f32 %v2525, 0.0009
        %v2528 = vmul.f32 %v2522, %v2526
        %v2529 = vmul.f32 %v2523, %v2527
        %v2530 = vadd.f32 %v2512, %v840
        %v2531 = vadd.f32 %v2513, %v841
        %v2532 = vadd.f32 %v2530, 0.0001
        %v2533 = vadd.f32 %v2531, 0.0001
        %v2534 = vadd.f32 %v2516, %v1228
        %v2535 = vadd.f32 %v2517, %v1229
        %v2536 = vadd.f32 %v2534, 0.0009
        %v2537 = vadd.f32 %v2535, 0.0009
        %v2538 = vmul.f32 %v2532, %v2536
        %v2539 = vmul.f32 %v2533, %v2537
        %v2540 = vrcp.pop %v2538
        %v2541 = vmul.f32 %v2538, %v2540
        %v2542 = vsub.f32 1.0, %v2541
        %v2543 = vmul.f32 %v2540, %v2542
        %v2544 = vadd.f32 %v2540, %v2543
        %vm2545 = vweird.f32 %v2538
        %vm2546 = vweird.f32 %v2540
        %vm2547 = vmor %vm2545, %vm2546
        %v2548 = vsel %vm2547, %v2540, %v2544
        %v2549 = vand.u32 2147483647, %v2538
        %vm2550 = vcmp.eq.f32.partialorder %v2549, 8.507059e+37
        %v2551 = vand.u32 %v2538, 2147483648
        %v2552 = vor.u32 1.1754944e-38, %v2551
        %v2553 = vsel %vm2550, %v2552, %v2548
        %v2554 = vmul.f32 %v2528, %v2553
        %v2555 = vrcp.pop %v2539
        %v2556 = vmul.f32 %v2539, %v2555
        %v2557 = vsub.f32 1.0, %v2556
        %v2558 = vmul.f32 %v2555, %v2557
        %v2559 = vadd.f32 %v2555, %v2558
        %vm2560 = vweird.f32 %v2539
        %vm2561 = vweird.f32 %v2555
        %vm2562 = vmor %vm2560, %vm2561
        %v2563 = vsel %vm2562, %v2555, %v2559
        %v2564 = vand.u32 2147483647, %v2539
        %vm2565 = vcmp.eq.f32.partialorder %v2564, 8.507059e+37
        %v2566 = vand.u32 %v2539, 2147483648
        %v2567 = vor.u32 1.1754944e-38, %v2566
        %v2568 = vsel %vm2565, %v2567, %v2563
        %v2569 = vmul.f32 %v2529, %v2568
        %v2570 = vsel %vm420, %v2554, 0.0
        %v2571 = vsel %vm420, %v2569, 0.0
        %v2572 = vadd.f32 %v2570, %v2571
        %2573 = vadd.xlane.f32.xlu0 %v2572
        %v2574 = vpop.xlane.xlu0 %2573
        %v2575 = vrot.slane %v2574, 4
        %v2576 = vadd.f32 %v2574, %v2575
        %v2577 = vrot.slane %v2576, 2
        %v2578 = vadd.f32 %v2576, %v2577
        %v2579 = vrot.slane %v2578, 1
        %v2580 = vadd.f32 %v2578, %v2579
        %s2581 = vtos %v2580
        %s2582 = sadd.f32 %s2581, 0.0
        %s2583 = sadd.f32 %s447, %s1353
        %s2584 = ssub.f32 %s2583, %s1352
        %v2585 = vstv %s2584
        %v2586 = vrcp.pop %v2585
        %v2587 = vmul.f32 %v2585, %v2586
        %v2588 = vsub.f32 1.0, %v2587
        %v2589 = vmul.f32 %v2586, %v2588
        %v2590 = vadd.f32 %v2586, %v2589
        %vm2591 = vweird.f32 %v2585
        %vm2592 = vweird.f32 %v2586
        %vm2593 = vmor %vm2591, %vm2592
        %v2594 = vsel %vm2593, %v2586, %v2590
        %v2595 = vand.u32 2147483647, %v2585
        %vm2596 = vcmp.eq.f32.partialorder %v2595, 8.507059e+37
        %v2597 = vand.u32 %v2585, 2147483648
        %v2598 = vor.u32 1.1754944e-38, %v2597
        %v2599 = vsel %vm2596, %v2598, %v2594
        %s2600 = vtos %v2599
        %s2601 = smul.f32 %s1352, %s2600
        %s2602 = ssub.f32 1.0, %s2601
        %s2603 = smul.f32 %s2602, 0.5
        %s2604 = sadd.f32 %s1351, %s2603
        %s2605 = smul.f32 %s2582, 0.001953125
        %s2606 = ssub.f32 0.5, %s2605
        %s2607 = sadd.f32 %s2604, %s2606
        %v2608 = vld [vmem:[%s358] sm:$0xff]
        %v2609 = vpack.c.bf16 %v2608, %v2608
        %v2612 = vunpack.c.l.b16 %v415
        %v2613 = vunpack.c.l.b16 %v416
        %v2614 = vpack.c.b16 %v2613, %v2612
        %vm2615 = vcmask 64512
        %v2617 = vsel %vm2615, %v2614, 0
        %vm2619 = vcmask 1043456
        %v2621 = vsel %vm2619, %v2609, 0
        %2623 = vmatpush.bf16.msra.mxu0 0
        %2624 = vmatpush.bf16.msra.mxu0 0
        %2625 = vmatpush.bf16.msra.mxu0 0
        %2626 = vmatpush.bf16.msra.mxu0 0
        %2627 = vmatpush.bf16.msra.mxu0 0
        %2628 = vmatpush.bf16.msra.mxu0 0
        %2629 = vmatpush.bf16.msra.mxu0 0
        %2630 = vmatpush.bf16.msra.mxu0 %v2621
        %2631 = vmatmul.bf16.gmra.mxu0 %v2617
        %v2632 = vpop.f32.mrf.mxu0
        %v2633 = vadd.f32 0.0, %v2632
        %v2634 = vpop.f32.mrf.mxu0
        %v2635 = vadd.f32 0.0, %v2634
        %2636 = vdwg.mxu0
        %v2638 = vsel %vm2615, %v2633, 0
        %v2641 = vsel %vm2615, %v2635, 0
        %v2644 = vsel %vm2619, %v417, 0
        %2646 = vmatpush.bf16.msra.mxu0 0
        %2647 = vmatpush.bf16.msra.mxu0 0
        %2648 = vmatpush.bf16.msra.mxu0 0
        %2649 = vmatpush.bf16.msra.mxu0 0
        %2650 = vmatpush.bf16.msra.mxu0 0
        %2651 = vmatpush.bf16.msra.mxu0 0
        %2652 = vmatpush.bf16.msra.mxu0 0
        %2653 = vmatpush.bf16.msra.mxu0 %v2644
        %2654 = vmatmul.f32.gmra.mxu0 %v2638
        %v2655 = vpop.f32.mrf.mxu0
        %v2656 = vadd.f32 0.0, %v2655
        %2657 = vmatmul.f32.gmra.mxu0 %v2641
        %v2658 = vpop.f32.mrf.mxu0
        %v2659 = vadd.f32 0.0, %v2658
        %2660 = vdwg.mxu0
        %v2661 = vand.u32 2147483647, %v2656
        %v2662 = vand.u32 2147483647, %v2659
        %v2663 = vsub.f32 0.0, %v2661
        %v2664 = vsub.f32 0.0, %v2662
        %v2665 = vmul.f32 %v2663, 1.442695
        %v2666 = vpow.pop %v2665
        %v2667 = vmul.f32 %v2664, 1.442695
        %v2668 = vpow.pop %v2667
        %v2669 = vadd.f32 %v2666, 1.0
        %v2670 = vadd.f32 %v2668, 1.0
        %v2671 = vrcp.pop %v2669
        %v2672 = vmul.f32 %v2669, %v2671
        %v2673 = vsub.f32 1.0, %v2672
        %v2674 = vmul.f32 %v2671, %v2673
        %v2675 = vadd.f32 %v2671, %v2674
        %vm2676 = vweird.f32 %v2669
        %vm2677 = vweird.f32 %v2671
        %vm2678 = vmor %vm2676, %vm2677
        %v2679 = vsel %vm2678, %v2671, %v2675
        %v2680 = vand.u32 2147483647, %v2669
        %vm2681 = vcmp.eq.f32.partialorder %v2680, 8.507059e+37
        %v2682 = vand.u32 %v2669, 2147483648
        %v2683 = vor.u32 1.1754944e-38, %v2682
        %v2684 = vsel %vm2681, %v2683, %v2679
        %v2685 = vmul.f32 1.0, %v2684
        %v2686 = vrcp.pop %v2670
        %v2687 = vmul.f32 %v2670, %v2686
        %v2688 = vsub.f32 1.0, %v2687
        %v2689 = vmul.f32 %v2686, %v2688
        %v2690 = vadd.f32 %v2686, %v2689
        %vm2691 = vweird.f32 %v2670
        %vm2692 = vweird.f32 %v2686
        %vm2693 = vmor %vm2691, %vm2692
        %v2694 = vsel %vm2693, %v2686, %v2690
        %v2695 = vand.u32 2147483647, %v2670
        %vm2696 = vcmp.eq.f32.partialorder %v2695, 8.507059e+37
        %v2697 = vand.u32 %v2670, 2147483648
        %v2698 = vor.u32 1.1754944e-38, %v2697
        %v2699 = vsel %vm2696, %v2698, %v2694
        %v2700 = vmul.f32 1.0, %v2699
        %vm2701 = vcmp.ge.f32.partialorder %v2656, 0.0
        %vm2702 = vcmp.ge.f32.partialorder %v2659, 0.0
        %v2703 = vmul.f32 %v2666, %v2685
        %v2704 = vmul.f32 %v2668, %v2700
        %v2705 = vsel %vm2701, %v2685, %v2703
        %v2706 = vsel %vm2702, %v2700, %v2704
        %v2707 = vmul.f32 %v2705, %v2705
        %v2708 = vmul.f32 %v2706, %v2706
        %v2709 = vmul.f32 %v2705, %v418
        %v2710 = vmul.f32 %v2706, %v419
        %v2711 = vsel %vm420, %v2705, 0.0
        %v2712 = vsel %vm420, %v2706, 0.0
        %v2713 = vadd.f32 %v2711, %v2712
        %2714 = vadd.xlane.f32.xlu0 %v2713
        %v2715 = vpop.xlane.xlu0 %2714
        %v2716 = vrot.slane %v2715, 4
        %v2717 = vadd.f32 %v2715, %v2716
        %v2718 = vrot.slane %v2717, 2
        %v2719 = vadd.f32 %v2717, %v2718
        %v2720 = vrot.slane %v2719, 1
        %v2721 = vadd.f32 %v2719, %v2720
        %s2722 = vtos %v2721
        %v2723 = vsel %vm420, %v2707, 0.0
        %v2724 = vsel %vm420, %v2708, 0.0
        %v2725 = vadd.f32 %v2723, %v2724
        %2726 = vadd.xlane.f32.xlu0 %v2725
        %v2727 = vpop.xlane.xlu0 %2726
        %v2728 = vrot.slane %v2727, 4
        %v2729 = vadd.f32 %v2727, %v2728
        %v2730 = vrot.slane %v2729, 2
        %v2731 = vadd.f32 %v2729, %v2730
        %v2732 = vrot.slane %v2731, 1
        %v2733 = vadd.f32 %v2731, %v2732
        %s2734 = vtos %v2733
        %v2735 = vsel %vm420, %v2709, 0.0
        %v2736 = vsel %vm420, %v2710, 0.0
        %v2737 = vadd.f32 %v2735, %v2736
        %2738 = vadd.xlane.f32.xlu0 %v2737
        %v2739 = vpop.xlane.xlu0 %2738
        %v2740 = vrot.slane %v2739, 4
        %v2741 = vadd.f32 %v2739, %v2740
        %v2742 = vrot.slane %v2741, 2
        %v2743 = vadd.f32 %v2741, %v2742
        %v2744 = vrot.slane %v2743, 1
        %v2745 = vadd.f32 %v2743, %v2744
        %s2746 = vtos %v2745
        %v2747 = vmax.f32 %v2656, 0.0
        %v2748 = vmax.f32 %v2659, 0.0
        %v2749 = vmul.f32 %v2656, %v418
        %v2750 = vmul.f32 %v2659, %v419
        %v2751 = vsub.f32 %v2747, %v2749
        %v2752 = vsub.f32 %v2748, %v2750
        %v2753 = vlog2.pop %v2669
        %v2754 = vmul.f32 %v2753, 0.6931472
        %v2755 = vlog2.pop %v2670
        %v2756 = vmul.f32 %v2755, 0.6931472
        %v2757 = vadd.f32 %v2751, %v2754
        %v2758 = vadd.f32 %v2752, %v2756
        %v2759 = vsel %vm420, %v2757, 0.0
        %v2760 = vsel %vm420, %v2758, 0.0
        %v2761 = vadd.f32 %v2759, %v2760
        %2762 = vadd.xlane.f32.xlu0 %v2761
        %v2763 = vpop.xlane.xlu0 %2762
        %v2764 = vrot.slane %v2763, 4
        %v2765 = vadd.f32 %v2763, %v2764
        %v2766 = vrot.slane %v2765, 2
        %v2767 = vadd.f32 %v2765, %v2766
        %v2768 = vrot.slane %v2767, 1
        %v2769 = vadd.f32 %v2767, %v2768
        %s2770 = vtos %v2769
        %s2771 = smul.f32 %s2770, 0.05859375
        %s2772 = sadd.f32 %s2607, %s2771
        %s2773 = smul.f32 %s2746, 2.0
        %s2774 = ssub.f32 %s2734, %s2773
        %s2775 = sadd.f32 %s2774, %s446
        %s2776 = smul.f32 %s2775, 0.29296875
        %s2777 = sadd.f32 %s2772, %s2776
        %s2778 = ssub.f32 %s2722, %s2734
        %s2779 = smul.f32 %s2778, 0.390625
        %s2780 = sadd.f32 %s2777, %s2779
        %s2781 = sadd.f32 %s2746, 0.0
        %s2782 = sadd.f32 %s2722, 0.0
        %2783 = vmatpush.msra.mxu0 0.0
        %2784 = vmatpush.msra.mxu0 0.0
        %2785 = vmatpush.msra.mxu0 0.0
        %2786 = vmatpush.msra.mxu0 0.0
        %2787 = vmatpush.msra.mxu0 0.0
        %2788 = vmatpush.msra.mxu0 0.0
        %2789 = vmatpush.msra.mxu0 0.0
        %2790 = vmatpush.msra.mxu0 0.0
        %2791 = vmatpush.msra.mxu0 0.0
        %2792 = vmatpush.msra.mxu0 0.0
        %2793 = vmatpush.msra.mxu0 0.0
        %2794 = vmatpush.msra.mxu0 0.0
        %2795 = vmatpush.msra.mxu0 0.0
        %2796 = vmatpush.msra.mxu0 0.0
        %v2797 = vand.u32 %v2706, 4294901760
        %2798 = vmatpush.msra.mxu0 %v2797
        %v2799 = vand.u32 %v2705, 4294901760
        %2800 = vmatpush.msra.mxu0 %v2799
        %v2801 = vand.u32 %v449, 4294901760
        %v2802 = vsub.f32 %v449, %v2801
        %v2803 = vand.u32 %v2802, 4294901760
        %v2804 = vsub.f32 %v2802, %v2803
        %v2805 = vand.u32 %v2804, 4294901760
        %2806 = vmatmul.f32.gmra.mxu0 %v2805
        %v2807 = vpop.f32.mrf.mxu0
        %v2808 = vadd.f32 0.0, %v2807
        %v2809 = vand.u32 %v452, 4294901760
        %v2810 = vsub.f32 %v452, %v2809
        %v2811 = vand.u32 %v2810, 4294901760
        %v2812 = vsub.f32 %v2810, %v2811
        %v2813 = vand.u32 %v2812, 4294901760
        %2814 = vmatmul.f32.gmra.mxu0 %v2813
        %v2815 = vpop.f32.mrf.mxu0
        %v2816 = vadd.f32 0.0, %v2815
        %2817 = vdwg.mxu0
        %2818 = vmatpush.msra.mxu0 0.0
        %2819 = vmatpush.msra.mxu0 0.0
        %2820 = vmatpush.msra.mxu0 0.0
        %2821 = vmatpush.msra.mxu0 0.0
        %2822 = vmatpush.msra.mxu0 0.0
        %2823 = vmatpush.msra.mxu0 0.0
        %2824 = vmatpush.msra.mxu0 0.0
        %2825 = vmatpush.msra.mxu0 0.0
        %2826 = vmatpush.msra.mxu0 0.0
        %2827 = vmatpush.msra.mxu0 0.0
        %2828 = vmatpush.msra.mxu0 0.0
        %2829 = vmatpush.msra.mxu0 0.0
        %2830 = vmatpush.msra.mxu0 0.0
        %2831 = vmatpush.msra.mxu0 0.0
        %v2832 = vand.u32 %v2706, 4294901760
        %v2833 = vsub.f32 %v2706, %v2832
        %v2834 = vand.u32 %v2833, 4294901760
        %v2835 = vsub.f32 %v2833, %v2834
        %v2836 = vand.u32 %v2835, 4294901760
        %2837 = vmatpush.msra.mxu0 %v2836
        %v2838 = vand.u32 %v2705, 4294901760
        %v2839 = vsub.f32 %v2705, %v2838
        %v2840 = vand.u32 %v2839, 4294901760
        %v2841 = vsub.f32 %v2839, %v2840
        %v2842 = vand.u32 %v2841, 4294901760
        %2843 = vmatpush.msra.mxu0 %v2842
        %v2844 = vand.u32 %v449, 4294901760
        %2845 = vmatmul.f32.gmra.mxu0 %v2844
        %v2846 = vpop.f32.mrf.mxu0
        %v2847 = vadd.f32 %v2808, %v2846
        %v2848 = vand.u32 %v452, 4294901760
        %2849 = vmatmul.f32.gmra.mxu0 %v2848
        %v2850 = vpop.f32.mrf.mxu0
        %v2851 = vadd.f32 %v2816, %v2850
        %2852 = vdwg.mxu0
        %2853 = vmatpush.msra.mxu0 0.0
        %2854 = vmatpush.msra.mxu0 0.0
        %2855 = vmatpush.msra.mxu0 0.0
        %2856 = vmatpush.msra.mxu0 0.0
        %2857 = vmatpush.msra.mxu0 0.0
        %2858 = vmatpush.msra.mxu0 0.0
        %2859 = vmatpush.msra.mxu0 0.0
        %2860 = vmatpush.msra.mxu0 0.0
        %2861 = vmatpush.msra.mxu0 0.0
        %2862 = vmatpush.msra.mxu0 0.0
        %2863 = vmatpush.msra.mxu0 0.0
        %2864 = vmatpush.msra.mxu0 0.0
        %2865 = vmatpush.msra.mxu0 0.0
        %2866 = vmatpush.msra.mxu0 0.0
        %v2867 = vand.u32 %v2706, 4294901760
        %v2868 = vsub.f32 %v2706, %v2867
        %2869 = vmatpush.msra.mxu0 %v2868
        %v2870 = vand.u32 %v2705, 4294901760
        %v2871 = vsub.f32 %v2705, %v2870
        %2872 = vmatpush.msra.mxu0 %v2871
        %v2873 = vand.u32 %v449, 4294901760
        %v2874 = vsub.f32 %v449, %v2873
        %2875 = vmatmul.f32.gmra.mxu0 %v2874
        %v2876 = vpop.f32.mrf.mxu0
        %v2877 = vadd.f32 %v2847, %v2876
        %v2878 = vand.u32 %v452, 4294901760
        %v2879 = vsub.f32 %v452, %v2878
        %2880 = vmatmul.f32.gmra.mxu0 %v2879
        %v2881 = vpop.f32.mrf.mxu0
        %v2882 = vadd.f32 %v2851, %v2881
        %2883 = vdwg.mxu0
        %2884 = vmatpush.msra.mxu0 0.0
        %2885 = vmatpush.msra.mxu0 0.0
        %2886 = vmatpush.msra.mxu0 0.0
        %2887 = vmatpush.msra.mxu0 0.0
        %2888 = vmatpush.msra.mxu0 0.0
        %2889 = vmatpush.msra.mxu0 0.0
        %2890 = vmatpush.msra.mxu0 0.0
        %2891 = vmatpush.msra.mxu0 0.0
        %2892 = vmatpush.msra.mxu0 0.0
        %2893 = vmatpush.msra.mxu0 0.0
        %2894 = vmatpush.msra.mxu0 0.0
        %2895 = vmatpush.msra.mxu0 0.0
        %2896 = vmatpush.msra.mxu0 0.0
        %2897 = vmatpush.msra.mxu0 0.0
        %v2898 = vand.u32 %v2706, 4294901760
        %2899 = vmatpush.msra.mxu0 %v2898
        %v2900 = vand.u32 %v2705, 4294901760
        %2901 = vmatpush.msra.mxu0 %v2900
        %v2902 = vand.u32 %v449, 4294901760
        %v2903 = vsub.f32 %v449, %v2902
        %v2904 = vand.u32 %v2903, 4294901760
        %2905 = vmatmul.f32.gmra.mxu0 %v2904
        %v2906 = vpop.f32.mrf.mxu0
        %v2907 = vadd.f32 %v2877, %v2906
        %v2908 = vand.u32 %v452, 4294901760
        %v2909 = vsub.f32 %v452, %v2908
        %v2910 = vand.u32 %v2909, 4294901760
        %2911 = vmatmul.f32.gmra.mxu0 %v2910
        %v2912 = vpop.f32.mrf.mxu0
        %v2913 = vadd.f32 %v2882, %v2912
        %2914 = vdwg.mxu0
        %2915 = vmatpush.msra.mxu0 0.0
        %2916 = vmatpush.msra.mxu0 0.0
        %2917 = vmatpush.msra.mxu0 0.0
        %2918 = vmatpush.msra.mxu0 0.0
        %2919 = vmatpush.msra.mxu0 0.0
        %2920 = vmatpush.msra.mxu0 0.0
        %2921 = vmatpush.msra.mxu0 0.0
        %2922 = vmatpush.msra.mxu0 0.0
        %2923 = vmatpush.msra.mxu0 0.0
        %2924 = vmatpush.msra.mxu0 0.0
        %2925 = vmatpush.msra.mxu0 0.0
        %2926 = vmatpush.msra.mxu0 0.0
        %2927 = vmatpush.msra.mxu0 0.0
        %2928 = vmatpush.msra.mxu0 0.0
        %v2929 = vand.u32 %v2706, 4294901760
        %v2930 = vsub.f32 %v2706, %v2929
        %v2931 = vand.u32 %v2930, 4294901760
        %2932 = vmatpush.msra.mxu0 %v2931
        %v2933 = vand.u32 %v2705, 4294901760
        %v2934 = vsub.f32 %v2705, %v2933
        %v2935 = vand.u32 %v2934, 4294901760
        %2936 = vmatpush.msra.mxu0 %v2935
        %v2937 = vand.u32 %v449, 4294901760
        %2938 = vmatmul.f32.gmra.mxu0 %v2937
        %v2939 = vpop.f32.mrf.mxu0
        %v2940 = vadd.f32 %v2907, %v2939
        %v2941 = vand.u32 %v452, 4294901760
        %2942 = vmatmul.f32.gmra.mxu0 %v2941
        %v2943 = vpop.f32.mrf.mxu0
        %v2944 = vadd.f32 %v2913, %v2943
        %2945 = vdwg.mxu0
        %2946 = vmatpush.msra.mxu0 0.0
        %2947 = vmatpush.msra.mxu0 0.0
        %2948 = vmatpush.msra.mxu0 0.0
        %2949 = vmatpush.msra.mxu0 0.0
        %2950 = vmatpush.msra.mxu0 0.0
        %2951 = vmatpush.msra.mxu0 0.0
        %2952 = vmatpush.msra.mxu0 0.0
        %2953 = vmatpush.msra.mxu0 0.0
        %2954 = vmatpush.msra.mxu0 0.0
        %2955 = vmatpush.msra.mxu0 0.0
        %2956 = vmatpush.msra.mxu0 0.0
        %2957 = vmatpush.msra.mxu0 0.0
        %2958 = vmatpush.msra.mxu0 0.0
        %2959 = vmatpush.msra.mxu0 0.0
        %v2960 = vand.u32 %v2706, 4294901760
        %2961 = vmatpush.msra.mxu0 %v2960
        %v2962 = vand.u32 %v2705, 4294901760
        %2963 = vmatpush.msra.mxu0 %v2962
        %v2964 = vand.u32 %v449, 4294901760
        %2965 = vmatmul.f32.gmra.mxu0 %v2964
        %v2966 = vpop.f32.mrf.mxu0
        %v2967 = vadd.f32 %v2940, %v2966
        %v2968 = vand.u32 %v452, 4294901760
        %2969 = vmatmul.f32.gmra.mxu0 %v2968
        %v2970 = vpop.f32.mrf.mxu0
        %v2971 = vadd.f32 %v2944, %v2970
        %2972 = vdwg.mxu0
        %v2974 = vsel %vm420, %v2967, 0
        %v2977 = vsel %vm420, %v2971, 0
        %2979 = vmatpush.msra.mxu0 0.0
        %2980 = vmatpush.msra.mxu0 0.0
        %2981 = vmatpush.msra.mxu0 0.0
        %2982 = vmatpush.msra.mxu0 0.0
        %2983 = vmatpush.msra.mxu0 0.0
        %2984 = vmatpush.msra.mxu0 0.0
        %2985 = vmatpush.msra.mxu0 0.0
        %2986 = vmatpush.msra.mxu0 0.0
        %2987 = vmatpush.msra.mxu0 0.0
        %2988 = vmatpush.msra.mxu0 0.0
        %2989 = vmatpush.msra.mxu0 0.0
        %2990 = vmatpush.msra.mxu0 0.0
        %2991 = vmatpush.msra.mxu0 0.0
        %2992 = vmatpush.msra.mxu0 0.0
        %v2993 = vand.u32 %v414, 4294901760
        %2994 = vmatpush.msra.mxu0 %v2993
        %v2995 = vand.u32 %v413, 4294901760
        %2996 = vmatpush.msra.mxu0 %v2995
        %v2997 = vand.u32 %v2974, 4294901760
        %v2998 = vsub.f32 %v2974, %v2997
        %v2999 = vand.u32 %v2998, 4294901760
        %v3000 = vsub.f32 %v2998, %v2999
        %v3001 = vand.u32 %v3000, 4294901760
        %3002 = vmatmul.f32.gmra.mxu0 %v3001
        %v3003 = vpop.f32.mrf.mxu0
        %v3004 = vadd.f32 0.0, %v3003
        %v3005 = vand.u32 %v2977, 4294901760
        %v3006 = vsub.f32 %v2977, %v3005
        %v3007 = vand.u32 %v3006, 4294901760
        %v3008 = vsub.f32 %v3006, %v3007
        %v3009 = vand.u32 %v3008, 4294901760
        %3010 = vmatmul.f32.gmra.mxu0 %v3009
        %v3011 = vpop.f32.mrf.mxu0
        %v3012 = vadd.f32 0.0, %v3011
        %3013 = vdwg.mxu0
        %3014 = vmatpush.msra.mxu0 0.0
        %3015 = vmatpush.msra.mxu0 0.0
        %3016 = vmatpush.msra.mxu0 0.0
        %3017 = vmatpush.msra.mxu0 0.0
        %3018 = vmatpush.msra.mxu0 0.0
        %3019 = vmatpush.msra.mxu0 0.0
        %3020 = vmatpush.msra.mxu0 0.0
        %3021 = vmatpush.msra.mxu0 0.0
        %3022 = vmatpush.msra.mxu0 0.0
        %3023 = vmatpush.msra.mxu0 0.0
        %3024 = vmatpush.msra.mxu0 0.0
        %3025 = vmatpush.msra.mxu0 0.0
        %3026 = vmatpush.msra.mxu0 0.0
        %3027 = vmatpush.msra.mxu0 0.0
        %v3028 = vand.u32 %v414, 4294901760
        %v3029 = vsub.f32 %v414, %v3028
        %v3030 = vand.u32 %v3029, 4294901760
        %v3031 = vsub.f32 %v3029, %v3030
        %v3032 = vand.u32 %v3031, 4294901760
        %3033 = vmatpush.msra.mxu0 %v3032
        %v3034 = vand.u32 %v413, 4294901760
        %v3035 = vsub.f32 %v413, %v3034
        %v3036 = vand.u32 %v3035, 4294901760
        %v3037 = vsub.f32 %v3035, %v3036
        %v3038 = vand.u32 %v3037, 4294901760
        %3039 = vmatpush.msra.mxu0 %v3038
        %v3040 = vand.u32 %v2974, 4294901760
        %3041 = vmatmul.f32.gmra.mxu0 %v3040
        %v3042 = vpop.f32.mrf.mxu0
        %v3043 = vadd.f32 %v3004, %v3042
        %v3044 = vand.u32 %v2977, 4294901760
        %3045 = vmatmul.f32.gmra.mxu0 %v3044
        %v3046 = vpop.f32.mrf.mxu0
        %v3047 = vadd.f32 %v3012, %v3046
        %3048 = vdwg.mxu0
        %3049 = vmatpush.msra.mxu0 0.0
        %3050 = vmatpush.msra.mxu0 0.0
        %3051 = vmatpush.msra.mxu0 0.0
        %3052 = vmatpush.msra.mxu0 0.0
        %3053 = vmatpush.msra.mxu0 0.0
        %3054 = vmatpush.msra.mxu0 0.0
        %3055 = vmatpush.msra.mxu0 0.0
        %3056 = vmatpush.msra.mxu0 0.0
        %3057 = vmatpush.msra.mxu0 0.0
        %3058 = vmatpush.msra.mxu0 0.0
        %3059 = vmatpush.msra.mxu0 0.0
        %3060 = vmatpush.msra.mxu0 0.0
        %3061 = vmatpush.msra.mxu0 0.0
        %3062 = vmatpush.msra.mxu0 0.0
        %v3063 = vand.u32 %v414, 4294901760
        %v3064 = vsub.f32 %v414, %v3063
        %3065 = vmatpush.msra.mxu0 %v3064
        %v3066 = vand.u32 %v413, 4294901760
        %v3067 = vsub.f32 %v413, %v3066
        %3068 = vmatpush.msra.mxu0 %v3067
        %v3069 = vand.u32 %v2974, 4294901760
        %v3070 = vsub.f32 %v2974, %v3069
        %3071 = vmatmul.f32.gmra.mxu0 %v3070
        %v3072 = vpop.f32.mrf.mxu0
        %v3073 = vadd.f32 %v3043, %v3072
        %v3074 = vand.u32 %v2977, 4294901760
        %v3075 = vsub.f32 %v2977, %v3074
        %3076 = vmatmul.f32.gmra.mxu0 %v3075
        %v3077 = vpop.f32.mrf.mxu0
        %v3078 = vadd.f32 %v3047, %v3077
        %3079 = vdwg.mxu0
        %3080 = vmatpush.msra.mxu0 0.0
        %3081 = vmatpush.msra.mxu0 0.0
        %3082 = vmatpush.msra.mxu0 0.0
        %3083 = vmatpush.msra.mxu0 0.0
        %3084 = vmatpush.msra.mxu0 0.0
        %3085 = vmatpush.msra.mxu0 0.0
        %3086 = vmatpush.msra.mxu0 0.0
        %3087 = vmatpush.msra.mxu0 0.0
        %3088 = vmatpush.msra.mxu0 0.0
        %3089 = vmatpush.msra.mxu0 0.0
        %3090 = vmatpush.msra.mxu0 0.0
        %3091 = vmatpush.msra.mxu0 0.0
        %3092 = vmatpush.msra.mxu0 0.0
        %3093 = vmatpush.msra.mxu0 0.0
        %v3094 = vand.u32 %v414, 4294901760
        %3095 = vmatpush.msra.mxu0 %v3094
        %v3096 = vand.u32 %v413, 4294901760
        %3097 = vmatpush.msra.mxu0 %v3096
        %v3098 = vand.u32 %v2974, 4294901760
        %v3099 = vsub.f32 %v2974, %v3098
        %v3100 = vand.u32 %v3099, 4294901760
        %3101 = vmatmul.f32.gmra.mxu0 %v3100
        %v3102 = vpop.f32.mrf.mxu0
        %v3103 = vadd.f32 %v3073, %v3102
        %v3104 = vand.u32 %v2977, 4294901760
        %v3105 = vsub.f32 %v2977, %v3104
        %v3106 = vand.u32 %v3105, 4294901760
        %3107 = vmatmul.f32.gmra.mxu0 %v3106
        %v3108 = vpop.f32.mrf.mxu0
        %v3109 = vadd.f32 %v3078, %v3108
        %3110 = vdwg.mxu0
        %3111 = vmatpush.msra.mxu0 0.0
        %3112 = vmatpush.msra.mxu0 0.0
        %3113 = vmatpush.msra.mxu0 0.0
        %3114 = vmatpush.msra.mxu0 0.0
        %3115 = vmatpush.msra.mxu0 0.0
        %3116 = vmatpush.msra.mxu0 0.0
        %3117 = vmatpush.msra.mxu0 0.0
        %3118 = vmatpush.msra.mxu0 0.0
        %3119 = vmatpush.msra.mxu0 0.0
        %3120 = vmatpush.msra.mxu0 0.0
        %3121 = vmatpush.msra.mxu0 0.0
        %3122 = vmatpush.msra.mxu0 0.0
        %3123 = vmatpush.msra.mxu0 0.0
        %3124 = vmatpush.msra.mxu0 0.0
        %v3125 = vand.u32 %v414, 4294901760
        %v3126 = vsub.f32 %v414, %v3125
        %v3127 = vand.u32 %v3126, 4294901760
        %3128 = vmatpush.msra.mxu0 %v3127
        %v3129 = vand.u32 %v413, 4294901760
        %v3130 = vsub.f32 %v413, %v3129
        %v3131 = vand.u32 %v3130, 4294901760
        %3132 = vmatpush.msra.mxu0 %v3131
        %v3133 = vand.u32 %v2974, 4294901760
        %3134 = vmatmul.f32.gmra.mxu0 %v3133
        %v3135 = vpop.f32.mrf.mxu0
        %v3136 = vadd.f32 %v3103, %v3135
        %v3137 = vand.u32 %v2977, 4294901760
        %3138 = vmatmul.f32.gmra.mxu0 %v3137
        %v3139 = vpop.f32.mrf.mxu0
        %v3140 = vadd.f32 %v3109, %v3139
        %3141 = vdwg.mxu0
        %3142 = vmatpush.msra.mxu0 0.0
        %3143 = vmatpush.msra.mxu0 0.0
        %3144 = vmatpush.msra.mxu0 0.0
        %3145 = vmatpush.msra.mxu0 0.0
        %3146 = vmatpush.msra.mxu0 0.0
        %3147 = vmatpush.msra.mxu0 0.0
        %3148 = vmatpush.msra.mxu0 0.0
        %3149 = vmatpush.msra.mxu0 0.0
        %3150 = vmatpush.msra.mxu0 0.0
        %3151 = vmatpush.msra.mxu0 0.0
        %3152 = vmatpush.msra.mxu0 0.0
        %3153 = vmatpush.msra.mxu0 0.0
        %3154 = vmatpush.msra.mxu0 0.0
        %3155 = vmatpush.msra.mxu0 0.0
        %v3156 = vand.u32 %v414, 4294901760
        %3157 = vmatpush.msra.mxu0 %v3156
        %v3158 = vand.u32 %v413, 4294901760
        %3159 = vmatpush.msra.mxu0 %v3158
        %v3160 = vand.u32 %v2974, 4294901760
        %3161 = vmatmul.f32.gmra.mxu0 %v3160
        %v3162 = vpop.f32.mrf.mxu0
        %v3163 = vadd.f32 %v3136, %v3162
        %v3164 = vand.u32 %v2977, 4294901760
        %3165 = vmatmul.f32.gmra.mxu0 %v3164
        %v3166 = vpop.f32.mrf.mxu0
        %v3167 = vadd.f32 %v3140, %v3166
        %3168 = vdwg.mxu0
        %3169 = vmatpush.msra.mxu0 0.0
        %3170 = vmatpush.msra.mxu0 0.0
        %3171 = vmatpush.msra.mxu0 0.0
        %3172 = vmatpush.msra.mxu0 0.0
        %3173 = vmatpush.msra.mxu0 0.0
        %3174 = vmatpush.msra.mxu0 0.0
        %3175 = vmatpush.msra.mxu0 0.0
        %3176 = vmatpush.msra.mxu0 0.0
        %3177 = vmatpush.msra.mxu0 0.0
        %3178 = vmatpush.msra.mxu0 0.0
        %3179 = vmatpush.msra.mxu0 0.0
        %3180 = vmatpush.msra.mxu0 0.0
        %3181 = vmatpush.msra.mxu0 0.0
        %3182 = vmatpush.msra.mxu0 0.0
        %v3183 = vand.u32 %v2708, 4294901760
        %3184 = vmatpush.msra.mxu0 %v3183
        %v3185 = vand.u32 %v2707, 4294901760
        %3186 = vmatpush.msra.mxu0 %v3185
        %v3187 = vand.u32 %v449, 4294901760
        %v3188 = vsub.f32 %v449, %v3187
        %v3189 = vand.u32 %v3188, 4294901760
        %v3190 = vsub.f32 %v3188, %v3189
        %v3191 = vand.u32 %v3190, 4294901760
        %3192 = vmatmul.f32.gmra.mxu0 %v3191
        %v3193 = vpop.f32.mrf.mxu0
        %v3194 = vadd.f32 0.0, %v3193
        %v3195 = vand.u32 %v452, 4294901760
        %v3196 = vsub.f32 %v452, %v3195
        %v3197 = vand.u32 %v3196, 4294901760
        %v3198 = vsub.f32 %v3196, %v3197
        %v3199 = vand.u32 %v3198, 4294901760
        %3200 = vmatmul.f32.gmra.mxu0 %v3199
        %v3201 = vpop.f32.mrf.mxu0
        %v3202 = vadd.f32 0.0, %v3201
        %3203 = vdwg.mxu0
        %3204 = vmatpush.msra.mxu0 0.0
        %3205 = vmatpush.msra.mxu0 0.0
        %3206 = vmatpush.msra.mxu0 0.0
        %3207 = vmatpush.msra.mxu0 0.0
        %3208 = vmatpush.msra.mxu0 0.0
        %3209 = vmatpush.msra.mxu0 0.0
        %3210 = vmatpush.msra.mxu0 0.0
        %3211 = vmatpush.msra.mxu0 0.0
        %3212 = vmatpush.msra.mxu0 0.0
        %3213 = vmatpush.msra.mxu0 0.0
        %3214 = vmatpush.msra.mxu0 0.0
        %3215 = vmatpush.msra.mxu0 0.0
        %3216 = vmatpush.msra.mxu0 0.0
        %3217 = vmatpush.msra.mxu0 0.0
        %v3218 = vand.u32 %v2708, 4294901760
        %v3219 = vsub.f32 %v2708, %v3218
        %v3220 = vand.u32 %v3219, 4294901760
        %v3221 = vsub.f32 %v3219, %v3220
        %v3222 = vand.u32 %v3221, 4294901760
        %3223 = vmatpush.msra.mxu0 %v3222
        %v3224 = vand.u32 %v2707, 4294901760
        %v3225 = vsub.f32 %v2707, %v3224
        %v3226 = vand.u32 %v3225, 4294901760
        %v3227 = vsub.f32 %v3225, %v3226
        %v3228 = vand.u32 %v3227, 4294901760
        %3229 = vmatpush.msra.mxu0 %v3228
        %v3230 = vand.u32 %v449, 4294901760
        %3231 = vmatmul.f32.gmra.mxu0 %v3230
        %v3232 = vpop.f32.mrf.mxu0
        %v3233 = vadd.f32 %v3194, %v3232
        %v3234 = vand.u32 %v452, 4294901760
        %3235 = vmatmul.f32.gmra.mxu0 %v3234
        %v3236 = vpop.f32.mrf.mxu0
        %v3237 = vadd.f32 %v3202, %v3236
        %3238 = vdwg.mxu0
        %3239 = vmatpush.msra.mxu0 0.0
        %3240 = vmatpush.msra.mxu0 0.0
        %3241 = vmatpush.msra.mxu0 0.0
        %3242 = vmatpush.msra.mxu0 0.0
        %3243 = vmatpush.msra.mxu0 0.0
        %3244 = vmatpush.msra.mxu0 0.0
        %3245 = vmatpush.msra.mxu0 0.0
        %3246 = vmatpush.msra.mxu0 0.0
        %3247 = vmatpush.msra.mxu0 0.0
        %3248 = vmatpush.msra.mxu0 0.0
        %3249 = vmatpush.msra.mxu0 0.0
        %3250 = vmatpush.msra.mxu0 0.0
        %3251 = vmatpush.msra.mxu0 0.0
        %3252 = vmatpush.msra.mxu0 0.0
        %v3253 = vand.u32 %v2708, 4294901760
        %v3254 = vsub.f32 %v2708, %v3253
        %3255 = vmatpush.msra.mxu0 %v3254
        %v3256 = vand.u32 %v2707, 4294901760
        %v3257 = vsub.f32 %v2707, %v3256
        %3258 = vmatpush.msra.mxu0 %v3257
        %v3259 = vand.u32 %v449, 4294901760
        %v3260 = vsub.f32 %v449, %v3259
        %3261 = vmatmul.f32.gmra.mxu0 %v3260
        %v3262 = vpop.f32.mrf.mxu0
        %v3263 = vadd.f32 %v3233, %v3262
        %v3264 = vand.u32 %v452, 4294901760
        %v3265 = vsub.f32 %v452, %v3264
        %3266 = vmatmul.f32.gmra.mxu0 %v3265
        %v3267 = vpop.f32.mrf.mxu0
        %v3268 = vadd.f32 %v3237, %v3267
        %3269 = vdwg.mxu0
        %3270 = vmatpush.msra.mxu0 0.0
        %3271 = vmatpush.msra.mxu0 0.0
        %3272 = vmatpush.msra.mxu0 0.0
        %3273 = vmatpush.msra.mxu0 0.0
        %3274 = vmatpush.msra.mxu0 0.0
        %3275 = vmatpush.msra.mxu0 0.0
        %3276 = vmatpush.msra.mxu0 0.0
        %3277 = vmatpush.msra.mxu0 0.0
        %3278 = vmatpush.msra.mxu0 0.0
        %3279 = vmatpush.msra.mxu0 0.0
        %3280 = vmatpush.msra.mxu0 0.0
        %3281 = vmatpush.msra.mxu0 0.0
        %3282 = vmatpush.msra.mxu0 0.0
        %3283 = vmatpush.msra.mxu0 0.0
        %v3284 = vand.u32 %v2708, 4294901760
        %3285 = vmatpush.msra.mxu0 %v3284
        %v3286 = vand.u32 %v2707, 4294901760
        %3287 = vmatpush.msra.mxu0 %v3286
        %v3288 = vand.u32 %v449, 4294901760
        %v3289 = vsub.f32 %v449, %v3288
        %v3290 = vand.u32 %v3289, 4294901760
        %3291 = vmatmul.f32.gmra.mxu0 %v3290
        %v3292 = vpop.f32.mrf.mxu0
        %v3293 = vadd.f32 %v3263, %v3292
        %v3294 = vand.u32 %v452, 4294901760
        %v3295 = vsub.f32 %v452, %v3294
        %v3296 = vand.u32 %v3295, 4294901760
        %3297 = vmatmul.f32.gmra.mxu0 %v3296
        %v3298 = vpop.f32.mrf.mxu0
        %v3299 = vadd.f32 %v3268, %v3298
        %3300 = vdwg.mxu0
        %3301 = vmatpush.msra.mxu0 0.0
        %3302 = vmatpush.msra.mxu0 0.0
        %3303 = vmatpush.msra.mxu0 0.0
        %3304 = vmatpush.msra.mxu0 0.0
        %3305 = vmatpush.msra.mxu0 0.0
        %3306 = vmatpush.msra.mxu0 0.0
        %3307 = vmatpush.msra.mxu0 0.0
        %3308 = vmatpush.msra.mxu0 0.0
        %3309 = vmatpush.msra.mxu0 0.0
        %3310 = vmatpush.msra.mxu0 0.0
        %3311 = vmatpush.msra.mxu0 0.0
        %3312 = vmatpush.msra.mxu0 0.0
        %3313 = vmatpush.msra.mxu0 0.0
        %3314 = vmatpush.msra.mxu0 0.0
        %v3315 = vand.u32 %v2708, 4294901760
        %v3316 = vsub.f32 %v2708, %v3315
        %v3317 = vand.u32 %v3316, 4294901760
        %3318 = vmatpush.msra.mxu0 %v3317
        %v3319 = vand.u32 %v2707, 4294901760
        %v3320 = vsub.f32 %v2707, %v3319
        %v3321 = vand.u32 %v3320, 4294901760
        %3322 = vmatpush.msra.mxu0 %v3321
        %v3323 = vand.u32 %v449, 4294901760
        %3324 = vmatmul.f32.gmra.mxu0 %v3323
        %v3325 = vpop.f32.mrf.mxu0
        %v3326 = vadd.f32 %v3293, %v3325
        %v3327 = vand.u32 %v452, 4294901760
        %3328 = vmatmul.f32.gmra.mxu0 %v3327
        %v3329 = vpop.f32.mrf.mxu0
        %v3330 = vadd.f32 %v3299, %v3329
        %3331 = vdwg.mxu0
        %3332 = vmatpush.msra.mxu0 0.0
        %3333 = vmatpush.msra.mxu0 0.0
        %3334 = vmatpush.msra.mxu0 0.0
        %3335 = vmatpush.msra.mxu0 0.0
        %3336 = vmatpush.msra.mxu0 0.0
        %3337 = vmatpush.msra.mxu0 0.0
        %3338 = vmatpush.msra.mxu0 0.0
        %3339 = vmatpush.msra.mxu0 0.0
        %3340 = vmatpush.msra.mxu0 0.0
        %3341 = vmatpush.msra.mxu0 0.0
        %3342 = vmatpush.msra.mxu0 0.0
        %3343 = vmatpush.msra.mxu0 0.0
        %3344 = vmatpush.msra.mxu0 0.0
        %3345 = vmatpush.msra.mxu0 0.0
        %v3346 = vand.u32 %v2708, 4294901760
        %3347 = vmatpush.msra.mxu0 %v3346
        %v3348 = vand.u32 %v2707, 4294901760
        %3349 = vmatpush.msra.mxu0 %v3348
        %v3350 = vand.u32 %v449, 4294901760
        %3351 = vmatmul.f32.gmra.mxu0 %v3350
        %v3352 = vpop.f32.mrf.mxu0
        %v3353 = vadd.f32 %v3326, %v3352
        %v3354 = vand.u32 %v452, 4294901760
        %3355 = vmatmul.f32.gmra.mxu0 %v3354
        %v3356 = vpop.f32.mrf.mxu0
        %v3357 = vadd.f32 %v3330, %v3356
        %3358 = vdwg.mxu0
        %v3360 = vsel %vm420, %v3353, 0
        %v3363 = vsel %vm420, %v3357, 0
        %3365 = vmatpush.msra.mxu0 0.0
        %3366 = vmatpush.msra.mxu0 0.0
        %3367 = vmatpush.msra.mxu0 0.0
        %3368 = vmatpush.msra.mxu0 0.0
        %3369 = vmatpush.msra.mxu0 0.0
        %3370 = vmatpush.msra.mxu0 0.0
        %3371 = vmatpush.msra.mxu0 0.0
        %3372 = vmatpush.msra.mxu0 0.0
        %3373 = vmatpush.msra.mxu0 0.0
        %3374 = vmatpush.msra.mxu0 0.0
        %3375 = vmatpush.msra.mxu0 0.0
        %3376 = vmatpush.msra.mxu0 0.0
        %3377 = vmatpush.msra.mxu0 0.0
        %3378 = vmatpush.msra.mxu0 0.0
        %v3379 = vand.u32 %v414, 4294901760
        %3380 = vmatpush.msra.mxu0 %v3379
        %v3381 = vand.u32 %v413, 4294901760
        %3382 = vmatpush.msra.mxu0 %v3381
        %v3383 = vand.u32 %v3360, 4294901760
        %v3384 = vsub.f32 %v3360, %v3383
        %v3385 = vand.u32 %v3384, 4294901760
        %v3386 = vsub.f32 %v3384, %v3385
        %v3387 = vand.u32 %v3386, 4294901760
        %3388 = vmatmul.f32.gmra.mxu0 %v3387
        %v3389 = vpop.f32.mrf.mxu0
        %v3390 = vadd.f32 0.0, %v3389
        %v3391 = vand.u32 %v3363, 4294901760
        %v3392 = vsub.f32 %v3363, %v3391
        %v3393 = vand.u32 %v3392, 4294901760
        %v3394 = vsub.f32 %v3392, %v3393
        %v3395 = vand.u32 %v3394, 4294901760
        %3396 = vmatmul.f32.gmra.mxu0 %v3395
        %v3397 = vpop.f32.mrf.mxu0
        %v3398 = vadd.f32 0.0, %v3397
        %3399 = vdwg.mxu0
        %3400 = vmatpush.msra.mxu0 0.0
        %3401 = vmatpush.msra.mxu0 0.0
        %3402 = vmatpush.msra.mxu0 0.0
        %3403 = vmatpush.msra.mxu0 0.0
        %3404 = vmatpush.msra.mxu0 0.0
        %3405 = vmatpush.msra.mxu0 0.0
        %3406 = vmatpush.msra.mxu0 0.0
        %3407 = vmatpush.msra.mxu0 0.0
        %3408 = vmatpush.msra.mxu0 0.0
        %3409 = vmatpush.msra.mxu0 0.0
        %3410 = vmatpush.msra.mxu0 0.0
        %3411 = vmatpush.msra.mxu0 0.0
        %3412 = vmatpush.msra.mxu0 0.0
        %3413 = vmatpush.msra.mxu0 0.0
        %v3414 = vand.u32 %v414, 4294901760
        %v3415 = vsub.f32 %v414, %v3414
        %v3416 = vand.u32 %v3415, 4294901760
        %v3417 = vsub.f32 %v3415, %v3416
        %v3418 = vand.u32 %v3417, 4294901760
        %3419 = vmatpush.msra.mxu0 %v3418
        %v3420 = vand.u32 %v413, 4294901760
        %v3421 = vsub.f32 %v413, %v3420
        %v3422 = vand.u32 %v3421, 4294901760
        %v3423 = vsub.f32 %v3421, %v3422
        %v3424 = vand.u32 %v3423, 4294901760
        %3425 = vmatpush.msra.mxu0 %v3424
        %v3426 = vand.u32 %v3360, 4294901760
        %3427 = vmatmul.f32.gmra.mxu0 %v3426
        %v3428 = vpop.f32.mrf.mxu0
        %v3429 = vadd.f32 %v3390, %v3428
        %v3430 = vand.u32 %v3363, 4294901760
        %3431 = vmatmul.f32.gmra.mxu0 %v3430
        %v3432 = vpop.f32.mrf.mxu0
        %v3433 = vadd.f32 %v3398, %v3432
        %3434 = vdwg.mxu0
        %3435 = vmatpush.msra.mxu0 0.0
        %3436 = vmatpush.msra.mxu0 0.0
        %3437 = vmatpush.msra.mxu0 0.0
        %3438 = vmatpush.msra.mxu0 0.0
        %3439 = vmatpush.msra.mxu0 0.0
        %3440 = vmatpush.msra.mxu0 0.0
        %3441 = vmatpush.msra.mxu0 0.0
        %3442 = vmatpush.msra.mxu0 0.0
        %3443 = vmatpush.msra.mxu0 0.0
        %3444 = vmatpush.msra.mxu0 0.0
        %3445 = vmatpush.msra.mxu0 0.0
        %3446 = vmatpush.msra.mxu0 0.0
        %3447 = vmatpush.msra.mxu0 0.0
        %3448 = vmatpush.msra.mxu0 0.0
        %v3449 = vand.u32 %v414, 4294901760
        %v3450 = vsub.f32 %v414, %v3449
        %3451 = vmatpush.msra.mxu0 %v3450
        %v3452 = vand.u32 %v413, 4294901760
        %v3453 = vsub.f32 %v413, %v3452
        %3454 = vmatpush.msra.mxu0 %v3453
        %v3455 = vand.u32 %v3360, 4294901760
        %v3456 = vsub.f32 %v3360, %v3455
        %3457 = vmatmul.f32.gmra.mxu0 %v3456
        %v3458 = vpop.f32.mrf.mxu0
        %v3459 = vadd.f32 %v3429, %v3458
        %v3460 = vand.u32 %v3363, 4294901760
        %v3461 = vsub.f32 %v3363, %v3460
        %3462 = vmatmul.f32.gmra.mxu0 %v3461
        %v3463 = vpop.f32.mrf.mxu0
        %v3464 = vadd.f32 %v3433, %v3463
        %3465 = vdwg.mxu0
        %3466 = vmatpush.msra.mxu0 0.0
        %3467 = vmatpush.msra.mxu0 0.0
        %3468 = vmatpush.msra.mxu0 0.0
        %3469 = vmatpush.msra.mxu0 0.0
        %3470 = vmatpush.msra.mxu0 0.0
        %3471 = vmatpush.msra.mxu0 0.0
        %3472 = vmatpush.msra.mxu0 0.0
        %3473 = vmatpush.msra.mxu0 0.0
        %3474 = vmatpush.msra.mxu0 0.0
        %3475 = vmatpush.msra.mxu0 0.0
        %3476 = vmatpush.msra.mxu0 0.0
        %3477 = vmatpush.msra.mxu0 0.0
        %3478 = vmatpush.msra.mxu0 0.0
        %3479 = vmatpush.msra.mxu0 0.0
        %v3480 = vand.u32 %v414, 4294901760
        %3481 = vmatpush.msra.mxu0 %v3480
        %v3482 = vand.u32 %v413, 4294901760
        %3483 = vmatpush.msra.mxu0 %v3482
        %v3484 = vand.u32 %v3360, 4294901760
        %v3485 = vsub.f32 %v3360, %v3484
        %v3486 = vand.u32 %v3485, 4294901760
        %3487 = vmatmul.f32.gmra.mxu0 %v3486
        %v3488 = vpop.f32.mrf.mxu0
        %v3489 = vadd.f32 %v3459, %v3488
        %v3490 = vand.u32 %v3363, 4294901760
        %v3491 = vsub.f32 %v3363, %v3490
        %v3492 = vand.u32 %v3491, 4294901760
        %3493 = vmatmul.f32.gmra.mxu0 %v3492
        %v3494 = vpop.f32.mrf.mxu0
        %v3495 = vadd.f32 %v3464, %v3494
        %3496 = vdwg.mxu0
        %3497 = vmatpush.msra.mxu0 0.0
        %3498 = vmatpush.msra.mxu0 0.0
        %3499 = vmatpush.msra.mxu0 0.0
        %3500 = vmatpush.msra.mxu0 0.0
        %3501 = vmatpush.msra.mxu0 0.0
        %3502 = vmatpush.msra.mxu0 0.0
        %3503 = vmatpush.msra.mxu0 0.0
        %3504 = vmatpush.msra.mxu0 0.0
        %3505 = vmatpush.msra.mxu0 0.0
        %3506 = vmatpush.msra.mxu0 0.0
        %3507 = vmatpush.msra.mxu0 0.0
        %3508 = vmatpush.msra.mxu0 0.0
        %3509 = vmatpush.msra.mxu0 0.0
        %3510 = vmatpush.msra.mxu0 0.0
        %v3511 = vand.u32 %v414, 4294901760
        %v3512 = vsub.f32 %v414, %v3511
        %v3513 = vand.u32 %v3512, 4294901760
        %3514 = vmatpush.msra.mxu0 %v3513
        %v3515 = vand.u32 %v413, 4294901760
        %v3516 = vsub.f32 %v413, %v3515
        %v3517 = vand.u32 %v3516, 4294901760
        %3518 = vmatpush.msra.mxu0 %v3517
        %v3519 = vand.u32 %v3360, 4294901760
        %3520 = vmatmul.f32.gmra.mxu0 %v3519
        %v3521 = vpop.f32.mrf.mxu0
        %v3522 = vadd.f32 %v3489, %v3521
        %v3523 = vand.u32 %v3363, 4294901760
        %3524 = vmatmul.f32.gmra.mxu0 %v3523
        %v3525 = vpop.f32.mrf.mxu0
        %v3526 = vadd.f32 %v3495, %v3525
        %3527 = vdwg.mxu0
        %3528 = vmatpush.msra.mxu0 0.0
        %3529 = vmatpush.msra.mxu0 0.0
        %3530 = vmatpush.msra.mxu0 0.0
        %3531 = vmatpush.msra.mxu0 0.0
        %3532 = vmatpush.msra.mxu0 0.0
        %3533 = vmatpush.msra.mxu0 0.0
        %3534 = vmatpush.msra.mxu0 0.0
        %3535 = vmatpush.msra.mxu0 0.0
        %3536 = vmatpush.msra.mxu0 0.0
        %3537 = vmatpush.msra.mxu0 0.0
        %3538 = vmatpush.msra.mxu0 0.0
        %3539 = vmatpush.msra.mxu0 0.0
        %3540 = vmatpush.msra.mxu0 0.0
        %3541 = vmatpush.msra.mxu0 0.0
        %v3542 = vand.u32 %v414, 4294901760
        %3543 = vmatpush.msra.mxu0 %v3542
        %v3544 = vand.u32 %v413, 4294901760
        %3545 = vmatpush.msra.mxu0 %v3544
        %v3546 = vand.u32 %v3360, 4294901760
        %3547 = vmatmul.f32.gmra.mxu0 %v3546
        %v3548 = vpop.f32.mrf.mxu0
        %v3549 = vadd.f32 %v3522, %v3548
        %v3550 = vand.u32 %v3363, 4294901760
        %3551 = vmatmul.f32.gmra.mxu0 %v3550
        %v3552 = vpop.f32.mrf.mxu0
        %v3553 = vadd.f32 %v3526, %v3552
        %3554 = vdwg.mxu0
        %3555 = vmatpush.msra.mxu0 0.0
        %3556 = vmatpush.msra.mxu0 0.0
        %3557 = vmatpush.msra.mxu0 0.0
        %3558 = vmatpush.msra.mxu0 0.0
        %3559 = vmatpush.msra.mxu0 0.0
        %3560 = vmatpush.msra.mxu0 0.0
        %3561 = vmatpush.msra.mxu0 0.0
        %3562 = vmatpush.msra.mxu0 0.0
        %3563 = vmatpush.msra.mxu0 0.0
        %3564 = vmatpush.msra.mxu0 0.0
        %3565 = vmatpush.msra.mxu0 0.0
        %3566 = vmatpush.msra.mxu0 0.0
        %3567 = vmatpush.msra.mxu0 0.0
        %3568 = vmatpush.msra.mxu0 0.0
        %v3569 = vand.u32 %v2710, 4294901760
        %3570 = vmatpush.msra.mxu0 %v3569
        %v3571 = vand.u32 %v2709, 4294901760
        %3572 = vmatpush.msra.mxu0 %v3571
        %v3573 = vand.u32 %v449, 4294901760
        %v3574 = vsub.f32 %v449, %v3573
        %v3575 = vand.u32 %v3574, 4294901760
        %v3576 = vsub.f32 %v3574, %v3575
        %v3577 = vand.u32 %v3576, 4294901760
        %3578 = vmatmul.f32.gmra.mxu0 %v3577
        %v3579 = vpop.f32.mrf.mxu0
        %v3580 = vadd.f32 0.0, %v3579
        %v3581 = vand.u32 %v452, 4294901760
        %v3582 = vsub.f32 %v452, %v3581
        %v3583 = vand.u32 %v3582, 4294901760
        %v3584 = vsub.f32 %v3582, %v3583
        %v3585 = vand.u32 %v3584, 4294901760
        %3586 = vmatmul.f32.gmra.mxu0 %v3585
        %v3587 = vpop.f32.mrf.mxu0
        %v3588 = vadd.f32 0.0, %v3587
        %3589 = vdwg.mxu0
        %3590 = vmatpush.msra.mxu0 0.0
        %3591 = vmatpush.msra.mxu0 0.0
        %3592 = vmatpush.msra.mxu0 0.0
        %3593 = vmatpush.msra.mxu0 0.0
        %3594 = vmatpush.msra.mxu0 0.0
        %3595 = vmatpush.msra.mxu0 0.0
        %3596 = vmatpush.msra.mxu0 0.0
        %3597 = vmatpush.msra.mxu0 0.0
        %3598 = vmatpush.msra.mxu0 0.0
        %3599 = vmatpush.msra.mxu0 0.0
        %3600 = vmatpush.msra.mxu0 0.0
        %3601 = vmatpush.msra.mxu0 0.0
        %3602 = vmatpush.msra.mxu0 0.0
        %3603 = vmatpush.msra.mxu0 0.0
        %v3604 = vand.u32 %v2710, 4294901760
        %v3605 = vsub.f32 %v2710, %v3604
        %v3606 = vand.u32 %v3605, 4294901760
        %v3607 = vsub.f32 %v3605, %v3606
        %v3608 = vand.u32 %v3607, 4294901760
        %3609 = vmatpush.msra.mxu0 %v3608
        %v3610 = vand.u32 %v2709, 4294901760
        %v3611 = vsub.f32 %v2709, %v3610
        %v3612 = vand.u32 %v3611, 4294901760
        %v3613 = vsub.f32 %v3611, %v3612
        %v3614 = vand.u32 %v3613, 4294901760
        %3615 = vmatpush.msra.mxu0 %v3614
        %v3616 = vand.u32 %v449, 4294901760
        %3617 = vmatmul.f32.gmra.mxu0 %v3616
        %v3618 = vpop.f32.mrf.mxu0
        %v3619 = vadd.f32 %v3580, %v3618
        %v3620 = vand.u32 %v452, 4294901760
        %3621 = vmatmul.f32.gmra.mxu0 %v3620
        %v3622 = vpop.f32.mrf.mxu0
        %v3623 = vadd.f32 %v3588, %v3622
        %3624 = vdwg.mxu0
        %3625 = vmatpush.msra.mxu0 0.0
        %3626 = vmatpush.msra.mxu0 0.0
        %3627 = vmatpush.msra.mxu0 0.0
        %3628 = vmatpush.msra.mxu0 0.0
        %3629 = vmatpush.msra.mxu0 0.0
        %3630 = vmatpush.msra.mxu0 0.0
        %3631 = vmatpush.msra.mxu0 0.0
        %3632 = vmatpush.msra.mxu0 0.0
        %3633 = vmatpush.msra.mxu0 0.0
        %3634 = vmatpush.msra.mxu0 0.0
        %3635 = vmatpush.msra.mxu0 0.0
        %3636 = vmatpush.msra.mxu0 0.0
        %3637 = vmatpush.msra.mxu0 0.0
        %3638 = vmatpush.msra.mxu0 0.0
        %v3639 = vand.u32 %v2710, 4294901760
        %v3640 = vsub.f32 %v2710, %v3639
        %3641 = vmatpush.msra.mxu0 %v3640
        %v3642 = vand.u32 %v2709, 4294901760
        %v3643 = vsub.f32 %v2709, %v3642
        %3644 = vmatpush.msra.mxu0 %v3643
        %v3645 = vand.u32 %v449, 4294901760
        %v3646 = vsub.f32 %v449, %v3645
        %3647 = vmatmul.f32.gmra.mxu0 %v3646
        %v3648 = vpop.f32.mrf.mxu0
        %v3649 = vadd.f32 %v3619, %v3648
        %v3650 = vand.u32 %v452, 4294901760
        %v3651 = vsub.f32 %v452, %v3650
        %3652 = vmatmul.f32.gmra.mxu0 %v3651
        %v3653 = vpop.f32.mrf.mxu0
        %v3654 = vadd.f32 %v3623, %v3653
        %3655 = vdwg.mxu0
        %3656 = vmatpush.msra.mxu0 0.0
        %3657 = vmatpush.msra.mxu0 0.0
        %3658 = vmatpush.msra.mxu0 0.0
        %3659 = vmatpush.msra.mxu0 0.0
        %3660 = vmatpush.msra.mxu0 0.0
        %3661 = vmatpush.msra.mxu0 0.0
        %3662 = vmatpush.msra.mxu0 0.0
        %3663 = vmatpush.msra.mxu0 0.0
        %3664 = vmatpush.msra.mxu0 0.0
        %3665 = vmatpush.msra.mxu0 0.0
        %3666 = vmatpush.msra.mxu0 0.0
        %3667 = vmatpush.msra.mxu0 0.0
        %3668 = vmatpush.msra.mxu0 0.0
        %3669 = vmatpush.msra.mxu0 0.0
        %v3670 = vand.u32 %v2710, 4294901760
        %3671 = vmatpush.msra.mxu0 %v3670
        %v3672 = vand.u32 %v2709, 4294901760
        %3673 = vmatpush.msra.mxu0 %v3672
        %v3674 = vand.u32 %v449, 4294901760
        %v3675 = vsub.f32 %v449, %v3674
        %v3676 = vand.u32 %v3675, 4294901760
        %3677 = vmatmul.f32.gmra.mxu0 %v3676
        %v3678 = vpop.f32.mrf.mxu0
        %v3679 = vadd.f32 %v3649, %v3678
        %v3680 = vand.u32 %v452, 4294901760
        %v3681 = vsub.f32 %v452, %v3680
        %v3682 = vand.u32 %v3681, 4294901760
        %3683 = vmatmul.f32.gmra.mxu0 %v3682
        %v3684 = vpop.f32.mrf.mxu0
        %v3685 = vadd.f32 %v3654, %v3684
        %3686 = vdwg.mxu0
        %3687 = vmatpush.msra.mxu0 0.0
        %3688 = vmatpush.msra.mxu0 0.0
        %3689 = vmatpush.msra.mxu0 0.0
        %3690 = vmatpush.msra.mxu0 0.0
        %3691 = vmatpush.msra.mxu0 0.0
        %3692 = vmatpush.msra.mxu0 0.0
        %3693 = vmatpush.msra.mxu0 0.0
        %3694 = vmatpush.msra.mxu0 0.0
        %3695 = vmatpush.msra.mxu0 0.0
        %3696 = vmatpush.msra.mxu0 0.0
        %3697 = vmatpush.msra.mxu0 0.0
        %3698 = vmatpush.msra.mxu0 0.0
        %3699 = vmatpush.msra.mxu0 0.0
        %3700 = vmatpush.msra.mxu0 0.0
        %v3701 = vand.u32 %v2710, 4294901760
        %v3702 = vsub.f32 %v2710, %v3701
        %v3703 = vand.u32 %v3702, 4294901760
        %3704 = vmatpush.msra.mxu0 %v3703
        %v3705 = vand.u32 %v2709, 4294901760
        %v3706 = vsub.f32 %v2709, %v3705
        %v3707 = vand.u32 %v3706, 4294901760
        %3708 = vmatpush.msra.mxu0 %v3707
        %v3709 = vand.u32 %v449, 4294901760
        %3710 = vmatmul.f32.gmra.mxu0 %v3709
        %v3711 = vpop.f32.mrf.mxu0
        %v3712 = vadd.f32 %v3679, %v3711
        %v3713 = vand.u32 %v452, 4294901760
        %3714 = vmatmul.f32.gmra.mxu0 %v3713
        %v3715 = vpop.f32.mrf.mxu0
        %v3716 = vadd.f32 %v3685, %v3715
        %3717 = vdwg.mxu0
        %3718 = vmatpush.msra.mxu0 0.0
        %3719 = vmatpush.msra.mxu0 0.0
        %3720 = vmatpush.msra.mxu0 0.0
        %3721 = vmatpush.msra.mxu0 0.0
        %3722 = vmatpush.msra.mxu0 0.0
        %3723 = vmatpush.msra.mxu0 0.0
        %3724 = vmatpush.msra.mxu0 0.0
        %3725 = vmatpush.msra.mxu0 0.0
        %3726 = vmatpush.msra.mxu0 0.0
        %3727 = vmatpush.msra.mxu0 0.0
        %3728 = vmatpush.msra.mxu0 0.0
        %3729 = vmatpush.msra.mxu0 0.0
        %3730 = vmatpush.msra.mxu0 0.0
        %3731 = vmatpush.msra.mxu0 0.0
        %v3732 = vand.u32 %v2710, 4294901760
        %3733 = vmatpush.msra.mxu0 %v3732
        %v3734 = vand.u32 %v2709, 4294901760
        %3735 = vmatpush.msra.mxu0 %v3734
        %v3736 = vand.u32 %v449, 4294901760
        %3737 = vmatmul.f32.gmra.mxu0 %v3736
        %v3738 = vpop.f32.mrf.mxu0
        %v3739 = vadd.f32 %v3712, %v3738
        %v3740 = vand.u32 %v452, 4294901760
        %3741 = vmatmul.f32.gmra.mxu0 %v3740
        %v3742 = vpop.f32.mrf.mxu0
        %v3743 = vadd.f32 %v3716, %v3742
        %3744 = vdwg.mxu0
        %v3746 = vsel %vm420, %v3739, 0
        %v3749 = vsel %vm420, %v3743, 0
        %3751 = vmatpush.msra.mxu0 0.0
        %3752 = vmatpush.msra.mxu0 0.0
        %3753 = vmatpush.msra.mxu0 0.0
        %3754 = vmatpush.msra.mxu0 0.0
        %3755 = vmatpush.msra.mxu0 0.0
        %3756 = vmatpush.msra.mxu0 0.0
        %3757 = vmatpush.msra.mxu0 0.0
        %3758 = vmatpush.msra.mxu0 0.0
        %3759 = vmatpush.msra.mxu0 0.0
        %3760 = vmatpush.msra.mxu0 0.0
        %3761 = vmatpush.msra.mxu0 0.0
        %3762 = vmatpush.msra.mxu0 0.0
        %3763 = vmatpush.msra.mxu0 0.0
        %3764 = vmatpush.msra.mxu0 0.0
        %v3765 = vand.u32 %v414, 4294901760
        %3766 = vmatpush.msra.mxu0 %v3765
        %v3767 = vand.u32 %v413, 4294901760
        %3768 = vmatpush.msra.mxu0 %v3767
        %v3769 = vand.u32 %v3746, 4294901760
        %v3770 = vsub.f32 %v3746, %v3769
        %v3771 = vand.u32 %v3770, 4294901760
        %v3772 = vsub.f32 %v3770, %v3771
        %v3773 = vand.u32 %v3772, 4294901760
        %3774 = vmatmul.f32.gmra.mxu0 %v3773
        %v3775 = vpop.f32.mrf.mxu0
        %v3776 = vadd.f32 0.0, %v3775
        %v3777 = vand.u32 %v3749, 4294901760
        %v3778 = vsub.f32 %v3749, %v3777
        %v3779 = vand.u32 %v3778, 4294901760
        %v3780 = vsub.f32 %v3778, %v3779
        %v3781 = vand.u32 %v3780, 4294901760
        %3782 = vmatmul.f32.gmra.mxu0 %v3781
        %v3783 = vpop.f32.mrf.mxu0
        %v3784 = vadd.f32 0.0, %v3783
        %3785 = vdwg.mxu0
        %3786 = vmatpush.msra.mxu0 0.0
        %3787 = vmatpush.msra.mxu0 0.0
        %3788 = vmatpush.msra.mxu0 0.0
        %3789 = vmatpush.msra.mxu0 0.0
        %3790 = vmatpush.msra.mxu0 0.0
        %3791 = vmatpush.msra.mxu0 0.0
        %3792 = vmatpush.msra.mxu0 0.0
        %3793 = vmatpush.msra.mxu0 0.0
        %3794 = vmatpush.msra.mxu0 0.0
        %3795 = vmatpush.msra.mxu0 0.0
        %3796 = vmatpush.msra.mxu0 0.0
        %3797 = vmatpush.msra.mxu0 0.0
        %3798 = vmatpush.msra.mxu0 0.0
        %3799 = vmatpush.msra.mxu0 0.0
        %v3800 = vand.u32 %v414, 4294901760
        %v3801 = vsub.f32 %v414, %v3800
        %v3802 = vand.u32 %v3801, 4294901760
        %v3803 = vsub.f32 %v3801, %v3802
        %v3804 = vand.u32 %v3803, 4294901760
        %3805 = vmatpush.msra.mxu0 %v3804
        %v3806 = vand.u32 %v413, 4294901760
        %v3807 = vsub.f32 %v413, %v3806
        %v3808 = vand.u32 %v3807, 4294901760
        %v3809 = vsub.f32 %v3807, %v3808
        %v3810 = vand.u32 %v3809, 4294901760
        %3811 = vmatpush.msra.mxu0 %v3810
        %v3812 = vand.u32 %v3746, 4294901760
        %3813 = vmatmul.f32.gmra.mxu0 %v3812
        %v3814 = vpop.f32.mrf.mxu0
        %v3815 = vadd.f32 %v3776, %v3814
        %v3816 = vand.u32 %v3749, 4294901760
        %3817 = vmatmul.f32.gmra.mxu0 %v3816
        %v3818 = vpop.f32.mrf.mxu0
        %v3819 = vadd.f32 %v3784, %v3818
        %3820 = vdwg.mxu0
        %3821 = vmatpush.msra.mxu0 0.0
        %3822 = vmatpush.msra.mxu0 0.0
        %3823 = vmatpush.msra.mxu0 0.0
        %3824 = vmatpush.msra.mxu0 0.0
        %3825 = vmatpush.msra.mxu0 0.0
        %3826 = vmatpush.msra.mxu0 0.0
        %3827 = vmatpush.msra.mxu0 0.0
        %3828 = vmatpush.msra.mxu0 0.0
        %3829 = vmatpush.msra.mxu0 0.0
        %3830 = vmatpush.msra.mxu0 0.0
        %3831 = vmatpush.msra.mxu0 0.0
        %3832 = vmatpush.msra.mxu0 0.0
        %3833 = vmatpush.msra.mxu0 0.0
        %3834 = vmatpush.msra.mxu0 0.0
        %v3835 = vand.u32 %v414, 4294901760
        %v3836 = vsub.f32 %v414, %v3835
        %3837 = vmatpush.msra.mxu0 %v3836
        %v3838 = vand.u32 %v413, 4294901760
        %v3839 = vsub.f32 %v413, %v3838
        %3840 = vmatpush.msra.mxu0 %v3839
        %v3841 = vand.u32 %v3746, 4294901760
        %v3842 = vsub.f32 %v3746, %v3841
        %3843 = vmatmul.f32.gmra.mxu0 %v3842
        %v3844 = vpop.f32.mrf.mxu0
        %v3845 = vadd.f32 %v3815, %v3844
        %v3846 = vand.u32 %v3749, 4294901760
        %v3847 = vsub.f32 %v3749, %v3846
        %3848 = vmatmul.f32.gmra.mxu0 %v3847
        %v3849 = vpop.f32.mrf.mxu0
        %v3850 = vadd.f32 %v3819, %v3849
        %3851 = vdwg.mxu0
        %3852 = vmatpush.msra.mxu0 0.0
        %3853 = vmatpush.msra.mxu0 0.0
        %3854 = vmatpush.msra.mxu0 0.0
        %3855 = vmatpush.msra.mxu0 0.0
        %3856 = vmatpush.msra.mxu0 0.0
        %3857 = vmatpush.msra.mxu0 0.0
        %3858 = vmatpush.msra.mxu0 0.0
        %3859 = vmatpush.msra.mxu0 0.0
        %3860 = vmatpush.msra.mxu0 0.0
        %3861 = vmatpush.msra.mxu0 0.0
        %3862 = vmatpush.msra.mxu0 0.0
        %3863 = vmatpush.msra.mxu0 0.0
        %3864 = vmatpush.msra.mxu0 0.0
        %3865 = vmatpush.msra.mxu0 0.0
        %v3866 = vand.u32 %v414, 4294901760
        %3867 = vmatpush.msra.mxu0 %v3866
        %v3868 = vand.u32 %v413, 4294901760
        %3869 = vmatpush.msra.mxu0 %v3868
        %v3870 = vand.u32 %v3746, 4294901760
        %v3871 = vsub.f32 %v3746, %v3870
        %v3872 = vand.u32 %v3871, 4294901760
        %3873 = vmatmul.f32.gmra.mxu0 %v3872
        %v3874 = vpop.f32.mrf.mxu0
        %v3875 = vadd.f32 %v3845, %v3874
        %v3876 = vand.u32 %v3749, 4294901760
        %v3877 = vsub.f32 %v3749, %v3876
        %v3878 = vand.u32 %v3877, 4294901760
        %3879 = vmatmul.f32.gmra.mxu0 %v3878
        %v3880 = vpop.f32.mrf.mxu0
        %v3881 = vadd.f32 %v3850, %v3880
        %3882 = vdwg.mxu0
        %3883 = vmatpush.msra.mxu0 0.0
        %3884 = vmatpush.msra.mxu0 0.0
        %3885 = vmatpush.msra.mxu0 0.0
        %3886 = vmatpush.msra.mxu0 0.0
        %3887 = vmatpush.msra.mxu0 0.0
        %3888 = vmatpush.msra.mxu0 0.0
        %3889 = vmatpush.msra.mxu0 0.0
        %3890 = vmatpush.msra.mxu0 0.0
        %3891 = vmatpush.msra.mxu0 0.0
        %3892 = vmatpush.msra.mxu0 0.0
        %3893 = vmatpush.msra.mxu0 0.0
        %3894 = vmatpush.msra.mxu0 0.0
        %3895 = vmatpush.msra.mxu0 0.0
        %3896 = vmatpush.msra.mxu0 0.0
        %v3897 = vand.u32 %v414, 4294901760
        %v3898 = vsub.f32 %v414, %v3897
        %v3899 = vand.u32 %v3898, 4294901760
        %3900 = vmatpush.msra.mxu0 %v3899
        %v3901 = vand.u32 %v413, 4294901760
        %v3902 = vsub.f32 %v413, %v3901
        %v3903 = vand.u32 %v3902, 4294901760
        %3904 = vmatpush.msra.mxu0 %v3903
        %v3905 = vand.u32 %v3746, 4294901760
        %3906 = vmatmul.f32.gmra.mxu0 %v3905
        %v3907 = vpop.f32.mrf.mxu0
        %v3908 = vadd.f32 %v3875, %v3907
        %v3909 = vand.u32 %v3749, 4294901760
        %3910 = vmatmul.f32.gmra.mxu0 %v3909
        %v3911 = vpop.f32.mrf.mxu0
        %v3912 = vadd.f32 %v3881, %v3911
        %3913 = vdwg.mxu0
        %3914 = vmatpush.msra.mxu0 0.0
        %3915 = vmatpush.msra.mxu0 0.0
        %3916 = vmatpush.msra.mxu0 0.0
        %3917 = vmatpush.msra.mxu0 0.0
        %3918 = vmatpush.msra.mxu0 0.0
        %3919 = vmatpush.msra.mxu0 0.0
        %3920 = vmatpush.msra.mxu0 0.0
        %3921 = vmatpush.msra.mxu0 0.0
        %3922 = vmatpush.msra.mxu0 0.0
        %3923 = vmatpush.msra.mxu0 0.0
        %3924 = vmatpush.msra.mxu0 0.0
        %3925 = vmatpush.msra.mxu0 0.0
        %3926 = vmatpush.msra.mxu0 0.0
        %3927 = vmatpush.msra.mxu0 0.0
        %v3928 = vand.u32 %v414, 4294901760
        %3929 = vmatpush.msra.mxu0 %v3928
        %v3930 = vand.u32 %v413, 4294901760
        %3931 = vmatpush.msra.mxu0 %v3930
        %v3932 = vand.u32 %v3746, 4294901760
        %3933 = vmatmul.f32.gmra.mxu0 %v3932
        %v3934 = vpop.f32.mrf.mxu0
        %v3935 = vadd.f32 %v3908, %v3934
        %v3936 = vand.u32 %v3749, 4294901760
        %3937 = vmatmul.f32.gmra.mxu0 %v3936
        %v3938 = vpop.f32.mrf.mxu0
        %v3939 = vadd.f32 %v3912, %v3938
        %3940 = vdwg.mxu0
        %v3941 = vmul.f32 %v3163, %v3163
        %v3942 = vmul.f32 %v3167, %v3167
        %v3943 = vmul.f32 %v3163, %v834
        %v3944 = vmul.f32 %v3167, %v838
        %v3945 = vsub.f32 %v3549, %v3941
        %v3946 = vsub.f32 %v3553, %v3942
        %v3947 = vsub.f32 %v3935, %v3943
        %v3948 = vsub.f32 %v3939, %v3944
        %v3949 = vmul.f32 %v3943, 2.0
        %v3950 = vmul.f32 %v3944, 2.0
        %v3951 = vadd.f32 %v3949, 0.0001
        %v3952 = vadd.f32 %v3950, 0.0001
        %v3953 = vmul.f32 %v3947, 2.0
        %v3954 = vmul.f32 %v3948, 2.0
        %v3955 = vadd.f32 %v3953, 0.0009
        %v3956 = vadd.f32 %v3954, 0.0009
        %v3957 = vmul.f32 %v3951, %v3955
        %v3958 = vmul.f32 %v3952, %v3956
        %v3959 = vadd.f32 %v3941, %v840
        %v3960 = vadd.f32 %v3942, %v841
        %v3961 = vadd.f32 %v3959, 0.0001
        %v3962 = vadd.f32 %v3960, 0.0001
        %v3963 = vadd.f32 %v3945, %v1228
        %v3964 = vadd.f32 %v3946, %v1229
        %v3965 = vadd.f32 %v3963, 0.0009
        %v3966 = vadd.f32 %v3964, 0.0009
        %v3967 = vmul.f32 %v3961, %v3965
        %v3968 = vmul.f32 %v3962, %v3966
        %v3969 = vrcp.pop %v3967
        %v3970 = vmul.f32 %v3967, %v3969
        %v3971 = vsub.f32 1.0, %v3970
        %v3972 = vmul.f32 %v3969, %v3971
        %v3973 = vadd.f32 %v3969, %v3972
        %vm3974 = vweird.f32 %v3967
        %vm3975 = vweird.f32 %v3969
        %vm3976 = vmor %vm3974, %vm3975
        %v3977 = vsel %vm3976, %v3969, %v3973
        %v3978 = vand.u32 2147483647, %v3967
        %vm3979 = vcmp.eq.f32.partialorder %v3978, 8.507059e+37
        %v3980 = vand.u32 %v3967, 2147483648
        %v3981 = vor.u32 1.1754944e-38, %v3980
        %v3982 = vsel %vm3979, %v3981, %v3977
        %v3983 = vmul.f32 %v3957, %v3982
        %v3984 = vrcp.pop %v3968
        %v3985 = vmul.f32 %v3968, %v3984
        %v3986 = vsub.f32 1.0, %v3985
        %v3987 = vmul.f32 %v3984, %v3986
        %v3988 = vadd.f32 %v3984, %v3987
        %vm3989 = vweird.f32 %v3968
        %vm3990 = vweird.f32 %v3984
        %vm3991 = vmor %vm3989, %vm3990
        %v3992 = vsel %vm3991, %v3984, %v3988
        %v3993 = vand.u32 2147483647, %v3968
        %vm3994 = vcmp.eq.f32.partialorder %v3993, 8.507059e+37
        %v3995 = vand.u32 %v3968, 2147483648
        %v3996 = vor.u32 1.1754944e-38, %v3995
        %v3997 = vsel %vm3994, %v3996, %v3992
        %v3998 = vmul.f32 %v3958, %v3997
        %v3999 = vsel %vm420, %v3983, 0.0
        %v4000 = vsel %vm420, %v3998, 0.0
        %v4001 = vadd.f32 %v3999, %v4000
        %4002 = vadd.xlane.f32.xlu0 %v4001
        %v4003 = vpop.xlane.xlu0 %4002
        %v4004 = vrot.slane %v4003, 4
        %v4005 = vadd.f32 %v4003, %v4004
        %v4006 = vrot.slane %v4005, 2
        %v4007 = vadd.f32 %v4005, %v4006
        %v4008 = vrot.slane %v4007, 1
        %v4009 = vadd.f32 %v4007, %v4008
        %s4010 = vtos %v4009
        %s4011 = sadd.f32 %s4010, 0.0
        %s4012 = sadd.f32 %s447, %s2782
        %s4013 = ssub.f32 %s4012, %s2781
        %v4014 = vstv %s4013
        %v4015 = vrcp.pop %v4014
        %v4016 = vmul.f32 %v4014, %v4015
        %v4017 = vsub.f32 1.0, %v4016
        %v4018 = vmul.f32 %v4015, %v4017
        %v4019 = vadd.f32 %v4015, %v4018
        %vm4020 = vweird.f32 %v4014
        %vm4021 = vweird.f32 %v4015
        %vm4022 = vmor %vm4020, %vm4021
        %v4023 = vsel %vm4022, %v4015, %v4019
        %v4024 = vand.u32 2147483647, %v4014
        %vm4025 = vcmp.eq.f32.partialorder %v4024, 8.507059e+37
        %v4026 = vand.u32 %v4014, 2147483648
        %v4027 = vor.u32 1.1754944e-38, %v4026
        %v4028 = vsel %vm4025, %v4027, %v4023
        %s4029 = vtos %v4028
        %s4030 = smul.f32 %s2781, %s4029
        %s4031 = ssub.f32 1.0, %s4030
        %s4032 = smul.f32 %s4031, 0.5
        %s4033 = sadd.f32 %s2780, %s4032
        %s4034 = smul.f32 %s4011, 0.001953125
        %s4035 = ssub.f32 0.5, %s4034
        %s4036 = sadd.f32 %s4033, %s4035
        %v4037 = vstv %s4036
        %4038 = vst [vmem:[%s409] sm:$0xff] %v4037
        %s4039 = sand.u32 %s198, 1
        %s4040 = scalar_lea.sflag [#allocation4], %s4039
        %s4041 = sand.u32 %s198, 1
        %s4042 = smul.addr %s4041, 8
        %s4043 = scalar_lea.vmem [#allocation11], %s4042
        // Predicated region
        $region69: #{tpu_custom_call.1} parent=47 // pred_check
          %p4044 = pneg %p208
        $region70: #{tpu_custom_call.1} parent=47 // pred_check_branch
          %4046 = sbr.rel (%p4044) target = $region72
        $region71: #{tpu_custom_call.1} parent=47 // pred_region
          %4048 = vsyncadd %s4040, 0
          %s4049 = smul.addr %s28, 8
          %s4050 = scalar_lea.hbm %s7, %s4049
          %s4052 = sshll.u32 %s4043, 4
          %s4053 = int_to_ptr.vmem [resolvable:$true] %s4052
          %s4054 = sshll.u32 %s4050, 4
          %s4055 = int_to_ptr.hbm [resolvable:$true] %s4054
          %4057 = dma.vmem_to_hbm [thread:$0]  %s4053, 128, %s4055, %s4040
        $region72: #{tpu_custom_call.1} parent=47 // pred_fallthru
          _
      $region48: #{tpu_custom_call.1} parent=5 // pred_fallthru
        _
      %p4058 = scmp.le.s32.totalorder 2, %s23
      // Predicated region
      $region73: #{tpu_custom_call.1} parent=5 // pred_check
        %p4059 = pneg %p4058
      $region74: #{tpu_custom_call.1} parent=5 // pred_check_branch
        %4061 = sbr.rel (%p4059) target = $region76
      $region75: #{tpu_custom_call.1} parent=5 // pred_region
        %s4062 = ssub.s32 %s23, 2
        // Predicated region
        $region77: #{tpu_custom_call.1} parent=75 // pred_check
          %p4063 = pneg %p214
        $region78: #{tpu_custom_call.1} parent=75 // pred_check_branch
          %4065 = sbr.rel (%p4063) target = $region80
        $region79: #{tpu_custom_call.1} parent=75 // pred_region
          %s4066 = sand.u32 %s199, 1
          %s4067 = scalar_lea.sflag [#allocation4], %s4066
          %s4068 = sand.u32 %s199, 1
          %s4069 = smul.addr %s4068, 8
          %s4070 = scalar_lea.vmem [#allocation11], %s4069
          %4072 = dma.done %s4067, 128
        $region80: #{tpu_custom_call.1} parent=75 // pred_fallthru
          _
      $region76: #{tpu_custom_call.1} parent=5 // pred_fallthru
        _
    $region6: #{tpu_custom_call.1} parent=1 // loop_footer
      %s27 = sadd.s32 1, %s23
    $region7: #{tpu_custom_call.1} parent=1 // loop_footer_branch
      %22 = sbr.rel target = $region3
    $region8: #{tpu_custom_call.1} parent=1 // loop_exit
      _
    %4073 = vsyncpa [#allocation3], 1
    %s4074 = scalar_lea.sflag [#allocation3], 1
    %4075 = vsyncpa %s4074, 1
    %4076 = vsyncpa [#allocation6], 1
    %s4077 = scalar_lea.sflag [#allocation6], 1
    %4078 = vsyncpa %s4077, 1
    %4079 = vsyncpa [#allocation9], 1
    %4080 = vsyncpa [#allocation4], 1
    %s4081 = scalar_lea.sflag [#allocation4], 1
    %4082 = vsyncpa %s4081, 1

</llo_original>
